<compile_context>
chip_gen: v5e
topology: v5e:2x2
jax: 0.10.0
libtpu: 0.0.40
codegen_flags: <defaults>
</compile_context>

<pallas_src>
import functools
import math
from typing import Any, NamedTuple, Optional

import numpy as np
import jax
import jax.numpy as jnp
from jax import lax
from jax.experimental import pallas as pl
from jax.experimental.pallas import tpu as pltpu

NEG_SLOPE = 0.2
INV_SQRT2 = float(1.0 / math.sqrt(2.0))
LANE = 128            # channel dims are zero-padded to multiples of the lane width


def _leaky(v):
    return jnp.where(v >= 0, v, NEG_SLOPE * v)


def _ceil_to(x, m):
    return ((x + m - 1) // m) * m


# --------------------------- capability probes -------------------------------

def _run_probe(kernel, out_sds, args, want, **call_kw):
    try:
        got = pl.pallas_call(kernel, out_shape=out_sds, **call_kw)(*args)
        got = np.asarray(jax.block_until_ready(got)).astype(np.float32)
        return bool(np.allclose(got, want, rtol=1e-3, atol=1e-3))
    except Exception:   # any lowering / compile failure -> use the fallback path
        return False


@functools.lru_cache(maxsize=None)
def _roll_dir() -> Optional[int]:
    """Direction of pltpu.roll on the bf16 sublane axis: +1 == jnp.roll semantics,
    -1 == reversed, None == unavailable (fall back to slice+concat shifts)."""
    def k(a_ref, o_ref):
        o_ref[...] = pltpu.roll(a_ref[...], shift=3, axis=0)

    a = (np.arange(16 * 128) % 250).astype(np.float32).reshape(16, 128)
    try:
        got = pl.pallas_call(k, out_shape=jax.ShapeDtypeStruct((16, 128), jnp.bfloat16))(
            jnp.asarray(a, dtype=jnp.bfloat16))
        got = np.asarray(jax.block_until_ready(got)).astype(np.float32)
    except Exception:
        return None
    if np.array_equal(got, np.roll(a, 3, axis=0)):
        return 1
    if np.array_equal(got, np.roll(a, -3, axis=0)):
        return -1
    return None


@functools.lru_cache(maxsize=None)
def _lane_concat_ok() -> bool:
    """Lane concat of 128-wide bf16 pieces feeding one wide-K MXU matmul
    (probed at both a full-tile and a sub-tile sublane count)."""
    def one(rows):
        def k(a_ref, w_ref, o_ref):
            a = a_ref[...]
            p = jnp.concatenate([a, a + a, a + a + a], axis=1)
            o_ref[...] = jnp.dot(p, w_ref[...], preferred_element_type=jnp.float32)

        a = (np.arange(rows * 128) % 5).astype(np.float32).reshape(rows, 128)
        w = (np.arange(3 * 128 * 128) % 3).astype(np.float32).reshape(3 * 128, 128)
        want = np.concatenate([a, 2 * a, 3 * a], axis=1) @ w
        return _run_probe(k, jax.ShapeDtypeStruct((rows, 128), jnp.float32),
                          (jnp.asarray(a, dtype=jnp.bfloat16),
                           jnp.asarray(w, dtype=jnp.bfloat16)), want)

    return one(16) and one(4)


def _pool_probe(dtype, strided) -> bool:
    """Probe: scratch write + stride-2 (or row-wise) compaction + row-block stores."""
    Ho, W, C = 8, 4, 128
    Wo, hw = W // 2, 2 * 8 * 4

    def k(a_ref, o_ref, scr_ref, pool_ref):
        scr_ref[...] = a_ref[...].astype(scr_ref.dtype)
        for i in range(Ho):
            if strided:
                pool_ref[pl.ds(i * Wo, Wo), :] = scr_ref[pl.ds(2 * i * W, Wo, stride=2), :]
            else:
                for j in range(Wo):
                    pool_ref[pl.ds(i * Wo + j, 1), :] = scr_ref[pl.ds(2 * i * W + 2 * j, 1), :]
        o_ref[...] = pool_ref[...].astype(o_ref.dtype)

    a = (np.arange(hw * C) % 125).astype(np.float32).reshape(hw, C)
    want = a.reshape(2 * Ho, W, C)[0::2, 0::2, :].reshape(Ho * Wo, C)
    return _run_probe(
        k, jax.ShapeDtypeStruct((Ho * Wo, C), jnp.float32), (jnp.asarray(a),), want,
        scratch_shapes=[pltpu.VMEM((hw, C), dtype), pltpu.VMEM((Ho * Wo, C), dtype)])


@functools.lru_cache(maxsize=None)
def _pool_mode():
    """(scratch dtype, strided reads?) for the avg-pool compaction, fastest first."""
    for mode in ((jnp.bfloat16, True), (jnp.float32, True), (jnp.float32, False)):
        if _pool_probe(*mode):
            return mode
    return jnp.float32, False


@functools.lru_cache(maxsize=None)
def _single_buffer_ok() -> bool:
    """pipeline_mode=pl.Buffered(1) on a grid-constant input (single-buffer weights)."""
    def k(a_ref, o_ref):
        o_ref[0] = a_ref[...] * (pl.program_id(0) + 1).astype(jnp.float32)

    a = np.arange(8 * 128, dtype=np.float32).reshape(8, 128)
    want = np.stack([a, 2.0 * a])
    try:
        spec = pl.BlockSpec((8, 128), lambda i: (0, 0), pipeline_mode=pl.Buffered(1))
        got = pl.pallas_call(
            k, grid=(2,),
            in_specs=[spec],
            out_specs=pl.BlockSpec((1, 8, 128), lambda i: (i, 0, 0)),
            out_shape=jax.ShapeDtypeStruct((2, 8, 128), jnp.float32),
        )(jnp.asarray(a))
        got = np.asarray(jax.block_until_ready(got)).astype(np.float32)
        return bool(np.allclose(got, want))
    except Exception:
        return False


class _Caps(NamedTuple):
    roll_dir: Optional[int]
    fuse_taps: bool
    pool_dtype: Any
    strided_pool: bool


@functools.lru_cache(maxsize=None)
def _caps() -> _Caps:
    pool_dtype, strided = _pool_mode()
    return _Caps(roll_dir=_roll_dir(), fuse_taps=_lane_concat_ok(),
                 pool_dtype=pool_dtype, strided_pool=strided)


@functools.lru_cache(maxsize=None)
def _vmem_limit() -> Optional[int]:
    # ~3/4 of physical VMEM: ~48 MiB on v7x (64 MiB), ~96-100 MiB on v5e/v6e (128 MiB).
    try:
        cap = int(pltpu.get_tpu_info().vmem_capacity_bytes)
        if cap >= (32 << 20):
            return int(min(cap * 3 // 4, 100 << 20))
    except Exception:
        pass
    return None


# --------------------------- in-kernel helpers --------------------------------

def _shift(v, s, cfg):
    """out[p] = v[p + s] on the flat spatial (sublane) axis.

    Roll path (XLU slot, bf16 in-place): circular -- callers mask wrapped rows.
    Fallback path: zero-pad + static slice + concat (previously validated lowering),
    also used for sub-tile (hw < 16) maps."""
    if s == 0:
        return v
    hw = v.shape[0]
    if cfg.roll_dir is not None and hw >= 16:
        return pltpu.roll(v, shift=(-s * cfg.roll_dir) % hw, axis=0)
    vf = v.astype(jnp.float32)
    pad = jnp.zeros((abs(s),) + vf.shape[1:], vf.dtype)
    out = (jnp.concatenate([vf[s:], pad], axis=0) if s > 0
           else jnp.concatenate([pad, vf[:s]], axis=0))
    return out.astype(v.dtype)


def _conv3x3(u, W, w_ref, cfg):
    """3x3 'same' conv of a flattened (HW, Cin) bf16 map against a (9*Cin, Cout) bf16
    slab (tap-major, channel-minor); f32 accumulation on the MXU."""
    hw, c = u.shape
    flat = lax.broadcasted_iota(jnp.int32, u.shape, 0)
    col = flat & (W - 1)                          # W is a power of two
    colm = {-1: col > 0, 1: col < (W - 1)}        # source column j+dx exists
    rowm = {-1: flat >= W, 1: flat < (hw - W)}    # source row i+dy exists
    zero = jnp.zeros_like(u)

    def tap(dy, dx):
        p = _shift(u, dy * W + dx, cfg)
        m = rowm.get(dy)
        cm = colm.get(dx)
        if cm is not None:
            m = cm if m is None else (m & cm)
        return p if m is None else jnp.where(m, p, zero)

    acc = None
    if cfg.fuse_taps:
        # Taps grouped by dy: three lane-aligned concats -> three K=3*Cin matmuls.
        for g, dy in enumerate((-1, 0, 1)):
            patch = jnp.concatenate([tap(dy, -1), tap(dy, 0), tap(dy, 1)], axis=1)
            part = jnp.dot(patch, w_ref[pl.ds(g * 3 * c, 3 * c), :],
                           preferred_element_type=jnp.float32)
            acc = part if acc is None else acc + part
        return acc
    # Fallback: 9 accumulated K=Cin matmuls (no lane concatenation).
    k = 0
    for dy in (-1, 0, 1):
        for dx in (-1, 0, 1):
            part = jnp.dot(tap(dy, dx), w_ref[pl.ds(k * c, c), :],
                           preferred_element_type=jnp.float32)
            acc = part if acc is None else acc + part
            k += 1
    return acc


def _avgpool2(v, W, scr_ref, pool_ref, cfg):
    """avg_pool2d(2) of a flattened (H*W, C) bf16 map -> (H/2*W/2, C) bf16.

    Two shifted VPU adds build the 2x2 sums; compaction is stride-2 sublane reads
    from a VMEM scratch written block-wise into a small pooled scratch (wrapped rows
    from the rolls are never read by the even (i, j) output positions)."""
    hw = v.shape[0]
    H = hw // W
    Ho, Wo = H // 2, W // 2
    t = v + _shift(v, W, cfg)            # + pixel below
    t = t + _shift(t, 1, cfg)            # + pixel right -> full 2x2 sum
    scr_ref[...] = (t * 0.25).astype(scr_ref.dtype)
    # TODO(synk): switch to a fori_loop / extra grid axis at production Ho to bound IR size.
    for i in range(Ho):
        if cfg.strided_pool:
            pool_ref[pl.ds(i * Wo, Wo), :] = scr_ref[pl.ds(2 * i * W, Wo, stride=2), :]
        else:
            for j in range(Wo):
                pool_ref[pl.ds(i * Wo + j, 1), :] = scr_ref[pl.ds(2 * i * W + 2 * j, 1), :]
    return pool_ref[...].astype(jnp.bfloat16)


# ------------------------------ Pallas kernels --------------------------------

def stem_kernel(x_ref, w_ref, b_ref, o_ref, scr_ref, pool_ref, *, Wf, cfg):
    """avg_pool2d(2) of the concatenated 9-channel input, then Conv2d(9, C0, 3, 1, 1)."""
    x = x_ref[0]                                          # (Hf*Wf, C9p) bf16
    xp = _avgpool2(x, Wf, scr_ref, pool_ref, cfg)         # (H*W, C9p) bf16
    y = _conv3x3(xp, Wf // 2, w_ref, cfg) + b_ref[...]    # f32
    o_ref[0] = y.astype(o_ref.dtype)


def resblk_kernel(x_ref, w1_ref, b1_ref, w2_ref, b2_ref, *rest, W, learned_sc, cfg):
    """ResBlk(dim_in, dim_out, downsample=True, normalize=False):
       out = (shortcut(x) + residual(x)) / sqrt(2)."""
    if learned_sc:
        wsc_ref, o_ref, scr_ref, pool_ref = rest
    else:
        o_ref, scr_ref, pool_ref = rest

    x = x_ref[0]                                          # (HW, Cinp) bf16

    # shortcut: avg_pool2(conv1x1(x)) == conv1x1(avg_pool2(x)); identity 1x1 skipped.
    sc = _avgpool2(x, W, scr_ref, pool_ref, cfg)          # (HoWo, Cinp) bf16
    if learned_sc:
        sc = jnp.dot(sc, wsc_ref[...], preferred_element_type=jnp.float32)
    else:
        sc = sc.astype(jnp.float32)

    # residual: leaky -> conv1 -> avg_pool2 -> leaky -> conv2 (f32 accumulation).
    r = _conv3x3(_leaky(x), W, w1_ref, cfg) + b1_ref[...]                    # (HW, Cinp)
    r = _avgpool2(r.astype(jnp.bfloat16), W, scr_ref, pool_ref, cfg)         # (HoWo, Cinp)
    r = _conv3x3(_leaky(r), W // 2, w2_ref, cfg) + b2_ref[...]               # (HoWo, Coutp)

    o_ref[0] = ((sc + r) * INV_SQRT2).astype(o_ref.dtype)


def head_kernel(x_ref, wc_ref, bc_ref, wo_ref, bo_ref, o_ref):
    """LeakyReLU -> Conv2d(C, C, 2, 1, 0) on the 2x2 map as one (B,4C)@(4C,C) matmul
       -> LeakyReLU -> Conv2d(C, 1, 1, 1, 0) -> (B, 1)."""
    x = _leaky(x_ref[...])                                 # (B, 4*Cp) bf16
    h = jnp.dot(x, wc_ref[...], preferred_element_type=jnp.float32) + bc_ref[...]
    h = _leaky(h).astype(jnp.bfloat16)
    y = jnp.dot(h, wo_ref[...], preferred_element_type=jnp.float32) + bo_ref[...]
    o_ref[...] = y.astype(o_ref.dtype)


# ----------------------------- pallas_call wrappers ---------------------------

def _const_spec(shape):
    """Grid-constant operand (weights / biases): same block every step; single-buffered
    when the Mosaic build supports pipeline_mode=pl.Buffered(1)."""
    nd = len(shape)
    index_map = lambda b, _nd=nd: (0,) * _nd
    if _single_buffer_ok():
        return pl.BlockSpec(tuple(shape), index_map, pipeline_mode=pl.Buffered(1))
    return pl.BlockSpec(tuple(shape), index_map)


def _plain_spec(shape):
    nd = len(shape)
    return pl.BlockSpec(tuple(shape), lambda b, _nd=nd: (0,) * _nd)


def _batch_spec(shape):
    rest = tuple(shape[1:])
    return pl.BlockSpec((1,) + rest, lambda b, _n=len(rest): (b,) + (0,) * _n)


def _block_compiler_params():
    # batch iterations are independent -> shardable across v7x's two TensorCores.
    return pltpu.CompilerParams(dimension_semantics=("parallel",),
                                vmem_limit_bytes=_vmem_limit())


def stem_call(x, w, b, *, Wf, cfg):
    B, HWf, Cp = x.shape
    Cout = w.shape[-1]
    HWo = HWf // 4
    kern = functools.partial(stem_kernel, Wf=Wf, cfg=cfg)
    return pl.pallas_call(
        kern,
        out_shape=jax.ShapeDtypeStruct((B, HWo, Cout), jnp.bfloat16),
        grid=(B,),
        in_specs=[_batch_spec(x.shape), _const_spec(w.shape), _const_spec(b.shape)],
        out_specs=_batch_spec((B, HWo, Cout)),
        scratch_shapes=[pltpu.VMEM((HWf, Cp), cfg.pool_dtype),
                        pltpu.VMEM((HWo, Cp), cfg.pool_dtype)],
        compiler_params=_block_compiler_params(),
    )(x, w, b)


def resblk_call(x, w1, b1, w2, b2, wsc, *, W, cfg):
    B, HW, Cinp = x.shape
    Coutp = w2.shape[-1]
    HWo = HW // 4
    learned = wsc is not None
    kern = functools.partial(resblk_kernel, W=W, learned_sc=learned, cfg=cfg)
    ins = [x, w1, b1, w2, b2] + ([wsc] if learned else [])
    in_specs = [_batch_spec(x.shape)] + [_const_spec(a.shape) for a in ins[1:]]
    # TODO(synk): at production sizes, add a spatial row-tile grid axis (with a +/-W
    #             halo), fold batch into M for the late (HW<=16) blocks and fuse the
    #             tail blocks + head into one pallas_call (v5e HBM-round-trip bound).
    return pl.pallas_call(
        kern,
        out_shape=jax.ShapeDtypeStruct((B, HWo, Coutp), jnp.bfloat16),
        grid=(B,),
        in_specs=in_specs,
        out_specs=_batch_spec((B, HWo, Coutp)),
        scratch_shapes=[pltpu.VMEM((HW, Cinp), cfg.pool_dtype),
                        pltpu.VMEM((HWo, Cinp), cfg.pool_dtype)],
        compiler_params=_block_compiler_params(),
    )(*ins)


def head_call(x, wc, bc, wo, bo):
    B = x.shape[0]
    specs = [_plain_spec(a.shape) for a in (x, wc, bc, wo, bo)]
    return pl.pallas_call(
        head_kernel,
        out_shape=jax.ShapeDtypeStruct((B, 1), jnp.float32),
        grid=(1,),
        in_specs=specs,
        out_specs=_plain_spec((B, 1)),
        compiler_params=pltpu.CompilerParams(dimension_semantics=("arbitrary",)),
    )(x, wc, bc, wo, bo)


# ----------------------- host-side parameter packing --------------------------

def _pad_axis(a, axis, new):
    if new == a.shape[axis]:
        return a
    pad = [(0, 0)] * a.ndim
    pad[axis] = (0, new - a.shape[axis])
    return jnp.pad(a, pad)


def _slab_conv(w, cin_p, cout_p):
    """OIHW (Cout, Cin, kh, kw) -> (kh*kw*Cin_p, Cout_p) bf16 slab (tap-major,
    channel-minor), zero-padded to lane-aligned channel counts."""
    kh, kw = int(w.shape[2]), int(w.shape[3])
    t = jnp.transpose(w, (2, 3, 1, 0))                 # (kh, kw, Cin, Cout)
    t = _pad_axis(_pad_axis(t, 2, cin_p), 3, cout_p)
    return t.reshape(kh * kw * cin_p, cout_p).astype(jnp.bfloat16)


def _row(b, cout_p):
    r = jnp.zeros((1, cout_p), jnp.float32)
    return r.at[0, : b.shape[0]].set(b.astype(jnp.float32))


def pack_params(params, lane=LANE):
    """One-time host-side packing of the PyTorch-layout weights into lane-padded bf16
    MXU slabs (hoisted out of the forward; padded channels stay exactly zero)."""
    cp = lambda c: _ceil_to(int(c), lane)
    c0 = int(params["stem_b"].shape[0])
    packed = {
        "lane": lane,
        "stem": dict(w=_slab_conv(params["stem_w"], cp(9), cp(c0)),
                     b=_row(params["stem_b"], cp(c0)), cout=c0),
    }
    blocks = []
    dim_in = c0
    for blk in params["blocks"]:
        dim_out = int(blk["conv2_b"].shape[0])
        blocks.append(dict(
            w1=_slab_conv(blk["conv1_w"], cp(dim_in), cp(dim_in)),
            b1=_row(blk["conv1_b"], cp(dim_in)),
            w2=_slab_conv(blk["conv2_w"], cp(dim_in), cp(dim_out)),
            b2=_row(blk["conv2_b"], cp(dim_out)),
            wsc=(None if blk["sc_w"] is None
                 else _slab_conv(blk["sc_w"], cp(dim_in), cp(dim_out))),
            cout=dim_out))
        dim_in = dim_out
    packed["blocks"] = blocks
    cl = int(params["head_conv_b"].shape[0])
    packed["head"] = dict(
        wc=_slab_conv(params["head_conv_w"], cp(cl), cp(cl)),
        bc=_row(params["head_conv_b"], cp(cl)),
        wo=_slab_conv(params["head_out_w"], cp(cl), 1),
        bo=_row(params["head_out_b"], 1))
    return packed


def _to_nchw(h, Hs, Ws):
    B, _, C = h.shape
    return jnp.transpose(h.astype(jnp.float32).reshape(B, Hs, Ws, C), (0, 3, 1, 2))


def discriminator_forward_pallas(x, y, z, packed):
    B, _, Hf, Wf = x.shape
    assert Hf == Wf and (Wf & (Wf - 1)) == 0, "power-of-two image sizes expected"
    cfg = _caps()

    # avg_pool2d(x/y/z, 2) + channel concat is fused into the stem kernel; the concat,
    # NCHW -> (B, HW, Cpad) relayout and lane padding here are pure glue.
    c9p = packed["stem"]["w"].shape[0] // 9
    xin = jnp.concatenate([x, y, z], axis=1)                       # (B, 9, Hf, Wf)
    h = jnp.transpose(xin, (0, 2, 3, 1)).reshape(B, Hf * Wf, 9)
    h = _pad_axis(h, 2, c9p).astype(jnp.bfloat16)

    st = packed["stem"]
    h = stem_call(h, st["w"], st["b"], Wf=Wf, cfg=cfg)
    curW = Hf // 2

    fea = []
    for blk in packed["blocks"]:
        h = resblk_call(h, blk["w1"], blk["b1"], blk["w2"], blk["b2"], blk["wsc"],
                        W=curW, cfg=cfg)
        curW //= 2
        fea.append(_to_nchw(h[:, :, : blk["cout"]], curW, curW))

    assert curW == 2, "output head expects a 2x2 feature map"
    hd = packed["head"]
    clp = hd["wc"].shape[1]
    xh = h.reshape(B, 4 * clp)            # 2x2 spatial flattened, channel-minor
    out = head_call(xh, hd["wc"], hd["bc"], hd["wo"], hd["bo"])
    return fea, out


# ------------------------------ parameters ------------------------------------

def init_params(key, base_ch, img_size, max_conv_dim):
    def nrm(k, shape, scale=0.1):
        return scale * jax.random.normal(k, shape, jnp.float32)

    keys = iter(jax.random.split(key, 64))
    params = {}
    dim_in = base_ch                     # real module: 2**14 // img_size
    params["stem_w"] = nrm(next(keys), (dim_in, 9, 3, 3))
    params["stem_b"] = nrm(next(keys), (dim_in,), 0.05)
    repeat_num = int(np.log2(img_size)) - 2
    blocks = []
    dim_out = dim_in
    for _ in range(repeat_num):
        dim_out = min(dim_in * 2, max_conv_dim)
        blocks.append({
            "conv1_w": nrm(next(keys), (dim_in, dim_in, 3, 3)),
            "conv1_b": nrm(next(keys), (dim_in,), 0.05),
            "conv2_w": nrm(next(keys), (dim_out, dim_in, 3, 3)),
            "conv2_b": nrm(next(keys), (dim_out,), 0.05),
            "sc_w": (nrm(next(keys), (dim_out, dim_in, 1, 1))
                     if dim_in != dim_out else None),
        })
        dim_in = dim_out
    params["blocks"] = blocks
    params["head_conv_w"] = nrm(next(keys), (dim_out, dim_out, 2, 2))
    params["head_conv_b"] = nrm(next(keys), (dim_out,), 0.05)
    params["head_out_w"] = nrm(next(keys), (1, dim_out, 1, 1))
    params["head_out_b"] = nrm(next(keys), (1,), 0.05)
    return params


# ----------------------------- pure-JAX reference ------------------------------

def ref_forward(x, y, z, params):
    prec = lax.Precision.HIGHEST

    def conv(t, w, b, pad):
        o = lax.conv_general_dilated(t, w, (1, 1), [(pad, pad), (pad, pad)],
                                     dimension_numbers=("NCHW", "OIHW", "NCHW"),
                                     precision=prec)
        return o if b is None else o + b[None, :, None, None]

    def pool(t):
        B, C, H, W = t.shape
        return t.reshape(B, C, H // 2, 2, W // 2, 2).mean(axis=(3, 5))

    h = jnp.concatenate([pool(x), pool(y), pool(z)], axis=1)
    h = conv(h, params["stem_w"], params["stem_b"], 1)
    fea = []
    for blk in params["blocks"]:
        sc = h if blk["sc_w"] is None else conv(h, blk["sc_w"], None, 0)
        sc = pool(sc)
        r = _leaky(h)
        r = conv(r, blk["conv1_w"], blk["conv1_b"], 1)
        r = pool(r)
        r = _leaky(r)
        r = conv(r, blk["conv2_w"], blk["conv2_b"], 1)
        h = (sc + r) / math.sqrt(2.0)
        fea.append(h)
    o = _leaky(h)
    o = conv(o, params["head_conv_w"], params["head_conv_b"], 0)
    o = _leaky(o)
    o = conv(o, params["head_out_w"], params["head_out_b"], 0)
    return fea, o.reshape(o.shape[0], -1)


# ------------------------------------ main -------------------------------------

if __name__ == "__main__":
    key = jax.random.PRNGKey(0)
    kp, kx, ky, kz = jax.random.split(key, 4)

    # Small synthetic config.  The real module uses dim_in = 2**14 // img_size and
    # max_conv_dim = 512; the base channel count is overridden here to keep the
    # example tiny while preserving the forward structure: avg_pool of the three
    # 3-channel inputs -> concat (9 ch) -> stem conv -> repeat_num = log2(img) - 2
    # downsampling ResBlks -> 2x2 map -> 2x2 valid conv -> 1x1 conv -> (B, 1).
    img_size = 16
    batch = 2
    base_ch = 8
    max_conv_dim = 16   # second ResBlk has dim_in == dim_out -> identity-shortcut path

    params = init_params(kp, base_ch, img_size, max_conv_dim)
    packed = pack_params(params)     # one-time weight packing (hoisted out of forward)

    x = jax.random.normal(kx, (batch, 3, img_size, img_size), jnp.float32)
    y = jax.random.normal(ky, (batch, 3, img_size, img_size), jnp.float32)
    z = jax.random.normal(kz, (batch, 3, img_size, img_size), jnp.float32)

    fea, out = discriminator_forward_pallas(x, y, z, packed)
    out = jax.block_until_ready(out)
    fea = [jax.block_until_ready(f) for f in fea]

    fea_ref, out_ref = ref_forward(x, y, z, params)

    assert out.shape == (batch, 1)
    assert len(fea) == len(fea_ref)
    for f, fr in zip(fea, fea_ref):
        assert f.shape == fr.shape
        np.testing.assert_allclose(np.asarray(f), np.asarray(fr), rtol=5e-2, atol=5e-2)
    np.testing.assert_allclose(np.asarray(out), np.asarray(out_ref), rtol=5e-2, atol=5e-2)
    assert np.all(np.isfinite(np.asarray(out)))

    print("KERNEL_OK")
</pallas_src>

<mosaic_0001>
module attributes {stable_mosaic.version = 11 : i64} {
  func.func @k(%arg0: memref<64x128xf32, #tpu.memory_space<vmem>>, %arg1: memref<16x128xf32, #tpu.memory_space<vmem>>, %arg2: memref<64x128xbf16, #tpu.memory_space<vmem>>, %arg3: memref<16x128xbf16, #tpu.memory_space<vmem>>) attributes {dimension_semantics = [], scalar_prefetch = 0 : i64, scratch_operands = 2 : i64, tpu.core_type = #tpu.core_type<tc>} {
    %c0 = arith.constant 0 : index
    %c0_0 = arith.constant 0 : index
    %0 = vector.load %arg0[%c0, %c0_0] : memref<64x128xf32, #tpu.memory_space<vmem>>, vector<64x128xf32>
    %1 = arith.truncf %0 : vector<64x128xf32> to vector<64x128xbf16>
    %c0_1 = arith.constant 0 : index
    %c0_2 = arith.constant 0 : index
    %2 = vector.load %arg2[%c0_1, %c0_2] : memref<64x128xbf16, #tpu.memory_space<vmem>>, vector<64x128xbf16>
    tpu.vector_store %arg2[%c0_1, %c0_2], %1 {strides = array<i32>} : memref<64x128xbf16, #tpu.memory_space<vmem>>, vector<64x128xbf16>,
    %c0_3 = arith.constant 0 : index
    %c0_4 = arith.constant 0 : index
    %3 = tpu.strided_load %arg2[%c0_3, %c0_4] {strides = array<i32: 2, 1>} : memref<64x128xbf16, #tpu.memory_space<vmem>>, vector<2x128xbf16>
    %c0_5 = arith.constant 0 : index
    %c0_6 = arith.constant 0 : index
    %4 = vector.load %arg3[%c0_5, %c0_6] : memref<16x128xbf16, #tpu.memory_space<vmem>>, vector<2x128xbf16>
    tpu.vector_store %arg3[%c0_5, %c0_6], %3 {strides = array<i32>} : memref<16x128xbf16, #tpu.memory_space<vmem>>, vector<2x128xbf16>,
    %c8 = arith.constant 8 : index
    %c0_7 = arith.constant 0 : index
    %5 = tpu.strided_load %arg2[%c8, %c0_7] {strides = array<i32: 2, 1>} : memref<64x128xbf16, #tpu.memory_space<vmem>>, vector<2x128xbf16>
    %c2 = arith.constant 2 : index
    %c0_8 = arith.constant 0 : index
    %6 = vector.load %arg3[%c2, %c0_8] : memref<16x128xbf16, #tpu.memory_space<vmem>>, vector<2x128xbf16>
    tpu.vector_store %arg3[%c2, %c0_8], %5 {strides = array<i32>} : memref<16x128xbf16, #tpu.memory_space<vmem>>, vector<2x128xbf16>,
    %c16 = arith.constant 16 : index
    %c0_9 = arith.constant 0 : index
    %7 = tpu.strided_load %arg2[%c16, %c0_9] {strides = array<i32: 2, 1>} : memref<64x128xbf16, #tpu.memory_space<vmem>>, vector<2x128xbf16>
    %c4 = arith.constant 4 : index
    %c0_10 = arith.constant 0 : index
    %8 = vector.load %arg3[%c4, %c0_10] : memref<16x128xbf16, #tpu.memory_space<vmem>>, vector<2x128xbf16>
    tpu.vector_store %arg3[%c4, %c0_10], %7 {strides = array<i32>} : memref<16x128xbf16, #tpu.memory_space<vmem>>, vector<2x128xbf16>,
    %c24 = arith.constant 24 : index
    %c0_11 = arith.constant 0 : index
    %9 = tpu.strided_load %arg2[%c24, %c0_11] {strides = array<i32: 2, 1>} : memref<64x128xbf16, #tpu.memory_space<vmem>>, vector<2x128xbf16>
    %c6 = arith.constant 6 : index
    %c0_12 = arith.constant 0 : index
    %10 = vector.load %arg3[%c6, %c0_12] : memref<16x128xbf16, #tpu.memory_space<vmem>>, vector<2x128xbf16>
    tpu.vector_store %arg3[%c6, %c0_12], %9 {strides = array<i32>} : memref<16x128xbf16, #tpu.memory_space<vmem>>, vector<2x128xbf16>,
    %c32 = arith.constant 32 : index
    %c0_13 = arith.constant 0 : index
    %11 = tpu.strided_load %arg2[%c32, %c0_13] {strides = array<i32: 2, 1>} : memref<64x128xbf16, #tpu.memory_space<vmem>>, vector<2x128xbf16>
    %c8_14 = arith.constant 8 : index
    %c0_15 = arith.constant 0 : index
    %12 = vector.load %arg3[%c8_14, %c0_15] : memref<16x128xbf16, #tpu.memory_space<vmem>>, vector<2x128xbf16>
    tpu.vector_store %arg3[%c8_14, %c0_15], %11 {strides = array<i32>} : memref<16x128xbf16, #tpu.memory_space<vmem>>, vector<2x128xbf16>,
    %c40 = arith.constant 40 : index
    %c0_16 = arith.constant 0 : index
    %13 = tpu.strided_load %arg2[%c40, %c0_16] {strides = array<i32: 2, 1>} : memref<64x128xbf16, #tpu.memory_space<vmem>>, vector<2x128xbf16>
    %c10 = arith.constant 10 : index
    %c0_17 = arith.constant 0 : index
    %14 = vector.load %arg3[%c10, %c0_17] : memref<16x128xbf16, #tpu.memory_space<vmem>>, vector<2x128xbf16>
    tpu.vector_store %arg3[%c10, %c0_17], %13 {strides = array<i32>} : memref<16x128xbf16, #tpu.memory_space<vmem>>, vector<2x128xbf16>,
    %c48 = arith.constant 48 : index
    %c0_18 = arith.constant 0 : index
    %15 = tpu.strided_load %arg2[%c48, %c0_18] {strides = array<i32: 2, 1>} : memref<64x128xbf16, #tpu.memory_space<vmem>>, vector<2x128xbf16>
    %c12 = arith.constant 12 : index
    %c0_19 = arith.constant 0 : index
    %16 = vector.load %arg3[%c12, %c0_19] : memref<16x128xbf16, #tpu.memory_space<vmem>>, vector<2x128xbf16>
    tpu.vector_store %arg3[%c12, %c0_19], %15 {strides = array<i32>} : memref<16x128xbf16, #tpu.memory_space<vmem>>, vector<2x128xbf16>,
    %c56 = arith.constant 56 : index
    %c0_20 = arith.constant 0 : index
    %17 = tpu.strided_load %arg2[%c56, %c0_20] {strides = array<i32: 2, 1>} : memref<64x128xbf16, #tpu.memory_space<vmem>>, vector<2x128xbf16>
    %c14 = arith.constant 14 : index
    %c0_21 = arith.constant 0 : index
    %18 = vector.load %arg3[%c14, %c0_21] : memref<16x128xbf16, #tpu.memory_space<vmem>>, vector<2x128xbf16>
    tpu.vector_store %arg3[%c14, %c0_21], %17 {strides = array<i32>} : memref<16x128xbf16, #tpu.memory_space<vmem>>, vector<2x128xbf16>,
    %c0_22 = arith.constant 0 : index
    %c0_23 = arith.constant 0 : index
    %19 = vector.load %arg3[%c0_22, %c0_23] : memref<16x128xbf16, #tpu.memory_space<vmem>>, vector<16x128xbf16>
    %20 = arith.extf %19 : vector<16x128xbf16> to vector<16x128xf32>
    %c0_24 = arith.constant 0 : index
    %c0_25 = arith.constant 0 : index
    %21 = vector.load %arg1[%c0_24, %c0_25] : memref<16x128xf32, #tpu.memory_space<vmem>>, vector<16x128xf32>
    tpu.vector_store %arg1[%c0_24, %c0_25], %20 {strides = array<i32>} : memref<16x128xf32, #tpu.memory_space<vmem>>, vector<16x128xf32>,
    return
  }
}

module attributes {stable_mosaic.version = 11 : i64} {
  func.func @k(%arg0: memref<64x128xf32, #tpu.memory_space<vmem>>, %arg1: memref<16x128xf32, #tpu.memory_space<vmem>>, %arg2: memref<64x128xf32, #tpu.memory_space<vmem>>, %arg3: memref<16x128xf32, #tpu.memory_space<vmem>>) attributes {dimension_semantics = [], scalar_prefetch = 0 : i64, scratch_operands = 2 : i64, tpu.core_type = #tpu.core_type<tc>} {
    %c0 = arith.constant 0 : index
    %c0_0 = arith.constant 0 : index
    %0 = vector.load %arg0[%c0, %c0_0] : memref<64x128xf32, #tpu.memory_space<vmem>>, vector<64x128xf32>
    %c0_1 = arith.constant 0 : index
    %c0_2 = arith.constant 0 : index
    %1 = vector.load %arg2[%c0_1, %c0_2] : memref<64x128xf32, #tpu.memory_space<vmem>>, vector<64x128xf32>
    tpu.vector_store %arg2[%c0_1, %c0_2], %0 {strides = array<i32>} : memref<64x128xf32, #tpu.memory_space<vmem>>, vector<64x128xf32>,
    %c0_3 = arith.constant 0 : index
    %c0_4 = arith.constant 0 : index
    %2 = tpu.strided_load %arg2[%c0_3, %c0_4] {strides = array<i32: 2, 1>} : memref<64x128xf32, #tpu.memory_space<vmem>>, vector<2x128xf32>
    %c0_5 = arith.constant 0 : index
    %c0_6 = arith.constant 0 : index
    %3 = vector.load %arg3[%c0_5, %c0_6] : memref<16x128xf32, #tpu.memory_space<vmem>>, vector<2x128xf32>
    tpu.vector_store %arg3[%c0_5, %c0_6], %2 {strides = array<i32>} : memref<16x128xf32, #tpu.memory_space<vmem>>, vector<2x128xf32>,
    %c8 = arith.constant 8 : index
    %c0_7 = arith.constant 0 : index
    %4 = tpu.strided_load %arg2[%c8, %c0_7] {strides = array<i32: 2, 1>} : memref<64x128xf32, #tpu.memory_space<vmem>>, vector<2x128xf32>
    %c2 = arith.constant 2 : index
    %c0_8 = arith.constant 0 : index
    %5 = vector.load %arg3[%c2, %c0_8] : memref<16x128xf32, #tpu.memory_space<vmem>>, vector<2x128xf32>
    tpu.vector_store %arg3[%c2, %c0_8], %4 {strides = array<i32>} : memref<16x128xf32, #tpu.memory_space<vmem>>, vector<2x128xf32>,
    %c16 = arith.constant 16 : index
    %c0_9 = arith.constant 0 : index
    %6 = tpu.strided_load %arg2[%c16, %c0_9] {strides = array<i32: 2, 1>} : memref<64x128xf32, #tpu.memory_space<vmem>>, vector<2x128xf32>
    %c4 = arith.constant 4 : index
    %c0_10 = arith.constant 0 : index
    %7 = vector.load %arg3[%c4, %c0_10] : memref<16x128xf32, #tpu.memory_space<vmem>>, vector<2x128xf32>
    tpu.vector_store %arg3[%c4, %c0_10], %6 {strides = array<i32>} : memref<16x128xf32, #tpu.memory_space<vmem>>, vector<2x128xf32>,
    %c24 = arith.constant 24 : index
    %c0_11 = arith.constant 0 : index
    %8 = tpu.strided_load %arg2[%c24, %c0_11] {strides = array<i32: 2, 1>} : memref<64x128xf32, #tpu.memory_space<vmem>>, vector<2x128xf32>
    %c6 = arith.constant 6 : index
    %c0_12 = arith.constant 0 : index
    %9 = vector.load %arg3[%c6, %c0_12] : memref<16x128xf32, #tpu.memory_space<vmem>>, vector<2x128xf32>
    tpu.vector_store %arg3[%c6, %c0_12], %8 {strides = array<i32>} : memref<16x128xf32, #tpu.memory_space<vmem>>, vector<2x128xf32>,
    %c32 = arith.constant 32 : index
    %c0_13 = arith.constant 0 : index
    %10 = tpu.strided_load %arg2[%c32, %c0_13] {strides = array<i32: 2, 1>} : memref<64x128xf32, #tpu.memory_space<vmem>>, vector<2x128xf32>
    %c8_14 = arith.constant 8 : index
    %c0_15 = arith.constant 0 : index
    %11 = vector.load %arg3[%c8_14, %c0_15] : memref<16x128xf32, #tpu.memory_space<vmem>>, vector<2x128xf32>
    tpu.vector_store %arg3[%c8_14, %c0_15], %10 {strides = array<i32>} : memref<16x128xf32, #tpu.memory_space<vmem>>, vector<2x128xf32>,
    %c40 = arith.constant 40 : index
    %c0_16 = arith.constant 0 : index
    %12 = tpu.strided_load %arg2[%c40, %c0_16] {strides = array<i32: 2, 1>} : memref<64x128xf32, #tpu.memory_space<vmem>>, vector<2x128xf32>
    %c10 = arith.constant 10 : index
    %c0_17 = arith.constant 0 : index
    %13 = vector.load %arg3[%c10, %c0_17] : memref<16x128xf32, #tpu.memory_space<vmem>>, vector<2x128xf32>
    tpu.vector_store %arg3[%c10, %c0_17], %12 {strides = array<i32>} : memref<16x128xf32, #tpu.memory_space<vmem>>, vector<2x128xf32>,
    %c48 = arith.constant 48 : index
    %c0_18 = arith.constant 0 : index
    %14 = tpu.strided_load %arg2[%c48, %c0_18] {strides = array<i32: 2, 1>} : memref<64x128xf32, #tpu.memory_space<vmem>>, vector<2x128xf32>
    %c12 = arith.constant 12 : index
    %c0_19 = arith.constant 0 : index
    %15 = vector.load %arg3[%c12, %c0_19] : memref<16x128xf32, #tpu.memory_space<vmem>>, vector<2x128xf32>
    tpu.vector_store %arg3[%c12, %c0_19], %14 {strides = array<i32>} : memref<16x128xf32, #tpu.memory_space<vmem>>, vector<2x128xf32>,
    %c56 = arith.constant 56 : index
    %c0_20 = arith.constant 0 : index
    %16 = tpu.strided_load %arg2[%c56, %c0_20] {strides = array<i32: 2, 1>} : memref<64x128xf32, #tpu.memory_space<vmem>>, vector<2x128xf32>
    %c14 = arith.constant 14 : index
    %c0_21 = arith.constant 0 : index
    %17 = vector.load %arg3[%c14, %c0_21] : memref<16x128xf32, #tpu.memory_space<vmem>>, vector<2x128xf32>
    tpu.vector_store %arg3[%c14, %c0_21], %16 {strides = array<i32>} : memref<16x128xf32, #tpu.memory_space<vmem>>, vector<2x128xf32>,
    %c0_22 = arith.constant 0 : index
    %c0_23 = arith.constant 0 : index
    %18 = vector.load %arg3[%c0_22, %c0_23] : memref<16x128xf32, #tpu.memory_space<vmem>>, vector<16x128xf32>
    %c0_24 = arith.constant 0 : index
    %c0_25 = arith.constant 0 : index
    %19 = vector.load %arg1[%c0_24, %c0_25] : memref<16x128xf32, #tpu.memory_space<vmem>>, vector<16x128xf32>
    tpu.vector_store %arg1[%c0_24, %c0_25], %18 {strides = array<i32>} : memref<16x128xf32, #tpu.memory_space<vmem>>, vector<16x128xf32>,
    return
  }
}

module attributes {stable_mosaic.version = 11 : i64} {
  func.func @k(%arg0: memref<64x128xf32, #tpu.memory_space<vmem>>, %arg1: memref<16x128xf32, #tpu.memory_space<vmem>>, %arg2: memref<64x128xf32, #tpu.memory_space<vmem>>, %arg3: memref<16x128xf32, #tpu.memory_space<vmem>>) attributes {dimension_semantics = [], scalar_prefetch = 0 : i64, scratch_operands = 2 : i64, tpu.core_type = #tpu.core_type<tc>} {
    %c0 = arith.constant 0 : index
    %c0_0 = arith.constant 0 : index
    %0 = vector.load %arg0[%c0, %c0_0] : memref<64x128xf32, #tpu.memory_space<vmem>>, vector<64x128xf32>
    %c0_1 = arith.constant 0 : index
    %c0_2 = arith.constant 0 : index
    %1 = vector.load %arg2[%c0_1, %c0_2] : memref<64x128xf32, #tpu.memory_space<vmem>>, vector<64x128xf32>
    tpu.vector_store %arg2[%c0_1, %c0_2], %0 {strides = array<i32>} : memref<64x128xf32, #tpu.memory_space<vmem>>, vector<64x128xf32>,
    %c0_3 = arith.constant 0 : index
    %c0_4 = arith.constant 0 : index
    %2 = vector.load %arg2[%c0_3, %c0_4] : memref<64x128xf32, #tpu.memory_space<vmem>>, vector<1x128xf32>
    %c0_5 = arith.constant 0 : index
    %c0_6 = arith.constant 0 : index
    %3 = vector.load %arg3[%c0_5, %c0_6] : memref<16x128xf32, #tpu.memory_space<vmem>>, vector<1x128xf32>
    tpu.vector_store %arg3[%c0_5, %c0_6], %2 {strides = array<i32>} : memref<16x128xf32, #tpu.memory_space<vmem>>, vector<1x128xf32>,
    %c2 = arith.constant 2 : index
    %c0_7 = arith.constant 0 : index
    %4 = vector.load %arg2[%c2, %c0_7] : memref<64x128xf32, #tpu.memory_space<vmem>>, vector<1x128xf32>
    %c1 = arith.constant 1 : index
    %c0_8 = arith.constant 0 : index
    %5 = vector.load %arg3[%c1, %c0_8] : memref<16x128xf32, #tpu.memory_space<vmem>>, vector<1x128xf32>
    tpu.vector_store %arg3[%c1, %c0_8], %4 {strides = array<i32>} : memref<16x128xf32, #tpu.memory_space<vmem>>, vector<1x128xf32>,
    %c8 = arith.constant 8 : index
    %c0_9 = arith.constant 0 : index
    %6 = vector.load %arg2[%c8, %c0_9] : memref<64x128xf32, #tpu.memory_space<vmem>>, vector<1x128xf32>
    %c2_10 = arith.constant 2 : index
    %c0_11 = arith.constant 0 : index
    %7 = vector.load %arg3[%c2_10, %c0_11] : memref<16x128xf32, #tpu.memory_space<vmem>>, vector<1x128xf32>
    tpu.vector_store %arg3[%c2_10, %c0_11], %6 {strides = array<i32>} : memref<16x128xf32, #tpu.memory_space<vmem>>, vector<1x128xf32>,
    %c10 = arith.constant 10 : index
    %c0_12 = arith.constant 0 : index
    %8 = vector.load %arg2[%c10, %c0_12] : memref<64x128xf32, #tpu.memory_space<vmem>>, vector<1x128xf32>
    %c3 = arith.constant 3 : index
    %c0_13 = arith.constant 0 : index
    %9 = vector.load %arg3[%c3, %c0_13] : memref<16x128xf32, #tpu.memory_space<vmem>>, vector<1x128xf32>
    tpu.vector_store %arg3[%c3, %c0_13], %8 {strides = array<i32>} : memref<16x128xf32, #tpu.memory_space<vmem>>, vector<1x128xf32>,
    %c16 = arith.constant 16 : index
    %c0_14 = arith.constant 0 : index
    %10 = vector.load %arg2[%c16, %c0_14] : memref<64x128xf32, #tpu.memory_space<vmem>>, vector<1x128xf32>
    %c4 = arith.constant 4 : index
    %c0_15 = arith.constant 0 : index
    %11 = vector.load %arg3[%c4, %c0_15] : memref<16x128xf32, #tpu.memory_space<vmem>>, vector<1x128xf32>
    tpu.vector_store %arg3[%c4, %c0_15], %10 {strides = array<i32>} : memref<16x128xf32, #tpu.memory_space<vmem>>, vector<1x128xf32>,
    %c18 = arith.constant 18 : index
    %c0_16 = arith.constant 0 : index
    %12 = vector.load %arg2[%c18, %c0_16] : memref<64x128xf32, #tpu.memory_space<vmem>>, vector<1x128xf32>
    %c5 = arith.constant 5 : index
    %c0_17 = arith.constant 0 : index
    %13 = vector.load %arg3[%c5, %c0_17] : memref<16x128xf32, #tpu.memory_space<vmem>>, vector<1x128xf32>
    tpu.vector_store %arg3[%c5, %c0_17], %12 {strides = array<i32>} : memref<16x128xf32, #tpu.memory_space<vmem>>, vector<1x128xf32>,
    %c24 = arith.constant 24 : index
    %c0_18 = arith.constant 0 : index
    %14 = vector.load %arg2[%c24, %c0_18] : memref<64x128xf32, #tpu.memory_space<vmem>>, vector<1x128xf32>
    %c6 = arith.constant 6 : index
    %c0_19 = arith.constant 0 : index
    %15 = vector.load %arg3[%c6, %c0_19] : memref<16x128xf32, #tpu.memory_space<vmem>>, vector<1x128xf32>
    tpu.vector_store %arg3[%c6, %c0_19], %14 {strides = array<i32>} : memref<16x128xf32, #tpu.memory_space<vmem>>, vector<1x128xf32>,
    %c26 = arith.constant 26 : index
    %c0_20 = arith.constant 0 : index
    %16 = vector.load %arg2[%c26, %c0_20] : memref<64x128xf32, #tpu.memory_space<vmem>>, vector<1x128xf32>
    %c7 = arith.constant 7 : index
    %c0_21 = arith.constant 0 : index
    %17 = vector.load %arg3[%c7, %c0_21] : memref<16x128xf32, #tpu.memory_space<vmem>>, vector<1x128xf32>
    tpu.vector_store %arg3[%c7, %c0_21], %16 {strides = array<i32>} : memref<16x128xf32, #tpu.memory_space<vmem>>, vector<1x128xf32>,
    %c32 = arith.constant 32 : index
    %c0_22 = arith.constant 0 : index
    %18 = vector.load %arg2[%c32, %c0_22] : memref<64x128xf32, #tpu.memory_space<vmem>>, vector<1x128xf32>
    %c8_23 = arith.constant 8 : index
    %c0_24 = arith.constant 0 : index
    %19 = vector.load %arg3[%c8_23, %c0_24] : memref<16x128xf32, #tpu.memory_space<vmem>>, vector<1x128xf32>
    tpu.vector_store %arg3[%c8_23, %c0_24], %18 {strides = array<i32>} : memref<16x128xf32, #tpu.memory_space<vmem>>, vector<1x128xf32>,
    %c34 = arith.constant 34 : index
    %c0_25 = arith.constant 0 : index
    %20 = vector.load %arg2[%c34, %c0_25] : memref<64x128xf32, #tpu.memory_space<vmem>>, vector<1x128xf32>
    %c9 = arith.constant 9 : index
    %c0_26 = arith.constant 0 : index
    %21 = vector.load %arg3[%c9, %c0_26] : memref<16x128xf32, #tpu.memory_space<vmem>>, vector<1x128xf32>
    tpu.vector_store %arg3[%c9, %c0_26], %20 {strides = array<i32>} : memref<16x128xf32, #tpu.memory_space<vmem>>, vector<1x128xf32>,
    %c40 = arith.constant 40 : index
    %c0_27 = arith.constant 0 : index
    %22 = vector.load %arg2[%c40, %c0_27] : memref<64x128xf32, #tpu.memory_space<vmem>>, vector<1x128xf32>
    %c10_28 = arith.constant 10 : index
    %c0_29 = arith.constant 0 : index
    %23 = vector.load %arg3[%c10_28, %c0_29] : memref<16x128xf32, #tpu.memory_space<vmem>>, vector<1x128xf32>
    tpu.vector_store %arg3[%c10_28, %c0_29], %22 {strides = array<i32>} : memref<16x128xf32, #tpu.memory_space<vmem>>, vector<1x128xf32>,
    %c42 = arith.constant 42 : index
    %c0_30 = arith.constant 0 : index
    %24 = vector.load %arg2[%c42, %c0_30] : memref<64x128xf32, #tpu.memory_space<vmem>>, vector<1x128xf32>
    %c11 = arith.constant 11 : index
    %c0_31 = arith.constant 0 : index
    %25 = vector.load %arg3[%c11, %c0_31] : memref<16x128xf32, #tpu.memory_space<vmem>>, vector<1x128xf32>
    tpu.vector_store %arg3[%c11, %c0_31], %24 {strides = array<i32>} : memref<16x128xf32, #tpu.memory_space<vmem>>, vector<1x128xf32>,
    %c48 = arith.constant 48 : index
    %c0_32 = arith.constant 0 : index
    %26 = vector.load %arg2[%c48, %c0_32] : memref<64x128xf32, #tpu.memory_space<vmem>>, vector<1x128xf32>
    %c12 = arith.constant 12 : index
    %c0_33 = arith.constant 0 : index
    %27 = vector.load %arg3[%c12, %c0_33] : memref<16x128xf32, #tpu.memory_space<vmem>>, vector<1x128xf32>
    tpu.vector_store %arg3[%c12, %c0_33], %26 {strides = array<i32>} : memref<16x128xf32, #tpu.memory_space<vmem>>, vector<1x128xf32>,
    %c50 = arith.constant 50 : index
    %c0_34 = arith.constant 0 : index
    %28 = vector.load %arg2[%c50, %c0_34] : memref<64x128xf32, #tpu.memory_space<vmem>>, vector<1x128xf32>
    %c13 = arith.constant 13 : index
    %c0_35 = arith.constant 0 : index
    %29 = vector.load %arg3[%c13, %c0_35] : memref<16x128xf32, #tpu.memory_space<vmem>>, vector<1x128xf32>
    tpu.vector_store %arg3[%c13, %c0_35], %28 {strides = array<i32>} : memref<16x128xf32, #tpu.memory_space<vmem>>, vector<1x128xf32>,
    %c56 = arith.constant 56 : index
    %c0_36 = arith.constant 0 : index
    %30 = vector.load %arg2[%c56, %c0_36] : memref<64x128xf32, #tpu.memory_space<vmem>>, vector<1x128xf32>
    %c14 = arith.constant 14 : index
    %c0_37 = arith.constant 0 : index
    %31 = vector.load %arg3[%c14, %c0_37] : memref<16x128xf32, #tpu.memory_space<vmem>>, vector<1x128xf32>
    tpu.vector_store %arg3[%c14, %c0_37], %30 {strides = array<i32>} : memref<16x128xf32, #tpu.memory_space<vmem>>, vector<1x128xf32>,
    %c58 = arith.constant 58 : index
    %c0_38 = arith.constant 0 : index
    %32 = vector.load %arg2[%c58, %c0_38] : memref<64x128xf32, #tpu.memory_space<vmem>>, vector<1x128xf32>
    %c15 = arith.constant 15 : index
    %c0_39 = arith.constant 0 : index
    %33 = vector.load %arg3[%c15, %c0_39] : memref<16x128xf32, #tpu.memory_space<vmem>>, vector<1x128xf32>
    tpu.vector_store %arg3[%c15, %c0_39], %32 {strides = array<i32>} : memref<16x128xf32, #tpu.memory_space<vmem>>, vector<1x128xf32>,
    %c0_40 = arith.constant 0 : index
    %c0_41 = arith.constant 0 : index
    %34 = vector.load %arg3[%c0_40, %c0_41] : memref<16x128xf32, #tpu.memory_space<vmem>>, vector<16x128xf32>
    %c0_42 = arith.constant 0 : index
    %c0_43 = arith.constant 0 : index
    %35 = vector.load %arg1[%c0_42, %c0_43] : memref<16x128xf32, #tpu.memory_space<vmem>>, vector<16x128xf32>
    tpu.vector_store %arg1[%c0_42, %c0_43], %34 {strides = array<i32>} : memref<16x128xf32, #tpu.memory_space<vmem>>, vector<16x128xf32>,
    return
  }
}

module attributes {stable_mosaic.version = 11 : i64} {
  func.func @k(%arg0: memref<16x128xbf16, #tpu.memory_space<vmem>>, %arg1: memref<16x128xbf16, #tpu.memory_space<vmem>>) attributes {dimension_semantics = [], scalar_prefetch = 0 : i64, scratch_operands = 0 : i64, tpu.core_type = #tpu.core_type<tc>} {
    %c0 = arith.constant 0 : index
    %c0_0 = arith.constant 0 : index
    %0 = vector.load %arg0[%c0, %c0_0] : memref<16x128xbf16, #tpu.memory_space<vmem>>, vector<16x128xbf16>
    %c3_i32 = arith.constant 3 : i32
    %1 = tpu.dynamic_rotate %0 by %c3_i32 dim 0 : vector<16x128xbf16>, i32 -> vector<16x128xbf16>
    %c0_1 = arith.constant 0 : index
    %c0_2 = arith.constant 0 : index
    %2 = vector.load %arg1[%c0_1, %c0_2] : memref<16x128xbf16, #tpu.memory_space<vmem>>, vector<16x128xbf16>
    tpu.vector_store %arg1[%c0_1, %c0_2], %1 {strides = array<i32>} : memref<16x128xbf16, #tpu.memory_space<vmem>>, vector<16x128xbf16>,
    return
  }
}

module attributes {stable_mosaic.version = 11 : i64} {
  func.func @k(%arg0: memref<16x128xbf16, #tpu.memory_space<vmem>>, %arg1: memref<384x128xbf16, #tpu.memory_space<vmem>>, %arg2: memref<16x128xf32, #tpu.memory_space<vmem>>) attributes {dimension_semantics = [], scalar_prefetch = 0 : i64, scratch_operands = 0 : i64, tpu.core_type = #tpu.core_type<tc>} {
    %c0 = arith.constant 0 : index
    %c0_0 = arith.constant 0 : index
    %0 = vector.load %arg0[%c0, %c0_0] : memref<16x128xbf16, #tpu.memory_space<vmem>>, vector<16x128xbf16>
    %1 = arith.addf %0, %0 : vector<16x128xbf16>
    %2 = arith.addf %0, %0 : vector<16x128xbf16>
    %3 = arith.addf %2, %0 : vector<16x128xbf16>
    %4 = tpu.concatenate %0, %1, %3 in 1 : vector<16x128xbf16>, vector<16x128xbf16>, vector<16x128xbf16> -> vector<16x384xbf16>
    %c0_1 = arith.constant 0 : index
    %c0_2 = arith.constant 0 : index
    %5 = vector.load %arg1[%c0_1, %c0_2] : memref<384x128xbf16, #tpu.memory_space<vmem>>, vector<384x128xbf16>
    %cst = arith.constant dense<0.000000e+00> : vector<16x128xf32>
    %6 = tpu.matmul %4, %5, %cst {dimension_numbers = #tpu.dot_dimension_numbers<[1], [0], [0], [1], [0, 0, 1, 1], [], []>} : vector<16x384xbf16>, vector<384x128xbf16>, vector<16x128xf32> -> vector<16x128xf32>
    %c0_3 = arith.constant 0 : index
    %c0_4 = arith.constant 0 : index
    %7 = vector.load %arg2[%c0_3, %c0_4] : memref<16x128xf32, #tpu.memory_space<vmem>>, vector<16x128xf32>
    tpu.vector_store %arg2[%c0_3, %c0_4], %6 {strides = array<i32>} : memref<16x128xf32, #tpu.memory_space<vmem>>, vector<16x128xf32>,
    return
  }
}

module attributes {stable_mosaic.version = 11 : i64} {
  func.func @k(%arg0: i32, %arg1: memref<8x128xf32, #tpu.memory_space<vmem>>, %arg2: memref<1x8x128xf32, #tpu.memory_space<vmem>>) attributes {dimension_semantics = [#tpu.dimension_semantics<arbitrary>], iteration_bounds = array<i64: 2>, scalar_prefetch = 0 : i64, scratch_operands = 0 : i64, tpu.core_type = #tpu.core_type<tc>, window_params = [{pipeline_mode = #tpu.pipeline_mode<synchronous>, transform_indices = @transform_0, window_bounds = array<i64: 8, 128>}, {transform_indices = @transform_1, window_bounds = array<i64: 1, 8, 128>}]} {
    %c0 = arith.constant 0 : index
    %c0_0 = arith.constant 0 : index
    %0 = vector.load %arg1[%c0, %c0_0] : memref<8x128xf32, #tpu.memory_space<vmem>>, vector<8x128xf32>
    %c1_i32 = arith.constant 1 : i32
    %1 = arith.addi %arg0, %c1_i32 : i32
    %2 = arith.sitofp %1 : i32 to f32
    %3 = vector.broadcast %2 : f32 to vector<8x128xf32>
    %4 = arith.mulf %0, %3 : vector<8x128xf32>
    %c0_1 = arith.constant 0 : index
    %c0_2 = arith.constant 0 : index
    %c0_3 = arith.constant 0 : index
    %5 = vector.load %arg2[%c0_1, %c0_2, %c0_3] : memref<1x8x128xf32, #tpu.memory_space<vmem>>, vector<1x8x128xf32>
    %6 = vector.shape_cast %5 : vector<1x8x128xf32> to vector<8x128xf32>
    %7 = vector.shape_cast %4 : vector<8x128xf32> to vector<1x8x128xf32>
    tpu.vector_store %arg2[%c0_1, %c0_2, %c0_3], %7 {strides = array<i32>} : memref<1x8x128xf32, #tpu.memory_space<vmem>>, vector<1x8x128xf32>,
    return
  }
  func.func @transform_0(%arg0: i32) -> (i32, i32) {
    %c0_i32 = arith.constant 0 : i32
    %c0_i32_0 = arith.constant 0 : i32
    %c0_i32_1 = arith.constant 0 : i32
    return %c0_i32, %c0_i32_0 : i32, i32
  }
  func.func @transform_1(%arg0: i32) -> (i32, i32, i32) {
    %c0_i32 = arith.constant 0 : i32
    %c0_i32_0 = arith.constant 0 : i32
    %c0_i32_1 = arith.constant 0 : i32
    return %arg0, %c0_i32, %c0_i32_0 : i32, i32, i32
  }
}

module attributes {stable_mosaic.version = 11 : i64} {
  func.func @stem_kernel(%arg0: i32, %arg1: memref<1x256x128xbf16, #tpu.memory_space<vmem>>, %arg2: memref<1152x128xbf16, #tpu.memory_space<vmem>>, %arg3: memref<1x128xf32, #tpu.memory_space<vmem>>, %arg4: memref<1x64x128xbf16, #tpu.memory_space<vmem>>, %arg5: memref<256x128xf32, #tpu.memory_space<vmem>>, %arg6: memref<64x128xf32, #tpu.memory_space<vmem>>) attributes {dimension_semantics = [#tpu.dimension_semantics<parallel>], iteration_bounds = array<i64: 2>, scalar_prefetch = 0 : i64, scratch_operands = 2 : i64, tpu.core_type = #tpu.core_type<tc>, window_params = [{transform_indices = @transform_0, window_bounds = array<i64: 1, 256, 128>}, {pipeline_mode = #tpu.pipeline_mode<synchronous>, transform_indices = @transform_1, window_bounds = array<i64: 1152, 128>}, {pipeline_mode = #tpu.pipeline_mode<synchronous>, transform_indices = @transform_2, window_bounds = array<i64: 1, 128>}, {transform_indices = @transform_3, window_bounds = array<i64: 1, 64, 128>}]} {
    %c0 = arith.constant 0 : index
    %c0_0 = arith.constant 0 : index
    %c0_1 = arith.constant 0 : index
    %0 = vector.load %arg1[%c0, %c0_0, %c0_1] : memref<1x256x128xbf16, #tpu.memory_space<vmem>>, vector<1x256x128xbf16>
    %1 = vector.shape_cast %0 : vector<1x256x128xbf16> to vector<256x128xbf16>
    %2 = arith.extf %1 : vector<256x128xbf16> to vector<256x128xf32>
    %cst = arith.constant 0.000000e+00 : f32
    %3 = vector.broadcast %cst : f32 to vector<16x128xf32>
    %4 = vector.extract_strided_slice %2 {offsets = [16, 0], sizes = [240, 128], strides = [1, 1]} : vector<256x128xf32> to vector<240x128xf32>
    %5 = tpu.concatenate %4, %3 in 0 : vector<240x128xf32>, vector<16x128xf32> -> vector<256x128xf32>
    %6 = arith.truncf %5 : vector<256x128xf32> to vector<256x128xbf16>
    %7 = arith.addf %1, %6 : vector<256x128xbf16>
    %8 = arith.extf %7 : vector<256x128xbf16> to vector<256x128xf32>
    %cst_2 = arith.constant 0.000000e+00 : f32
    %9 = vector.broadcast %cst_2 : f32 to vector<1x128xf32>
    %10 = vector.extract_strided_slice %8 {offsets = [1, 0], sizes = [255, 128], strides = [1, 1]} : vector<256x128xf32> to vector<255x128xf32>
    %11 = tpu.concatenate %10, %9 in 0 : vector<255x128xf32>, vector<1x128xf32> -> vector<256x128xf32>
    %12 = arith.truncf %11 : vector<256x128xf32> to vector<256x128xbf16>
    %13 = arith.addf %7, %12 : vector<256x128xbf16>
    %cst_3 = arith.constant 2.500000e-01 : bf16
    %14 = vector.broadcast %cst_3 : bf16 to vector<256x128xbf16>
    %15 = arith.mulf %13, %14 : vector<256x128xbf16>
    %16 = arith.extf %15 : vector<256x128xbf16> to vector<256x128xf32>
    %c0_4 = arith.constant 0 : index
    %c0_5 = arith.constant 0 : index
    %17 = vector.load %arg5[%c0_4, %c0_5] : memref<256x128xf32, #tpu.memory_space<vmem>>, vector<256x128xf32>
    tpu.vector_store %arg5[%c0_4, %c0_5], %16 {strides = array<i32>} : memref<256x128xf32, #tpu.memory_space<vmem>>, vector<256x128xf32>,
    %c0_6 = arith.constant 0 : index
    %c0_7 = arith.constant 0 : index
    %18 = vector.load %arg5[%c0_6, %c0_7] : memref<256x128xf32, #tpu.memory_space<vmem>>, vector<1x128xf32>
    %c0_8 = arith.constant 0 : index
    %c0_9 = arith.constant 0 : index
    %19 = vector.load %arg6[%c0_8, %c0_9] : memref<64x128xf32, #tpu.memory_space<vmem>>, vector<1x128xf32>
    tpu.vector_store %arg6[%c0_8, %c0_9], %18 {strides = array<i32>} : memref<64x128xf32, #tpu.memory_space<vmem>>, vector<1x128xf32>,
    %c2 = arith.constant 2 : index
    %c0_10 = arith.constant 0 : index
    %20 = vector.load %arg5[%c2, %c0_10] : memref<256x128xf32, #tpu.memory_space<vmem>>, vector<1x128xf32>
    %c1 = arith.constant 1 : index
    %c0_11 = arith.constant 0 : index
    %21 = vector.load %arg6[%c1, %c0_11] : memref<64x128xf32, #tpu.memory_space<vmem>>, vector<1x128xf32>
    tpu.vector_store %arg6[%c1, %c0_11], %20 {strides = array<i32>} : memref<64x128xf32, #tpu.memory_space<vmem>>, vector<1x128xf32>,
    %c4 = arith.constant 4 : index
    %c0_12 = arith.constant 0 : index
    %22 = vector.load %arg5[%c4, %c0_12] : memref<256x128xf32, #tpu.memory_space<vmem>>, vector<1x128xf32>
    %c2_13 = arith.constant 2 : index
    %c0_14 = arith.constant 0 : index
    %23 = vector.load %arg6[%c2_13, %c0_14] : memref<64x128xf32, #tpu.memory_space<vmem>>, vector<1x128xf32>
    tpu.vector_store %arg6[%c2_13, %c0_14], %22 {strides = array<i32>} : memref<64x128xf32, #tpu.memory_space<vmem>>, vector<1x128xf32>,
    %c6 = arith.constant 6 : index
    %c0_15 = arith.constant 0 : index
    %24 = vector.load %arg5[%c6, %c0_15] : memref<256x128xf32, #tpu.memory_space<vmem>>, vector<1x128xf32>
    %c3 = arith.constant 3 : index
    %c0_16 = arith.constant 0 : index
    %25 = vector.load %arg6[%c3, %c0_16] : memref<64x128xf32, #tpu.memory_space<vmem>>, vector<1x128xf32>
    tpu.vector_store %arg6[%c3, %c0_16], %24 {strides = array<i32>} : memref<64x128xf32, #tpu.memory_space<vmem>>, vector<1x128xf32>,
    %c8 = arith.constant 8 : index
    %c0_17 = arith.constant 0 : index
    %26 = vector.load %arg5[%c8, %c0_17] : memref<256x128xf32, #tpu.memory_space<vmem>>, vector<1x128xf32>
    %c4_18 = arith.constant 4 : index
    %c0_19 = arith.constant 0 : index
    %27 = vector.load %arg6[%c4_18, %c0_19] : memref<64x128xf32, #tpu.memory_space<vmem>>, vector<1x128xf32>
    tpu.vector_store %arg6[%c4_18, %c0_19], %26 {strides = array<i32>} : memref<64x128xf32, #tpu.memory_space<vmem>>, vector<1x128xf32>,
    %c10 = arith.constant 10 : index
    %c0_20 = arith.constant 0 : index
    %28 = vector.load %arg5[%c10, %c0_20] : memref<256x128xf32, #tpu.memory_space<vmem>>, vector<1x128xf32>
    %c5 = arith.constant 5 : index
    %c0_21 = arith.constant 0 : index
    %29 = vector.load %arg6[%c5, %c0_21] : memref<64x128xf32, #tpu.memory_space<vmem>>, vector<1x128xf32>
    tpu.vector_store %arg6[%c5, %c0_21], %28 {strides = array<i32>} : memref<64x128xf32, #tpu.memory_space<vmem>>, vector<1x128xf32>,
    %c12 = arith.constant 12 : index
    %c0_22 = arith.constant 0 : index
    %30 = vector.load %arg5[%c12, %c0_22] : memref<256x128xf32, #tpu.memory_space<vmem>>, vector<1x128xf32>
    %c6_23 = arith.constant 6 : index
    %c0_24 = arith.constant 0 : index
    %31 = vector.load %arg6[%c6_23, %c0_24] : memref<64x128xf32, #tpu.memory_space<vmem>>, vector<1x128xf32>
    tpu.vector_store %arg6[%c6_23, %c0_24], %30 {strides = array<i32>} : memref<64x128xf32, #tpu.memory_space<vmem>>, vector<1x128xf32>,
    %c14 = arith.constant 14 : index
    %c0_25 = arith.constant 0 : index
    %32 = vector.load %arg5[%c14, %c0_25] : memref<256x128xf32, #tpu.memory_space<vmem>>, vector<1x128xf32>
    %c7 = arith.constant 7 : index
    %c0_26 = arith.constant 0 : index
    %33 = vector.load %arg6[%c7, %c0_26] : memref<64x128xf32, #tpu.memory_space<vmem>>, vector<1x128xf32>
    tpu.vector_store %arg6[%c7, %c0_26], %32 {strides = array<i32>} : memref<64x128xf32, #tpu.memory_space<vmem>>, vector<1x128xf32>,
    %c32 = arith.constant 32 : index
    %c0_27 = arith.constant 0 : index
    %34 = vector.load %arg5[%c32, %c0_27] : memref<256x128xf32, #tpu.memory_space<vmem>>, vector<1x128xf32>
    %c8_28 = arith.constant 8 : index
    %c0_29 = arith.constant 0 : index
    %35 = vector.load %arg6[%c8_28, %c0_29] : memref<64x128xf32, #tpu.memory_space<vmem>>, vector<1x128xf32>
    tpu.vector_store %arg6[%c8_28, %c0_29], %34 {strides = array<i32>} : memref<64x128xf32, #tpu.memory_space<vmem>>, vector<1x128xf32>,
    %c34 = arith.constant 34 : index
    %c0_30 = arith.constant 0 : index
    %36 = vector.load %arg5[%c34, %c0_30] : memref<256x128xf32, #tpu.memory_space<vmem>>, vector<1x128xf32>
    %c9 = arith.constant 9 : index
    %c0_31 = arith.constant 0 : index
    %37 = vector.load %arg6[%c9, %c0_31] : memref<64x128xf32, #tpu.memory_space<vmem>>, vector<1x128xf32>
    tpu.vector_store %arg6[%c9, %c0_31], %36 {strides = array<i32>} : memref<64x128xf32, #tpu.memory_space<vmem>>, vector<1x128xf32>,
    %c36 = arith.constant 36 : index
    %c0_32 = arith.constant 0 : index
    %38 = vector.load %arg5[%c36, %c0_32] : memref<256x128xf32, #tpu.memory_space<vmem>>, vector<1x128xf32>
    %c10_33 = arith.constant 10 : index
    %c0_34 = arith.constant 0 : index
    %39 = vector.load %arg6[%c10_33, %c0_34] : memref<64x128xf32, #tpu.memory_space<vmem>>, vector<1x128xf32>
    tpu.vector_store %arg6[%c10_33, %c0_34], %38 {strides = array<i32>} : memref<64x128xf32, #tpu.memory_space<vmem>>, vector<1x128xf32>,
    %c38 = arith.constant 38 : index
    %c0_35 = arith.constant 0 : index
    %40 = vector.load %arg5[%c38, %c0_35] : memref<256x128xf32, #tpu.memory_space<vmem>>, vector<1x128xf32>
    %c11 = arith.constant 11 : index
    %c0_36 = arith.constant 0 : index
    %41 = vector.load %arg6[%c11, %c0_36] : memref<64x128xf32, #tpu.memory_space<vmem>>, vector<1x128xf32>
    tpu.vector_store %arg6[%c11, %c0_36], %40 {strides = array<i32>} : memref<64x128xf32, #tpu.memory_space<vmem>>, vector<1x128xf32>,
    %c40 = arith.constant 40 : index
    %c0_37 = arith.constant 0 : index
    %42 = vector.load %arg5[%c40, %c0_37] : memref<256x128xf32, #tpu.memory_space<vmem>>, vector<1x128xf32>
    %c12_38 = arith.constant 12 : index
    %c0_39 = arith.constant 0 : index
    %43 = vector.load %arg6[%c12_38, %c0_39] : memref<64x128xf32, #tpu.memory_space<vmem>>, vector<1x128xf32>
    tpu.vector_store %arg6[%c12_38, %c0_39], %42 {strides = array<i32>} : memref<64x128xf32, #tpu.memory_space<vmem>>, vector<1x128xf32>,
    %c42 = arith.constant 42 : index
    %c0_40 = arith.constant 0 : index
    %44 = vector.load %arg5[%c42, %c0_40] : memref<256x128xf32, #tpu.memory_space<vmem>>, vector<1x128xf32>
    %c13 = arith.constant 13 : index
    %c0_41 = arith.constant 0 : index
    %45 = vector.load %arg6[%c13, %c0_41] : memref<64x128xf32, #tpu.memory_space<vmem>>, vector<1x128xf32>
    tpu.vector_store %arg6[%c13, %c0_41], %44 {strides = array<i32>} : memref<64x128xf32, #tpu.memory_space<vmem>>, vector<1x128xf32>,
    %c44 = arith.constant 44 : index
    %c0_42 = arith.constant 0 : index
    %46 = vector.load %arg5[%c44, %c0_42] : memref<256x128xf32, #tpu.memory_space<vmem>>, vector<1x128xf32>
    %c14_43 = arith.constant 14 : index
    %c0_44 = arith.constant 0 : index
    %47 = vector.load %arg6[%c14_43, %c0_44] : memref<64x128xf32, #tpu.memory_space<vmem>>, vector<1x128xf32>
    tpu.vector_store %arg6[%c14_43, %c0_44], %46 {strides = array<i32>} : memref<64x128xf32, #tpu.memory_space<vmem>>, vector<1x128xf32>,
    %c46 = arith.constant 46 : index
    %c0_45 = arith.constant 0 : index
    %48 = vector.load %arg5[%c46, %c0_45] : memref<256x128xf32, #tpu.memory_space<vmem>>, vector<1x128xf32>
    %c15 = arith.constant 15 : index
    %c0_46 = arith.constant 0 : index
    %49 = vector.load %arg6[%c15, %c0_46] : memref<64x128xf32, #tpu.memory_space<vmem>>, vector<1x128xf32>
    tpu.vector_store %arg6[%c15, %c0_46], %48 {strides = array<i32>} : memref<64x128xf32, #tpu.memory_space<vmem>>, vector<1x128xf32>,
    %c64 = arith.constant 64 : index
    %c0_47 = arith.constant 0 : index
    %50 = vector.load %arg5[%c64, %c0_47] : memref<256x128xf32, #tpu.memory_space<vmem>>, vector<1x128xf32>
    %c16 = arith.constant 16 : index
    %c0_48 = arith.constant 0 : index
    %51 = vector.load %arg6[%c16, %c0_48] : memref<64x128xf32, #tpu.memory_space<vmem>>, vector<1x128xf32>
    tpu.vector_store %arg6[%c16, %c0_48], %50 {strides = array<i32>} : memref<64x128xf32, #tpu.memory_space<vmem>>, vector<1x128xf32>,
    %c66 = arith.constant 66 : index
    %c0_49 = arith.constant 0 : index
    %52 = vector.load %arg5[%c66, %c0_49] : memref<256x128xf32, #tpu.memory_space<vmem>>, vector<1x128xf32>
    %c17 = arith.constant 17 : index
    %c0_50 = arith.constant 0 : index
    %53 = vector.load %arg6[%c17, %c0_50] : memref<64x128xf32, #tpu.memory_space<vmem>>, vector<1x128xf32>
    tpu.vector_store %arg6[%c17, %c0_50], %52 {strides = array<i32>} : memref<64x128xf32, #tpu.memory_space<vmem>>, vector<1x128xf32>,
    %c68 = arith.constant 68 : index
    %c0_51 = arith.constant 0 : index
    %54 = vector.load %arg5[%c68, %c0_51] : memref<256x128xf32, #tpu.memory_space<vmem>>, vector<1x128xf32>
    %c18 = arith.constant 18 : index
    %c0_52 = arith.constant 0 : index
    %55 = vector.load %arg6[%c18, %c0_52] : memref<64x128xf32, #tpu.memory_space<vmem>>, vector<1x128xf32>
    tpu.vector_store %arg6[%c18, %c0_52], %54 {strides = array<i32>} : memref<64x128xf32, #tpu.memory_space<vmem>>, vector<1x128xf32>,
    %c70 = arith.constant 70 : index
    %c0_53 = arith.constant 0 : index
    %56 = vector.load %arg5[%c70, %c0_53] : memref<256x128xf32, #tpu.memory_space<vmem>>, vector<1x128xf32>
    %c19 = arith.constant 19 : index
    %c0_54 = arith.constant 0 : index
    %57 = vector.load %arg6[%c19, %c0_54] : memref<64x128xf32, #tpu.memory_space<vmem>>, vector<1x128xf32>
    tpu.vector_store %arg6[%c19, %c0_54], %56 {strides = array<i32>} : memref<64x128xf32, #tpu.memory_space<vmem>>, vector<1x128xf32>,
    %c72 = arith.constant 72 : index
    %c0_55 = arith.constant 0 : index
    %58 = vector.load %arg5[%c72, %c0_55] : memref<256x128xf32, #tpu.memory_space<vmem>>, vector<1x128xf32>
    %c20 = arith.constant 20 : index
    %c0_56 = arith.constant 0 : index
    %59 = vector.load %arg6[%c20, %c0_56] : memref<64x128xf32, #tpu.memory_space<vmem>>, vector<1x128xf32>
    tpu.vector_store %arg6[%c20, %c0_56], %58 {strides = array<i32>} : memref<64x128xf32, #tpu.memory_space<vmem>>, vector<1x128xf32>,
    %c74 = arith.constant 74 : index
    %c0_57 = arith.constant 0 : index
    %60 = vector.load %arg5[%c74, %c0_57] : memref<256x128xf32, #tpu.memory_space<vmem>>, vector<1x128xf32>
    %c21 = arith.constant 21 : index
    %c0_58 = arith.constant 0 : index
    %61 = vector.load %arg6[%c21, %c0_58] : memref<64x128xf32, #tpu.memory_space<vmem>>, vector<1x128xf32>
    tpu.vector_store %arg6[%c21, %c0_58], %60 {strides = array<i32>} : memref<64x128xf32, #tpu.memory_space<vmem>>, vector<1x128xf32>,
    %c76 = arith.constant 76 : index
    %c0_59 = arith.constant 0 : index
    %62 = vector.load %arg5[%c76, %c0_59] : memref<256x128xf32, #tpu.memory_space<vmem>>, vector<1x128xf32>
    %c22 = arith.constant 22 : index
    %c0_60 = arith.constant 0 : index
    %63 = vector.load %arg6[%c22, %c0_60] : memref<64x128xf32, #tpu.memory_space<vmem>>, vector<1x128xf32>
    tpu.vector_store %arg6[%c22, %c0_60], %62 {strides = array<i32>} : memref<64x128xf32, #tpu.memory_space<vmem>>, vector<1x128xf32>,
    %c78 = arith.constant 78 : index
    %c0_61 = arith.constant 0 : index
    %64 = vector.load %arg5[%c78, %c0_61] : memref<256x128xf32, #tpu.memory_space<vmem>>, vector<1x128xf32>
    %c23 = arith.constant 23 : index
    %c0_62 = arith.constant 0 : index
    %65 = vector.load %arg6[%c23, %c0_62] : memref<64x128xf32, #tpu.memory_space<vmem>>, vector<1x128xf32>
    tpu.vector_store %arg6[%c23, %c0_62], %64 {strides = array<i32>} : memref<64x128xf32, #tpu.memory_space<vmem>>, vector<1x128xf32>,
    %c96 = arith.constant 96 : index
    %c0_63 = arith.constant 0 : index
    %66 = vector.load %arg5[%c96, %c0_63] : memref<256x128xf32, #tpu.memory_space<vmem>>, vector<1x128xf32>
    %c24 = arith.constant 24 : index
    %c0_64 = arith.constant 0 : index
    %67 = vector.load %arg6[%c24, %c0_64] : memref<64x128xf32, #tpu.memory_space<vmem>>, vector<1x128xf32>
    tpu.vector_store %arg6[%c24, %c0_64], %66 {strides = array<i32>} : memref<64x128xf32, #tpu.memory_space<vmem>>, vector<1x128xf32>,
    %c98 = arith.constant 98 : index
    %c0_65 = arith.constant 0 : index
    %68 = vector.load %arg5[%c98, %c0_65] : memref<256x128xf32, #tpu.memory_space<vmem>>, vector<1x128xf32>
    %c25 = arith.constant 25 : index
    %c0_66 = arith.constant 0 : index
    %69 = vector.load %arg6[%c25, %c0_66] : memref<64x128xf32, #tpu.memory_space<vmem>>, vector<1x128xf32>
    tpu.vector_store %arg6[%c25, %c0_66], %68 {strides = array<i32>} : memref<64x128xf32, #tpu.memory_space<vmem>>, vector<1x128xf32>,
    %c100 = arith.constant 100 : index
    %c0_67 = arith.constant 0 : index
    %70 = vector.load %arg5[%c100, %c0_67] : memref<256x128xf32, #tpu.memory_space<vmem>>, vector<1x128xf32>
    %c26 = arith.constant 26 : index
    %c0_68 = arith.constant 0 : index
    %71 = vector.load %arg6[%c26, %c0_68] : memref<64x128xf32, #tpu.memory_space<vmem>>, vector<1x128xf32>
    tpu.vector_store %arg6[%c26, %c0_68], %70 {strides = array<i32>} : memref<64x128xf32, #tpu.memory_space<vmem>>, vector<1x128xf32>,
    %c102 = arith.constant 102 : index
    %c0_69 = arith.constant 0 : index
    %72 = vector.load %arg5[%c102, %c0_69] : memref<256x128xf32, #tpu.memory_space<vmem>>, vector<1x128xf32>
    %c27 = arith.constant 27 : index
    %c0_70 = arith.constant 0 : index
    %73 = vector.load %arg6[%c27, %c0_70] : memref<64x128xf32, #tpu.memory_space<vmem>>, vector<1x128xf32>
    tpu.vector_store %arg6[%c27, %c0_70], %72 {strides = array<i32>} : memref<64x128xf32, #tpu.memory_space<vmem>>, vector<1x128xf32>,
    %c104 = arith.constant 104 : index
    %c0_71 = arith.constant 0 : index
    %74 = vector.load %arg5[%c104, %c0_71] : memref<256x128xf32, #tpu.memory_space<vmem>>, vector<1x128xf32>
    %c28 = arith.constant 28 : index
    %c0_72 = arith.constant 0 : index
    %75 = vector.load %arg6[%c28, %c0_72] : memref<64x128xf32, #tpu.memory_space<vmem>>, vector<1x128xf32>
    tpu.vector_store %arg6[%c28, %c0_72], %74 {strides = array<i32>} : memref<64x128xf32, #tpu.memory_space<vmem>>, vector<1x128xf32>,
    %c106 = arith.constant 106 : index
    %c0_73 = arith.constant 0 : index
    %76 = vector.load %arg5[%c106, %c0_73] : memref<256x128xf32, #tpu.memory_space<vmem>>, vector<1x128xf32>
    %c29 = arith.constant 29 : index
    %c0_74 = arith.constant 0 : index
    %77 = vector.load %arg6[%c29, %c0_74] : memref<64x128xf32, #tpu.memory_space<vmem>>, vector<1x128xf32>
    tpu.vector_store %arg6[%c29, %c0_74], %76 {strides = array<i32>} : memref<64x128xf32, #tpu.memory_space<vmem>>, vector<1x128xf32>,
    %c108 = arith.constant 108 : index
    %c0_75 = arith.constant 0 : index
    %78 = vector.load %arg5[%c108, %c0_75] : memref<256x128xf32, #tpu.memory_space<vmem>>, vector<1x128xf32>
    %c30 = arith.constant 30 : index
    %c0_76 = arith.constant 0 : index
    %79 = vector.load %arg6[%c30, %c0_76] : memref<64x128xf32, #tpu.memory_space<vmem>>, vector<1x128xf32>
    tpu.vector_store %arg6[%c30, %c0_76], %78 {strides = array<i32>} : memref<64x128xf32, #tpu.memory_space<vmem>>, vector<1x128xf32>,
    %c110 = arith.constant 110 : index
    %c0_77 = arith.constant 0 : index
    %80 = vector.load %arg5[%c110, %c0_77] : memref<256x128xf32, #tpu.memory_space<vmem>>, vector<1x128xf32>
    %c31 = arith.constant 31 : index
    %c0_78 = arith.constant 0 : index
    %81 = vector.load %arg6[%c31, %c0_78] : memref<64x128xf32, #tpu.memory_space<vmem>>, vector<1x128xf32>
    tpu.vector_store %arg6[%c31, %c0_78], %80 {strides = array<i32>} : memref<64x128xf32, #tpu.memory_space<vmem>>, vector<1x128xf32>,
    %c128 = arith.constant 128 : index
    %c0_79 = arith.constant 0 : index
    %82 = vector.load %arg5[%c128, %c0_79] : memref<256x128xf32, #tpu.memory_space<vmem>>, vector<1x128xf32>
    %c32_80 = arith.constant 32 : index
    %c0_81 = arith.constant 0 : index
    %83 = vector.load %arg6[%c32_80, %c0_81] : memref<64x128xf32, #tpu.memory_space<vmem>>, vector<1x128xf32>
    tpu.vector_store %arg6[%c32_80, %c0_81], %82 {strides = array<i32>} : memref<64x128xf32, #tpu.memory_space<vmem>>, vector<1x128xf32>,
    %c130 = arith.constant 130 : index
    %c0_82 = arith.constant 0 : index
    %84 = vector.load %arg5[%c130, %c0_82] : memref<256x128xf32, #tpu.memory_space<vmem>>, vector<1x128xf32>
    %c33 = arith.constant 33 : index
    %c0_83 = arith.constant 0 : index
    %85 = vector.load %arg6[%c33, %c0_83] : memref<64x128xf32, #tpu.memory_space<vmem>>, vector<1x128xf32>
    tpu.vector_store %arg6[%c33, %c0_83], %84 {strides = array<i32>} : memref<64x128xf32, #tpu.memory_space<vmem>>, vector<1x128xf32>,
    %c132 = arith.constant 132 : index
    %c0_84 = arith.constant 0 : index
    %86 = vector.load %arg5[%c132, %c0_84] : memref<256x128xf32, #tpu.memory_space<vmem>>, vector<1x128xf32>
    %c34_85 = arith.constant 34 : index
    %c0_86 = arith.constant 0 : index
    %87 = vector.load %arg6[%c34_85, %c0_86] : memref<64x128xf32, #tpu.memory_space<vmem>>, vector<1x128xf32>
    tpu.vector_store %arg6[%c34_85, %c0_86], %86 {strides = array<i32>} : memref<64x128xf32, #tpu.memory_space<vmem>>, vector<1x128xf32>,
    %c134 = arith.constant 134 : index
    %c0_87 = arith.constant 0 : index
    %88 = vector.load %arg5[%c134, %c0_87] : memref<256x128xf32, #tpu.memory_space<vmem>>, vector<1x128xf32>
    %c35 = arith.constant 35 : index
    %c0_88 = arith.constant 0 : index
    %89 = vector.load %arg6[%c35, %c0_88] : memref<64x128xf32, #tpu.memory_space<vmem>>, vector<1x128xf32>
    tpu.vector_store %arg6[%c35, %c0_88], %88 {strides = array<i32>} : memref<64x128xf32, #tpu.memory_space<vmem>>, vector<1x128xf32>,
    %c136 = arith.constant 136 : index
    %c0_89 = arith.constant 0 : index
    %90 = vector.load %arg5[%c136, %c0_89] : memref<256x128xf32, #tpu.memory_space<vmem>>, vector<1x128xf32>
    %c36_90 = arith.constant 36 : index
    %c0_91 = arith.constant 0 : index
    %91 = vector.load %arg6[%c36_90, %c0_91] : memref<64x128xf32, #tpu.memory_space<vmem>>, vector<1x128xf32>
    tpu.vector_store %arg6[%c36_90, %c0_91], %90 {strides = array<i32>} : memref<64x128xf32, #tpu.memory_space<vmem>>, vector<1x128xf32>,
    %c138 = arith.constant 138 : index
    %c0_92 = arith.constant 0 : index
    %92 = vector.load %arg5[%c138, %c0_92] : memref<256x128xf32, #tpu.memory_space<vmem>>, vector<1x128xf32>
    %c37 = arith.constant 37 : index
    %c0_93 = arith.constant 0 : index
    %93 = vector.load %arg6[%c37, %c0_93] : memref<64x128xf32, #tpu.memory_space<vmem>>, vector<1x128xf32>
    tpu.vector_store %arg6[%c37, %c0_93], %92 {strides = array<i32>} : memref<64x128xf32, #tpu.memory_space<vmem>>, vector<1x128xf32>,
    %c140 = arith.constant 140 : index
    %c0_94 = arith.constant 0 : index
    %94 = vector.load %arg5[%c140, %c0_94] : memref<256x128xf32, #tpu.memory_space<vmem>>, vector<1x128xf32>
    %c38_95 = arith.constant 38 : index
    %c0_96 = arith.constant 0 : index
    %95 = vector.load %arg6[%c38_95, %c0_96] : memref<64x128xf32, #tpu.memory_space<vmem>>, vector<1x128xf32>
    tpu.vector_store %arg6[%c38_95, %c0_96], %94 {strides = array<i32>} : memref<64x128xf32, #tpu.memory_space<vmem>>, vector<1x128xf32>,
    %c142 = arith.constant 142 : index
    %c0_97 = arith.constant 0 : index
    %96 = vector.load %arg5[%c142, %c0_97] : memref<256x128xf32, #tpu.memory_space<vmem>>, vector<1x128xf32>
    %c39 = arith.constant 39 : index
    %c0_98 = arith.constant 0 : index
    %97 = vector.load %arg6[%c39, %c0_98] : memref<64x128xf32, #tpu.memory_space<vmem>>, vector<1x128xf32>
    tpu.vector_store %arg6[%c39, %c0_98], %96 {strides = array<i32>} : memref<64x128xf32, #tpu.memory_space<vmem>>, vector<1x128xf32>,
    %c160 = arith.constant 160 : index
    %c0_99 = arith.constant 0 : index
    %98 = vector.load %arg5[%c160, %c0_99] : memref<256x128xf32, #tpu.memory_space<vmem>>, vector<1x128xf32>
    %c40_100 = arith.constant 40 : index
    %c0_101 = arith.constant 0 : index
    %99 = vector.load %arg6[%c40_100, %c0_101] : memref<64x128xf32, #tpu.memory_space<vmem>>, vector<1x128xf32>
    tpu.vector_store %arg6[%c40_100, %c0_101], %98 {strides = array<i32>} : memref<64x128xf32, #tpu.memory_space<vmem>>, vector<1x128xf32>,
    %c162 = arith.constant 162 : index
    %c0_102 = arith.constant 0 : index
    %100 = vector.load %arg5[%c162, %c0_102] : memref<256x128xf32, #tpu.memory_space<vmem>>, vector<1x128xf32>
    %c41 = arith.constant 41 : index
    %c0_103 = arith.constant 0 : index
    %101 = vector.load %arg6[%c41, %c0_103] : memref<64x128xf32, #tpu.memory_space<vmem>>, vector<1x128xf32>
    tpu.vector_store %arg6[%c41, %c0_103], %100 {strides = array<i32>} : memref<64x128xf32, #tpu.memory_space<vmem>>, vector<1x128xf32>,
    %c164 = arith.constant 164 : index
    %c0_104 = arith.constant 0 : index
    %102 = vector.load %arg5[%c164, %c0_104] : memref<256x128xf32, #tpu.memory_space<vmem>>, vector<1x128xf32>
    %c42_105 = arith.constant 42 : index
    %c0_106 = arith.constant 0 : index
    %103 = vector.load %arg6[%c42_105, %c0_106] : memref<64x128xf32, #tpu.memory_space<vmem>>, vector<1x128xf32>
    tpu.vector_store %arg6[%c42_105, %c0_106], %102 {strides = array<i32>} : memref<64x128xf32, #tpu.memory_space<vmem>>, vector<1x128xf32>,
    %c166 = arith.constant 166 : index
    %c0_107 = arith.constant 0 : index
    %104 = vector.load %arg5[%c166, %c0_107] : memref<256x128xf32, #tpu.memory_space<vmem>>, vector<1x128xf32>
    %c43 = arith.constant 43 : index
    %c0_108 = arith.constant 0 : index
    %105 = vector.load %arg6[%c43, %c0_108] : memref<64x128xf32, #tpu.memory_space<vmem>>, vector<1x128xf32>
    tpu.vector_store %arg6[%c43, %c0_108], %104 {strides = array<i32>} : memref<64x128xf32, #tpu.memory_space<vmem>>, vector<1x128xf32>,
    %c168 = arith.constant 168 : index
    %c0_109 = arith.constant 0 : index
    %106 = vector.load %arg5[%c168, %c0_109] : memref<256x128xf32, #tpu.memory_space<vmem>>, vector<1x128xf32>
    %c44_110 = arith.constant 44 : index
    %c0_111 = arith.constant 0 : index
    %107 = vector.load %arg6[%c44_110, %c0_111] : memref<64x128xf32, #tpu.memory_space<vmem>>, vector<1x128xf32>
    tpu.vector_store %arg6[%c44_110, %c0_111], %106 {strides = array<i32>} : memref<64x128xf32, #tpu.memory_space<vmem>>, vector<1x128xf32>,
    %c170 = arith.constant 170 : index
    %c0_112 = arith.constant 0 : index
    %108 = vector.load %arg5[%c170, %c0_112] : memref<256x128xf32, #tpu.memory_space<vmem>>, vector<1x128xf32>
    %c45 = arith.constant 45 : index
    %c0_113 = arith.constant 0 : index
    %109 = vector.load %arg6[%c45, %c0_113] : memref<64x128xf32, #tpu.memory_space<vmem>>, vector<1x128xf32>
    tpu.vector_store %arg6[%c45, %c0_113], %108 {strides = array<i32>} : memref<64x128xf32, #tpu.memory_space<vmem>>, vector<1x128xf32>,
    %c172 = arith.constant 172 : index
    %c0_114 = arith.constant 0 : index
    %110 = vector.load %arg5[%c172, %c0_114] : memref<256x128xf32, #tpu.memory_space<vmem>>, vector<1x128xf32>
    %c46_115 = arith.constant 46 : index
    %c0_116 = arith.constant 0 : index
    %111 = vector.load %arg6[%c46_115, %c0_116] : memref<64x128xf32, #tpu.memory_space<vmem>>, vector<1x128xf32>
    tpu.vector_store %arg6[%c46_115, %c0_116], %110 {strides = array<i32>} : memref<64x128xf32, #tpu.memory_space<vmem>>, vector<1x128xf32>,
    %c174 = arith.constant 174 : index
    %c0_117 = arith.constant 0 : index
    %112 = vector.load %arg5[%c174, %c0_117] : memref<256x128xf32, #tpu.memory_space<vmem>>, vector<1x128xf32>
    %c47 = arith.constant 47 : index
    %c0_118 = arith.constant 0 : index
    %113 = vector.load %arg6[%c47, %c0_118] : memref<64x128xf32, #tpu.memory_space<vmem>>, vector<1x128xf32>
    tpu.vector_store %arg6[%c47, %c0_118], %112 {strides = array<i32>} : memref<64x128xf32, #tpu.memory_space<vmem>>, vector<1x128xf32>,
    %c192 = arith.constant 192 : index
    %c0_119 = arith.constant 0 : index
    %114 = vector.load %arg5[%c192, %c0_119] : memref<256x128xf32, #tpu.memory_space<vmem>>, vector<1x128xf32>
    %c48 = arith.constant 48 : index
    %c0_120 = arith.constant 0 : index
    %115 = vector.load %arg6[%c48, %c0_120] : memref<64x128xf32, #tpu.memory_space<vmem>>, vector<1x128xf32>
    tpu.vector_store %arg6[%c48, %c0_120], %114 {strides = array<i32>} : memref<64x128xf32, #tpu.memory_space<vmem>>, vector<1x128xf32>,
    %c194 = arith.constant 194 : index
    %c0_121 = arith.constant 0 : index
    %116 = vector.load %arg5[%c194, %c0_121] : memref<256x128xf32, #tpu.memory_space<vmem>>, vector<1x128xf32>
    %c49 = arith.constant 49 : index
    %c0_122 = arith.constant 0 : index
    %117 = vector.load %arg6[%c49, %c0_122] : memref<64x128xf32, #tpu.memory_space<vmem>>, vector<1x128xf32>
    tpu.vector_store %arg6[%c49, %c0_122], %116 {strides = array<i32>} : memref<64x128xf32, #tpu.memory_space<vmem>>, vector<1x128xf32>,
    %c196 = arith.constant 196 : index
    %c0_123 = arith.constant 0 : index
    %118 = vector.load %arg5[%c196, %c0_123] : memref<256x128xf32, #tpu.memory_space<vmem>>, vector<1x128xf32>
    %c50 = arith.constant 50 : index
    %c0_124 = arith.constant 0 : index
    %119 = vector.load %arg6[%c50, %c0_124] : memref<64x128xf32, #tpu.memory_space<vmem>>, vector<1x128xf32>
    tpu.vector_store %arg6[%c50, %c0_124], %118 {strides = array<i32>} : memref<64x128xf32, #tpu.memory_space<vmem>>, vector<1x128xf32>,
    %c198 = arith.constant 198 : index
    %c0_125 = arith.constant 0 : index
    %120 = vector.load %arg5[%c198, %c0_125] : memref<256x128xf32, #tpu.memory_space<vmem>>, vector<1x128xf32>
    %c51 = arith.constant 51 : index
    %c0_126 = arith.constant 0 : index
    %121 = vector.load %arg6[%c51, %c0_126] : memref<64x128xf32, #tpu.memory_space<vmem>>, vector<1x128xf32>
    tpu.vector_store %arg6[%c51, %c0_126], %120 {strides = array<i32>} : memref<64x128xf32, #tpu.memory_space<vmem>>, vector<1x128xf32>,
    %c200 = arith.constant 200 : index
    %c0_127 = arith.constant 0 : index
    %122 = vector.load %arg5[%c200, %c0_127] : memref<256x128xf32, #tpu.memory_space<vmem>>, vector<1x128xf32>
    %c52 = arith.constant 52 : index
    %c0_128 = arith.constant 0 : index
    %123 = vector.load %arg6[%c52, %c0_128] : memref<64x128xf32, #tpu.memory_space<vmem>>, vector<1x128xf32>
    tpu.vector_store %arg6[%c52, %c0_128], %122 {strides = array<i32>} : memref<64x128xf32, #tpu.memory_space<vmem>>, vector<1x128xf32>,
    %c202 = arith.constant 202 : index
    %c0_129 = arith.constant 0 : index
    %124 = vector.load %arg5[%c202, %c0_129] : memref<256x128xf32, #tpu.memory_space<vmem>>, vector<1x128xf32>
    %c53 = arith.constant 53 : index
    %c0_130 = arith.constant 0 : index
    %125 = vector.load %arg6[%c53, %c0_130] : memref<64x128xf32, #tpu.memory_space<vmem>>, vector<1x128xf32>
    tpu.vector_store %arg6[%c53, %c0_130], %124 {strides = array<i32>} : memref<64x128xf32, #tpu.memory_space<vmem>>, vector<1x128xf32>,
    %c204 = arith.constant 204 : index
    %c0_131 = arith.constant 0 : index
    %126 = vector.load %arg5[%c204, %c0_131] : memref<256x128xf32, #tpu.memory_space<vmem>>, vector<1x128xf32>
    %c54 = arith.constant 54 : index
    %c0_132 = arith.constant 0 : index
    %127 = vector.load %arg6[%c54, %c0_132] : memref<64x128xf32, #tpu.memory_space<vmem>>, vector<1x128xf32>
    tpu.vector_store %arg6[%c54, %c0_132], %126 {strides = array<i32>} : memref<64x128xf32, #tpu.memory_space<vmem>>, vector<1x128xf32>,
    %c206 = arith.constant 206 : index
    %c0_133 = arith.constant 0 : index
    %128 = vector.load %arg5[%c206, %c0_133] : memref<256x128xf32, #tpu.memory_space<vmem>>, vector<1x128xf32>
    %c55 = arith.constant 55 : index
    %c0_134 = arith.constant 0 : index
    %129 = vector.load %arg6[%c55, %c0_134] : memref<64x128xf32, #tpu.memory_space<vmem>>, vector<1x128xf32>
    tpu.vector_store %arg6[%c55, %c0_134], %128 {strides = array<i32>} : memref<64x128xf32, #tpu.memory_space<vmem>>, vector<1x128xf32>,
    %c224 = arith.constant 224 : index
    %c0_135 = arith.constant 0 : index
    %130 = vector.load %arg5[%c224, %c0_135] : memref<256x128xf32, #tpu.memory_space<vmem>>, vector<1x128xf32>
    %c56 = arith.constant 56 : index
    %c0_136 = arith.constant 0 : index
    %131 = vector.load %arg6[%c56, %c0_136] : memref<64x128xf32, #tpu.memory_space<vmem>>, vector<1x128xf32>
    tpu.vector_store %arg6[%c56, %c0_136], %130 {strides = array<i32>} : memref<64x128xf32, #tpu.memory_space<vmem>>, vector<1x128xf32>,
    %c226 = arith.constant 226 : index
    %c0_137 = arith.constant 0 : index
    %132 = vector.load %arg5[%c226, %c0_137] : memref<256x128xf32, #tpu.memory_space<vmem>>, vector<1x128xf32>
    %c57 = arith.constant 57 : index
    %c0_138 = arith.constant 0 : index
    %133 = vector.load %arg6[%c57, %c0_138] : memref<64x128xf32, #tpu.memory_space<vmem>>, vector<1x128xf32>
    tpu.vector_store %arg6[%c57, %c0_138], %132 {strides = array<i32>} : memref<64x128xf32, #tpu.memory_space<vmem>>, vector<1x128xf32>,
    %c228 = arith.constant 228 : index
    %c0_139 = arith.constant 0 : index
    %134 = vector.load %arg5[%c228, %c0_139] : memref<256x128xf32, #tpu.memory_space<vmem>>, vector<1x128xf32>
    %c58 = arith.constant 58 : index
    %c0_140 = arith.constant 0 : index
    %135 = vector.load %arg6[%c58, %c0_140] : memref<64x128xf32, #tpu.memory_space<vmem>>, vector<1x128xf32>
    tpu.vector_store %arg6[%c58, %c0_140], %134 {strides = array<i32>} : memref<64x128xf32, #tpu.memory_space<vmem>>, vector<1x128xf32>,
    %c230 = arith.constant 230 : index
    %c0_141 = arith.constant 0 : index
    %136 = vector.load %arg5[%c230, %c0_141] : memref<256x128xf32, #tpu.memory_space<vmem>>, vector<1x128xf32>
    %c59 = arith.constant 59 : index
    %c0_142 = arith.constant 0 : index
    %137 = vector.load %arg6[%c59, %c0_142] : memref<64x128xf32, #tpu.memory_space<vmem>>, vector<1x128xf32>
    tpu.vector_store %arg6[%c59, %c0_142], %136 {strides = array<i32>} : memref<64x128xf32, #tpu.memory_space<vmem>>, vector<1x128xf32>,
    %c232 = arith.constant 232 : index
    %c0_143 = arith.constant 0 : index
    %138 = vector.load %arg5[%c232, %c0_143] : memref<256x128xf32, #tpu.memory_space<vmem>>, vector<1x128xf32>
    %c60 = arith.constant 60 : index
    %c0_144 = arith.constant 0 : index
    %139 = vector.load %arg6[%c60, %c0_144] : memref<64x128xf32, #tpu.memory_space<vmem>>, vector<1x128xf32>
    tpu.vector_store %arg6[%c60, %c0_144], %138 {strides = array<i32>} : memref<64x128xf32, #tpu.memory_space<vmem>>, vector<1x128xf32>,
    %c234 = arith.constant 234 : index
    %c0_145 = arith.constant 0 : index
    %140 = vector.load %arg5[%c234, %c0_145] : memref<256x128xf32, #tpu.memory_space<vmem>>, vector<1x128xf32>
    %c61 = arith.constant 61 : index
    %c0_146 = arith.constant 0 : index
    %141 = vector.load %arg6[%c61, %c0_146] : memref<64x128xf32, #tpu.memory_space<vmem>>, vector<1x128xf32>
    tpu.vector_store %arg6[%c61, %c0_146], %140 {strides = array<i32>} : memref<64x128xf32, #tpu.memory_space<vmem>>, vector<1x128xf32>,
    %c236 = arith.constant 236 : index
    %c0_147 = arith.constant 0 : index
    %142 = vector.load %arg5[%c236, %c0_147] : memref<256x128xf32, #tpu.memory_space<vmem>>, vector<1x128xf32>
    %c62 = arith.constant 62 : index
    %c0_148 = arith.constant 0 : index
    %143 = vector.load %arg6[%c62, %c0_148] : memref<64x128xf32, #tpu.memory_space<vmem>>, vector<1x128xf32>
    tpu.vector_store %arg6[%c62, %c0_148], %142 {strides = array<i32>} : memref<64x128xf32, #tpu.memory_space<vmem>>, vector<1x128xf32>,
    %c238 = arith.constant 238 : index
    %c0_149 = arith.constant 0 : index
    %144 = vector.load %arg5[%c238, %c0_149] : memref<256x128xf32, #tpu.memory_space<vmem>>, vector<1x128xf32>
    %c63 = arith.constant 63 : index
    %c0_150 = arith.constant 0 : index
    %145 = vector.load %arg6[%c63, %c0_150] : memref<64x128xf32, #tpu.memory_space<vmem>>, vector<1x128xf32>
    tpu.vector_store %arg6[%c63, %c0_150], %144 {strides = array<i32>} : memref<64x128xf32, #tpu.memory_space<vmem>>, vector<1x128xf32>,
    %c0_151 = arith.constant 0 : index
    %c0_152 = arith.constant 0 : index
    %146 = vector.load %arg6[%c0_151, %c0_152] : memref<64x128xf32, #tpu.memory_space<vmem>>, vector<64x128xf32>
    %147 = arith.truncf %146 : vector<64x128xf32> to vector<64x128xbf16>
    %148 = tpu.iota {dimensions = array<i32: 0>} : vector<64x128xi32>
    %c7_i32 = arith.constant 7 : i32
    %149 = vector.broadcast %c7_i32 : i32 to vector<64x128xi32>
    %150 = arith.andi %148, %149 : vector<64x128xi32>
    %c0_i32 = arith.constant 0 : i32
    %151 = vector.broadcast %c0_i32 : i32 to vector<64x128xi32>
    %152 = arith.cmpi sgt, %150, %151 : vector<64x128xi32>
    %c7_i32_153 = arith.constant 7 : i32
    %153 = vector.broadcast %c7_i32_153 : i32 to vector<64x128xi32>
    %154 = arith.cmpi slt, %150, %153 : vector<64x128xi32>
    %c8_i32 = arith.constant 8 : i32
    %155 = vector.broadcast %c8_i32 : i32 to vector<64x128xi32>
    %156 = arith.cmpi sge, %148, %155 : vector<64x128xi32>
    %c56_i32 = arith.constant 56 : i32
    %157 = vector.broadcast %c56_i32 : i32 to vector<64x128xi32>
    %158 = arith.cmpi slt, %148, %157 : vector<64x128xi32>
    %cst_154 = arith.constant 0.000000e+00 : bf16
    %159 = vector.broadcast %cst_154 : bf16 to vector<64x128xbf16>
    %160 = arith.extf %147 : vector<64x128xbf16> to vector<64x128xf32>
    %cst_155 = arith.constant 0.000000e+00 : f32
    %161 = vector.broadcast %cst_155 : f32 to vector<9x128xf32>
    %162 = vector.extract_strided_slice %160 {offsets = [0, 0], sizes = [55, 128], strides = [1, 1]} : vector<64x128xf32> to vector<55x128xf32>
    %163 = tpu.concatenate %161, %162 in 0 : vector<9x128xf32>, vector<55x128xf32> -> vector<64x128xf32>
    %164 = arith.truncf %163 : vector<64x128xf32> to vector<64x128xbf16>
    %165 = arith.andi %156, %152 : vector<64x128xi1>
    %166 = arith.select %165, %164, %159 : vector<64x128xi1>, vector<64x128xbf16>
    %c0_156 = arith.constant 0 : index
    %c0_157 = arith.constant 0 : index
    %167 = vector.load %arg2[%c0_156, %c0_157] : memref<1152x128xbf16, #tpu.memory_space<vmem>>, vector<128x128xbf16>
    %cst_158 = arith.constant dense<0.000000e+00> : vector<64x128xf32>
    %168 = tpu.matmul %166, %167, %cst_158 {dimension_numbers = #tpu.dot_dimension_numbers<[1], [0], [0], [1], [0, 0, 1, 1], [], []>} : vector<64x128xbf16>, vector<128x128xbf16>, vector<64x128xf32> -> vector<64x128xf32>
    %169 = arith.extf %147 : vector<64x128xbf16> to vector<64x128xf32>
    %cst_159 = arith.constant 0.000000e+00 : f32
    %170 = vector.broadcast %cst_159 : f32 to vector<8x128xf32>
    %171 = vector.extract_strided_slice %169 {offsets = [0, 0], sizes = [56, 128], strides = [1, 1]} : vector<64x128xf32> to vector<56x128xf32>
    %172 = tpu.concatenate %170, %171 in 0 : vector<8x128xf32>, vector<56x128xf32> -> vector<64x128xf32>
    %173 = arith.truncf %172 : vector<64x128xf32> to vector<64x128xbf16>
    %174 = arith.select %156, %173, %159 : vector<64x128xi1>, vector<64x128xbf16>
    %c128_160 = arith.constant 128 : index
    %c0_161 = arith.constant 0 : index
    %175 = vector.load %arg2[%c128_160, %c0_161] : memref<1152x128xbf16, #tpu.memory_space<vmem>>, vector<128x128xbf16>
    %cst_162 = arith.constant dense<0.000000e+00> : vector<64x128xf32>
    %176 = tpu.matmul %174, %175, %cst_162 {dimension_numbers = #tpu.dot_dimension_numbers<[1], [0], [0], [1], [0, 0, 1, 1], [], []>} : vector<64x128xbf16>, vector<128x128xbf16>, vector<64x128xf32> -> vector<64x128xf32>
    %177 = arith.addf %168, %176 : vector<64x128xf32>
    %178 = arith.extf %147 : vector<64x128xbf16> to vector<64x128xf32>
    %cst_163 = arith.constant 0.000000e+00 : f32
    %179 = vector.broadcast %cst_163 : f32 to vector<7x128xf32>
    %180 = vector.extract_strided_slice %178 {offsets = [0, 0], sizes = [57, 128], strides = [1, 1]} : vector<64x128xf32> to vector<57x128xf32>
    %181 = tpu.concatenate %179, %180 in 0 : vector<7x128xf32>, vector<57x128xf32> -> vector<64x128xf32>
    %182 = arith.truncf %181 : vector<64x128xf32> to vector<64x128xbf16>
    %183 = arith.andi %156, %154 : vector<64x128xi1>
    %184 = arith.select %183, %182, %159 : vector<64x128xi1>, vector<64x128xbf16>
    %c256 = arith.constant 256 : index
    %c0_164 = arith.constant 0 : index
    %185 = vector.load %arg2[%c256, %c0_164] : memref<1152x128xbf16, #tpu.memory_space<vmem>>, vector<128x128xbf16>
    %cst_165 = arith.constant dense<0.000000e+00> : vector<64x128xf32>
    %186 = tpu.matmul %184, %185, %cst_165 {dimension_numbers = #tpu.dot_dimension_numbers<[1], [0], [0], [1], [0, 0, 1, 1], [], []>} : vector<64x128xbf16>, vector<128x128xbf16>, vector<64x128xf32> -> vector<64x128xf32>
    %187 = arith.addf %177, %186 : vector<64x128xf32>
    %188 = arith.extf %147 : vector<64x128xbf16> to vector<64x128xf32>
    %cst_166 = arith.constant 0.000000e+00 : f32
    %189 = vector.broadcast %cst_166 : f32 to vector<1x128xf32>
    %190 = vector.extract_strided_slice %188 {offsets = [0, 0], sizes = [63, 128], strides = [1, 1]} : vector<64x128xf32> to vector<63x128xf32>
    %191 = tpu.concatenate %189, %190 in 0 : vector<1x128xf32>, vector<63x128xf32> -> vector<64x128xf32>
    %192 = arith.truncf %191 : vector<64x128xf32> to vector<64x128xbf16>
    %193 = arith.select %152, %192, %159 : vector<64x128xi1>, vector<64x128xbf16>
    %c384 = arith.constant 384 : index
    %c0_167 = arith.constant 0 : index
    %194 = vector.load %arg2[%c384, %c0_167] : memref<1152x128xbf16, #tpu.memory_space<vmem>>, vector<128x128xbf16>
    %cst_168 = arith.constant dense<0.000000e+00> : vector<64x128xf32>
    %195 = tpu.matmul %193, %194, %cst_168 {dimension_numbers = #tpu.dot_dimension_numbers<[1], [0], [0], [1], [0, 0, 1, 1], [], []>} : vector<64x128xbf16>, vector<128x128xbf16>, vector<64x128xf32> -> vector<64x128xf32>
    %196 = arith.addf %187, %195 : vector<64x128xf32>
    %c512 = arith.constant 512 : index
    %c0_169 = arith.constant 0 : index
    %197 = vector.load %arg2[%c512, %c0_169] : memref<1152x128xbf16, #tpu.memory_space<vmem>>, vector<128x128xbf16>
    %cst_170 = arith.constant dense<0.000000e+00> : vector<64x128xf32>
    %198 = tpu.matmul %147, %197, %cst_170 {dimension_numbers = #tpu.dot_dimension_numbers<[1], [0], [0], [1], [0, 0, 1, 1], [], []>} : vector<64x128xbf16>, vector<128x128xbf16>, vector<64x128xf32> -> vector<64x128xf32>
    %199 = arith.addf %196, %198 : vector<64x128xf32>
    %200 = arith.extf %147 : vector<64x128xbf16> to vector<64x128xf32>
    %cst_171 = arith.constant 0.000000e+00 : f32
    %201 = vector.broadcast %cst_171 : f32 to vector<1x128xf32>
    %202 = vector.extract_strided_slice %200 {offsets = [1, 0], sizes = [63, 128], strides = [1, 1]} : vector<64x128xf32> to vector<63x128xf32>
    %203 = tpu.concatenate %202, %201 in 0 : vector<63x128xf32>, vector<1x128xf32> -> vector<64x128xf32>
    %204 = arith.truncf %203 : vector<64x128xf32> to vector<64x128xbf16>
    %205 = arith.select %154, %204, %159 : vector<64x128xi1>, vector<64x128xbf16>
    %c640 = arith.constant 640 : index
    %c0_172 = arith.constant 0 : index
    %206 = vector.load %arg2[%c640, %c0_172] : memref<1152x128xbf16, #tpu.memory_space<vmem>>, vector<128x128xbf16>
    %cst_173 = arith.constant dense<0.000000e+00> : vector<64x128xf32>
    %207 = tpu.matmul %205, %206, %cst_173 {dimension_numbers = #tpu.dot_dimension_numbers<[1], [0], [0], [1], [0, 0, 1, 1], [], []>} : vector<64x128xbf16>, vector<128x128xbf16>, vector<64x128xf32> -> vector<64x128xf32>
    %208 = arith.addf %199, %207 : vector<64x128xf32>
    %209 = arith.extf %147 : vector<64x128xbf16> to vector<64x128xf32>
    %cst_174 = arith.constant 0.000000e+00 : f32
    %210 = vector.broadcast %cst_174 : f32 to vector<7x128xf32>
    %211 = vector.extract_strided_slice %209 {offsets = [7, 0], sizes = [57, 128], strides = [1, 1]} : vector<64x128xf32> to vector<57x128xf32>
    %212 = tpu.concatenate %211, %210 in 0 : vector<57x128xf32>, vector<7x128xf32> -> vector<64x128xf32>
    %213 = arith.truncf %212 : vector<64x128xf32> to vector<64x128xbf16>
    %214 = arith.andi %158, %152 : vector<64x128xi1>
    %215 = arith.select %214, %213, %159 : vector<64x128xi1>, vector<64x128xbf16>
    %c768 = arith.constant 768 : index
    %c0_175 = arith.constant 0 : index
    %216 = vector.load %arg2[%c768, %c0_175] : memref<1152x128xbf16, #tpu.memory_space<vmem>>, vector<128x128xbf16>
    %cst_176 = arith.constant dense<0.000000e+00> : vector<64x128xf32>
    %217 = tpu.matmul %215, %216, %cst_176 {dimension_numbers = #tpu.dot_dimension_numbers<[1], [0], [0], [1], [0, 0, 1, 1], [], []>} : vector<64x128xbf16>, vector<128x128xbf16>, vector<64x128xf32> -> vector<64x128xf32>
    %218 = arith.addf %208, %217 : vector<64x128xf32>
    %219 = arith.extf %147 : vector<64x128xbf16> to vector<64x128xf32>
    %cst_177 = arith.constant 0.000000e+00 : f32
    %220 = vector.broadcast %cst_177 : f32 to vector<8x128xf32>
    %221 = vector.extract_strided_slice %219 {offsets = [8, 0], sizes = [56, 128], strides = [1, 1]} : vector<64x128xf32> to vector<56x128xf32>
    %222 = tpu.concatenate %221, %220 in 0 : vector<56x128xf32>, vector<8x128xf32> -> vector<64x128xf32>
    %223 = arith.truncf %222 : vector<64x128xf32> to vector<64x128xbf16>
    %224 = arith.select %158, %223, %159 : vector<64x128xi1>, vector<64x128xbf16>
    %c896 = arith.constant 896 : index
    %c0_178 = arith.constant 0 : index
    %225 = vector.load %arg2[%c896, %c0_178] : memref<1152x128xbf16, #tpu.memory_space<vmem>>, vector<128x128xbf16>
    %cst_179 = arith.constant dense<0.000000e+00> : vector<64x128xf32>
    %226 = tpu.matmul %224, %225, %cst_179 {dimension_numbers = #tpu.dot_dimension_numbers<[1], [0], [0], [1], [0, 0, 1, 1], [], []>} : vector<64x128xbf16>, vector<128x128xbf16>, vector<64x128xf32> -> vector<64x128xf32>
    %227 = arith.addf %218, %226 : vector<64x128xf32>
    %228 = arith.extf %147 : vector<64x128xbf16> to vector<64x128xf32>
    %cst_180 = arith.constant 0.000000e+00 : f32
    %229 = vector.broadcast %cst_180 : f32 to vector<9x128xf32>
    %230 = vector.extract_strided_slice %228 {offsets = [9, 0], sizes = [55, 128], strides = [1, 1]} : vector<64x128xf32> to vector<55x128xf32>
    %231 = tpu.concatenate %230, %229 in 0 : vector<55x128xf32>, vector<9x128xf32> -> vector<64x128xf32>
    %232 = arith.truncf %231 : vector<64x128xf32> to vector<64x128xbf16>
    %233 = arith.andi %158, %154 : vector<64x128xi1>
    %234 = arith.select %233, %232, %159 : vector<64x128xi1>, vector<64x128xbf16>
    %c1024 = arith.constant 1024 : index
    %c0_181 = arith.constant 0 : index
    %235 = vector.load %arg2[%c1024, %c0_181] : memref<1152x128xbf16, #tpu.memory_space<vmem>>, vector<128x128xbf16>
    %cst_182 = arith.constant dense<0.000000e+00> : vector<64x128xf32>
    %236 = tpu.matmul %234, %235, %cst_182 {dimension_numbers = #tpu.dot_dimension_numbers<[1], [0], [0], [1], [0, 0, 1, 1], [], []>} : vector<64x128xbf16>, vector<128x128xbf16>, vector<64x128xf32> -> vector<64x128xf32>
    %237 = arith.addf %227, %236 : vector<64x128xf32>
    %c0_183 = arith.constant 0 : index
    %c0_184 = arith.constant 0 : index
    %238 = vector.load %arg3[%c0_183, %c0_184] : memref<1x128xf32, #tpu.memory_space<vmem>>, vector<1x128xf32>
    %239 = vector.broadcast %238 : vector<1x128xf32> to vector<64x128xf32>
    %240 = arith.addf %237, %239 : vector<64x128xf32>
    %241 = arith.truncf %240 : vector<64x128xf32> to vector<64x128xbf16>
    %c0_185 = arith.constant 0 : index
    %c0_186 = arith.constant 0 : index
    %c0_187 = arith.constant 0 : index
    %242 = vector.load %arg4[%c0_185, %c0_186, %c0_187] : memref<1x64x128xbf16, #tpu.memory_space<vmem>>, vector<1x64x128xbf16>
    %243 = vector.shape_cast %242 : vector<1x64x128xbf16> to vector<64x128xbf16>
    %244 = vector.shape_cast %241 : vector<64x128xbf16> to vector<1x64x128xbf16>
    tpu.vector_store %arg4[%c0_185, %c0_186, %c0_187], %244 {strides = array<i32>} : memref<1x64x128xbf16, #tpu.memory_space<vmem>>, vector<1x64x128xbf16>,
    return
  }
  func.func @transform_0(%arg0: i32) -> (i32, i32, i32) {
    %c0_i32 = arith.constant 0 : i32
    %c0_i32_0 = arith.constant 0 : i32
    %c0_i32_1 = arith.constant 0 : i32
    return %arg0, %c0_i32, %c0_i32_0 : i32, i32, i32
  }
  func.func @transform_1(%arg0: i32) -> (i32, i32) {
    %c0_i32 = arith.constant 0 : i32
    %c0_i32_0 = arith.constant 0 : i32
    %c0_i32_1 = arith.constant 0 : i32
    return %c0_i32, %c0_i32_0 : i32, i32
  }
  func.func @transform_2(%arg0: i32) -> (i32, i32) {
    %c0_i32 = arith.constant 0 : i32
    %c0_i32_0 = arith.constant 0 : i32
    %c0_i32_1 = arith.constant 0 : i32
    return %c0_i32, %c0_i32_0 : i32, i32
  }
  func.func @transform_3(%arg0: i32) -> (i32, i32, i32) {
    %c0_i32 = arith.constant 0 : i32
    %c0_i32_0 = arith.constant 0 : i32
    %c0_i32_1 = arith.constant 0 : i32
    return %arg0, %c0_i32, %c0_i32_0 : i32, i32, i32
  }
}

</mosaic_0001>

<llo_original>
// kernel: tpu_custom_call.1
$region0: #{tpu_custom_call.1}
  #allocation0 [shape = 'u32[]', space=smem, size = 0x4, offset = 0x4, fixed_abs, tag = 'smem constant byte address 0x4 - core index']
  #allocation1 [shape = 'u32[72,128]{1,0:T(1,128)}', space=vmem, size = 0x9000, scoped, tag = 'internal scratch']
  #allocation2 [shape = 'f32[64,128]{1,0:T(8,128)}', space=vmem, size = 0x8000, scoped, tag = 'scratch operand']
  #allocation3 [shape = 'f32[16,128]{1,0:T(8,128)}', space=vmem, size = 0x2000, scoped, tag = 'scratch operand']
  %s0 = inlined_call_operand.hbm [shape: f32[64,128], index: 0, kind: input, shape index: {}]
  %s1 = inlined_call_operand.hbm [shape: f32[16,128], index: 1, kind: output, shape index: {}]
  %s2 = sld [smem:[#allocation0]]
  $region18: #{tpu_custom_call.1} parent=0
    _
  %s4 = ssub.s32 1, %s2
  %s5 = scalar_select 0, %s4, %s2
  $region1: #{tpu_custom_call.1} parent=0
    #allocation4 [shape = 'u8[32768]{0}', space=vmem, size = 0x8000, scoped, tag = 'input window, operand 0, single buffered']
    #allocation5 [shape = 's32[1]{0}', space=sflag, size = 0x4, scoped, tag = 'scoped memory for tpu_custom_call.1']
    #allocation6 [shape = 's32[1]{0}', space=sflag, size = 0x4, scoped, tag = 'scoped memory for tpu_custom_call.1']
    #allocation7 [shape = 'u8[8192]{0}', space=vmem, size = 0x2000, scoped, tag = 'output window, operand 0, single buffered']
    %6 = vsyncpa [#allocation5], 0
    %7 = vsyncpa [#allocation6], 0
    // Predicated region
    $region2: #{tpu_custom_call.1} parent=1 // pred_check
      _
    $region3: #{tpu_custom_call.1} parent=1 // pred_check_branch
      %9 = sbr.rel (0) target = $region5
    $region4: #{tpu_custom_call.1} parent=1 // pred_region
      %11 = vsyncadd [#allocation5], 0
      %s12 = sshll.u32 %s0, 4
      %s13 = int_to_ptr.hbm [resolvable:$true] %s12
      %s14 = sshll.u32 [#allocation4], 4
      %s15 = int_to_ptr.vmem [resolvable:$true] %s14
      %20 = dma.hbm_to_vmem [thread:$0]  %s13, 1024, %s15, [#allocation5], 128, 128, 8
    $region5: #{tpu_custom_call.1} parent=1 // pred_fallthru
      _
    // Predicated region
    $region6: #{tpu_custom_call.1} parent=1 // pred_check
      _
    $region7: #{tpu_custom_call.1} parent=1 // pred_check_branch
      %22 = sbr.rel (0) target = $region9
    $region8: #{tpu_custom_call.1} parent=1 // pred_region
      %24 = dma.done [#allocation5], 1024
    $region9: #{tpu_custom_call.1} parent=1 // pred_fallthru
      _
    %v25 = vld [vmem:[#allocation4] sm:$0xff]
    %v26 = vld [vmem:[#allocation4 + $0x8] sm:$0xff]
    %v27 = vld [vmem:[#allocation4 + $0x10] sm:$0xff]
    %v28 = vld [vmem:[#allocation4 + $0x18] sm:$0xff]
    %v29 = vld [vmem:[#allocation4 + $0x20] sm:$0xff]
    %v30 = vld [vmem:[#allocation4 + $0x28] sm:$0xff]
    %v31 = vld [vmem:[#allocation4 + $0x30] sm:$0xff]
    %v32 = vld [vmem:[#allocation4 + $0x38] sm:$0xff]
    %33 = vst [vmem:[#allocation2] sm:$0xff] %v25
    %34 = vst [vmem:[#allocation2 + $0x8] sm:$0xff] %v26
    %35 = vst [vmem:[#allocation2 + $0x10] sm:$0xff] %v27
    %36 = vst [vmem:[#allocation2 + $0x18] sm:$0xff] %v28
    %37 = vst [vmem:[#allocation2 + $0x20] sm:$0xff] %v29
    %38 = vst [vmem:[#allocation2 + $0x28] sm:$0xff] %v30
    %39 = vst [vmem:[#allocation2 + $0x30] sm:$0xff] %v31
    %40 = vst [vmem:[#allocation2 + $0x38] sm:$0xff] %v32
    %v41 = vld [vmem:[#allocation2] ss:$2 sm:$0x3]
    %42 = vst [vmem:[#allocation3] sm:$0x3] %v41
    %s43 = scalar_lea.vmem [#allocation2], 8
    %v44 = vld [vmem:[%s43] ss:$2 sm:$0x3]
    %45 = vst [vmem:[#allocation3 + $0x2] sm:$0x3] %v44
    %s46 = scalar_lea.vmem [#allocation2], 16
    %v47 = vld [vmem:[%s46] ss:$2 sm:$0x3]
    %48 = vst [vmem:[#allocation3 + $0x4] sm:$0x3] %v47
    %s49 = scalar_lea.vmem [#allocation2], 24
    %v50 = vld [vmem:[%s49] ss:$2 sm:$0x3]
    %51 = vst [vmem:[#allocation3 + $0x6] sm:$0x3] %v50
    %s52 = scalar_lea.vmem [#allocation2], 32
    %v53 = vld [vmem:[%s52] ss:$2 sm:$0x3]
    %54 = vst [vmem:[#allocation3 + $0x8] sm:$0x3] %v53
    %s55 = scalar_lea.vmem [#allocation2], 40
    %v56 = vld [vmem:[%s55] ss:$2 sm:$0x3]
    %57 = vst [vmem:[#allocation3 + $0xa] sm:$0x3] %v56
    %s58 = scalar_lea.vmem [#allocation2], 48
    %v59 = vld [vmem:[%s58] ss:$2 sm:$0x3]
    %60 = vst [vmem:[#allocation3 + $0xc] sm:$0x3] %v59
    %s61 = scalar_lea.vmem [#allocation2], 56
    %v62 = vld [vmem:[%s61] ss:$2 sm:$0x3]
    %63 = vst [vmem:[#allocation3 + $0xe] sm:$0x3] %v62
    %v64 = vld [vmem:[#allocation3] sm:$0xff]
    %v65 = vld [vmem:[#allocation3 + $0x8] sm:$0xff]
    %66 = vst [vmem:[#allocation7] sm:$0xff] %v64
    %67 = vst [vmem:[#allocation7 + $0x8] sm:$0xff] %v65
    // Predicated region
    $region10: #{tpu_custom_call.1} parent=1 // pred_check
      _
    $region11: #{tpu_custom_call.1} parent=1 // pred_check_branch
      %69 = sbr.rel (0) target = $region13
    $region12: #{tpu_custom_call.1} parent=1 // pred_region
      %71 = vsyncadd [#allocation6], 0
      %s72 = sshll.u32 [#allocation7], 4
      %s73 = int_to_ptr.vmem [resolvable:$true] %s72
      %s74 = sshll.u32 %s1, 4
      %s75 = int_to_ptr.hbm [resolvable:$true] %s74
      %80 = dma.vmem_to_hbm [thread:$0]  %s73, 256, %s75, [#allocation6], 128, 128, 8
    $region13: #{tpu_custom_call.1} parent=1 // pred_fallthru
      _
    // Predicated region
    $region14: #{tpu_custom_call.1} parent=1 // pred_check
      _
    $region15: #{tpu_custom_call.1} parent=1 // pred_check_branch
      %82 = sbr.rel (0) target = $region17
    $region16: #{tpu_custom_call.1} parent=1 // pred_region
      %84 = dma.done [#allocation6], 256
    $region17: #{tpu_custom_call.1} parent=1 // pred_fallthru
      _
    %85 = vsyncpa [#allocation5], 1
    %86 = vsyncpa [#allocation6], 1

// kernel: tpu_custom_call.1
$region0: #{tpu_custom_call.1}
  #allocation0 [shape = 'u32[]', space=smem, size = 0x4, offset = 0x4, fixed_abs, tag = 'smem constant byte address 0x4 - core index']
  #allocation1 [shape = 'u32[72,128]{1,0:T(1,128)}', space=vmem, size = 0x9000, scoped, tag = 'internal scratch']
  #allocation2 [shape = 'f32[64,128]{1,0:T(8,128)}', space=vmem, size = 0x8000, scoped, tag = 'scratch operand']
  #allocation3 [shape = 'f32[16,128]{1,0:T(8,128)}', space=vmem, size = 0x2000, scoped, tag = 'scratch operand']
  %s0 = inlined_call_operand.hbm [shape: f32[64,128], index: 0, kind: input, shape index: {}]
  %s1 = inlined_call_operand.hbm [shape: f32[16,128], index: 1, kind: output, shape index: {}]
  %s2 = sld [smem:[#allocation0]]
  $region18: #{tpu_custom_call.1} parent=0
    _
  %s4 = ssub.s32 1, %s2
  %s5 = scalar_select 0, %s4, %s2
  $region1: #{tpu_custom_call.1} parent=0
    #allocation4 [shape = 'u8[32768]{0}', space=vmem, size = 0x8000, scoped, tag = 'input window, operand 0, single buffered']
    #allocation5 [shape = 's32[1]{0}', space=sflag, size = 0x4, scoped, tag = 'scoped memory for tpu_custom_call.1']
    #allocation6 [shape = 's32[1]{0}', space=sflag, size = 0x4, scoped, tag = 'scoped memory for tpu_custom_call.1']
    #allocation7 [shape = 'u8[8192]{0}', space=vmem, size = 0x2000, scoped, tag = 'output window, operand 0, single buffered']
    %6 = vsyncpa [#allocation5], 0
    %7 = vsyncpa [#allocation6], 0
    // Predicated region
    $region2: #{tpu_custom_call.1} parent=1 // pred_check
      _
    $region3: #{tpu_custom_call.1} parent=1 // pred_check_branch
      %9 = sbr.rel (0) target = $region5
    $region4: #{tpu_custom_call.1} parent=1 // pred_region
      %11 = vsyncadd [#allocation5], 0
      %s12 = sshll.u32 %s0, 4
      %s13 = int_to_ptr.hbm [resolvable:$true] %s12
      %s14 = sshll.u32 [#allocation4], 4
      %s15 = int_to_ptr.vmem [resolvable:$true] %s14
      %20 = dma.hbm_to_vmem [thread:$0]  %s13, 1024, %s15, [#allocation5], 128, 128, 8
    $region5: #{tpu_custom_call.1} parent=1 // pred_fallthru
      _
    // Predicated region
    $region6: #{tpu_custom_call.1} parent=1 // pred_check
      _
    $region7: #{tpu_custom_call.1} parent=1 // pred_check_branch
      %22 = sbr.rel (0) target = $region9
    $region8: #{tpu_custom_call.1} parent=1 // pred_region
      %24 = dma.done [#allocation5], 1024
    $region9: #{tpu_custom_call.1} parent=1 // pred_fallthru
      _
    %v25 = vld [vmem:[#allocation4] sm:$0xff]
    %v26 = vld [vmem:[#allocation4 + $0x8] sm:$0xff]
    %v27 = vld [vmem:[#allocation4 + $0x10] sm:$0xff]
    %v28 = vld [vmem:[#allocation4 + $0x18] sm:$0xff]
    %v29 = vld [vmem:[#allocation4 + $0x20] sm:$0xff]
    %v30 = vld [vmem:[#allocation4 + $0x28] sm:$0xff]
    %v31 = vld [vmem:[#allocation4 + $0x30] sm:$0xff]
    %v32 = vld [vmem:[#allocation4 + $0x38] sm:$0xff]
    %33 = vst [vmem:[#allocation2] sm:$0xff] %v25
    %34 = vst [vmem:[#allocation2 + $0x8] sm:$0xff] %v26
    %35 = vst [vmem:[#allocation2 + $0x10] sm:$0xff] %v27
    %36 = vst [vmem:[#allocation2 + $0x18] sm:$0xff] %v28
    %37 = vst [vmem:[#allocation2 + $0x20] sm:$0xff] %v29
    %38 = vst [vmem:[#allocation2 + $0x28] sm:$0xff] %v30
    %39 = vst [vmem:[#allocation2 + $0x30] sm:$0xff] %v31
    %40 = vst [vmem:[#allocation2 + $0x38] sm:$0xff] %v32
    %v41 = vld [vmem:[#allocation2] sm:$0x1]
    %42 = vst [vmem:[#allocation3] sm:$0x1] %v41
    %v43 = vld [vmem:[#allocation2 + $0x2] sm:$0x1]
    %44 = vst [vmem:[#allocation3 + $0x1] sm:$0x1] %v43
    %v45 = vld [vmem:[#allocation2 + $0x8] sm:$0x1]
    %46 = vst [vmem:[#allocation3 + $0x2] sm:$0x1] %v45
    %v47 = vld [vmem:[#allocation2 + $0xa] sm:$0x1]
    %48 = vst [vmem:[#allocation3 + $0x3] sm:$0x1] %v47
    %v49 = vld [vmem:[#allocation2 + $0x10] sm:$0x1]
    %50 = vst [vmem:[#allocation3 + $0x4] sm:$0x1] %v49
    %v51 = vld [vmem:[#allocation2 + $0x12] sm:$0x1]
    %52 = vst [vmem:[#allocation3 + $0x5] sm:$0x1] %v51
    %v53 = vld [vmem:[#allocation2 + $0x18] sm:$0x1]
    %54 = vst [vmem:[#allocation3 + $0x6] sm:$0x1] %v53
    %v55 = vld [vmem:[#allocation2 + $0x1a] sm:$0x1]
    %56 = vst [vmem:[#allocation3 + $0x7] sm:$0x1] %v55
    %v57 = vld [vmem:[#allocation2 + $0x20] sm:$0x1]
    %58 = vst [vmem:[#allocation3 + $0x8] sm:$0x1] %v57
    %v59 = vld [vmem:[#allocation2 + $0x22] sm:$0x1]
    %60 = vst [vmem:[#allocation3 + $0x9] sm:$0x1] %v59
    %v61 = vld [vmem:[#allocation2 + $0x28] sm:$0x1]
    %62 = vst [vmem:[#allocation3 + $0xa] sm:$0x1] %v61
    %v63 = vld [vmem:[#allocation2 + $0x2a] sm:$0x1]
    %64 = vst [vmem:[#allocation3 + $0xb] sm:$0x1] %v63
    %v65 = vld [vmem:[#allocation2 + $0x30] sm:$0x1]
    %66 = vst [vmem:[#allocation3 + $0xc] sm:$0x1] %v65
    %v67 = vld [vmem:[#allocation2 + $0x32] sm:$0x1]
    %68 = vst [vmem:[#allocation3 + $0xd] sm:$0x1] %v67
    %v69 = vld [vmem:[#allocation2 + $0x38] sm:$0x1]
    %70 = vst [vmem:[#allocation3 + $0xe] sm:$0x1] %v69
    %v71 = vld [vmem:[#allocation2 + $0x3a] sm:$0x1]
    %72 = vst [vmem:[#allocation3 + $0xf] sm:$0x1] %v71
    %v73 = vld [vmem:[#allocation3] sm:$0xff]
    %v74 = vld [vmem:[#allocation3 + $0x8] sm:$0xff]
    %75 = vst [vmem:[#allocation7] sm:$0xff] %v73
    %76 = vst [vmem:[#allocation7 + $0x8] sm:$0xff] %v74
    // Predicated region
    $region10: #{tpu_custom_call.1} parent=1 // pred_check
      _
    $region11: #{tpu_custom_call.1} parent=1 // pred_check_branch
      %78 = sbr.rel (0) target = $region13
    $region12: #{tpu_custom_call.1} parent=1 // pred_region
      %80 = vsyncadd [#allocation6], 0
      %s81 = sshll.u32 [#allocation7], 4
      %s82 = int_to_ptr.vmem [resolvable:$true] %s81
      %s83 = sshll.u32 %s1, 4
      %s84 = int_to_ptr.hbm [resolvable:$true] %s83
      %89 = dma.vmem_to_hbm [thread:$0]  %s82, 256, %s84, [#allocation6], 128, 128, 8
    $region13: #{tpu_custom_call.1} parent=1 // pred_fallthru
      _
    // Predicated region
    $region14: #{tpu_custom_call.1} parent=1 // pred_check
      _
    $region15: #{tpu_custom_call.1} parent=1 // pred_check_branch
      %91 = sbr.rel (0) target = $region17
    $region16: #{tpu_custom_call.1} parent=1 // pred_region
      %93 = dma.done [#allocation6], 256
    $region17: #{tpu_custom_call.1} parent=1 // pred_fallthru
      _
    %94 = vsyncpa [#allocation5], 1
    %95 = vsyncpa [#allocation6], 1

// kernel: tpu_custom_call.1
$region0: #{tpu_custom_call.1}
  #allocation0 [shape = 'u32[]', space=smem, size = 0x4, offset = 0x4, fixed_abs, tag = 'smem constant byte address 0x4 - core index']
  #allocation1 [shape = 'u32[72,128]{1,0:T(1,128)}', space=vmem, size = 0x9000, scoped, tag = 'internal scratch']
  %s0 = inlined_call_operand.hbm [shape: bf16[16,128], index: 0, kind: input, shape index: {}]
  %s1 = inlined_call_operand.hbm [shape: bf16[384,128], index: 1, kind: input, shape index: {}]
  %s2 = inlined_call_operand.hbm [shape: f32[16,128], index: 2, kind: output, shape index: {}]
  %s3 = sld [smem:[#allocation0]]
  $region26: #{tpu_custom_call.1} parent=0
    _
  %s5 = ssub.s32 1, %s3
  %s6 = scalar_select 0, %s5, %s3
  $region1: #{tpu_custom_call.1} parent=0
    #allocation2 [shape = 'u8[4096]{0}', space=vmem, size = 0x1000, scoped, tag = 'input window, operand 0, single buffered']
    #allocation3 [shape = 's32[1]{0}', space=sflag, size = 0x4, scoped, tag = 'scoped memory for tpu_custom_call.1']
    #allocation4 [shape = 's32[1]{0}', space=sflag, size = 0x4, scoped, tag = 'scoped memory for tpu_custom_call.1']
    #allocation5 [shape = 'u8[98304]{0}', space=vmem, size = 0x18000, scoped, tag = 'input window, operand 1, single buffered']
    #allocation6 [shape = 's32[1]{0}', space=sflag, size = 0x4, scoped, tag = 'scoped memory for tpu_custom_call.1']
    #allocation7 [shape = 'u8[8192]{0}', space=vmem, size = 0x2000, scoped, tag = 'output window, operand 0, single buffered']
    %7 = vsyncpa [#allocation3], 0
    %8 = vsyncpa [#allocation6], 0
    %9 = vsyncpa [#allocation4], 0
    // Predicated region
    $region2: #{tpu_custom_call.1} parent=1 // pred_check
      _
    $region3: #{tpu_custom_call.1} parent=1 // pred_check_branch
      %11 = sbr.rel (0) target = $region5
    $region4: #{tpu_custom_call.1} parent=1 // pred_region
      %13 = vsyncadd [#allocation3], 0
      %s14 = sshll.u32 %s0, 4
      %s15 = int_to_ptr.hbm [resolvable:$true] %s14
      %s16 = sshll.u32 [#allocation2], 4
      %s17 = int_to_ptr.vmem [resolvable:$true] %s16
      %22 = dma.hbm_to_vmem [thread:$0]  %s15, 128, %s17, [#allocation3], 64, 64, 4
    $region5: #{tpu_custom_call.1} parent=1 // pred_fallthru
      _
    // Predicated region
    $region6: #{tpu_custom_call.1} parent=1 // pred_check
      _
    $region7: #{tpu_custom_call.1} parent=1 // pred_check_branch
      %24 = sbr.rel (0) target = $region9
    $region8: #{tpu_custom_call.1} parent=1 // pred_region
      %26 = vsyncadd [#allocation6], 0
      %s27 = sshll.u32 %s1, 4
      %s28 = int_to_ptr.hbm [resolvable:$true] %s27
      %s29 = sshll.u32 [#allocation5], 4
      %s30 = int_to_ptr.vmem [resolvable:$true] %s29
      %35 = dma.hbm_to_vmem [thread:$0]  %s28, 3072, %s30, [#allocation6], 64, 64, 4
    $region9: #{tpu_custom_call.1} parent=1 // pred_fallthru
      _
    // Predicated region
    $region10: #{tpu_custom_call.1} parent=1 // pred_check
      _
    $region11: #{tpu_custom_call.1} parent=1 // pred_check_branch
      %37 = sbr.rel (0) target = $region13
    $region12: #{tpu_custom_call.1} parent=1 // pred_region
      %39 = dma.done [#allocation3], 128
    $region13: #{tpu_custom_call.1} parent=1 // pred_fallthru
      _
    // Predicated region
    $region14: #{tpu_custom_call.1} parent=1 // pred_check
      _
    $region15: #{tpu_custom_call.1} parent=1 // pred_check_branch
      %41 = sbr.rel (0) target = $region17
    $region16: #{tpu_custom_call.1} parent=1 // pred_region
      %43 = dma.done [#allocation6], 3072
    $region17: #{tpu_custom_call.1} parent=1 // pred_fallthru
      _
    %v44 = vld [vmem:[#allocation2] sm:$0xf]
    %v45 = vld [vmem:[#allocation2 + $0x4] sm:$0xf]
    %v46 = vunpack.c.l.bf16 %v44
    %v47 = vunpack.c.l.bf16 %v45
    %v48 = vadd.f32 %v46, %v46
    %v49 = vadd.f32 %v47, %v47
    %v50 = vpack.c.bf16 %v48, %v48
    %v51 = vpack.c.bf16 %v49, %v49
    %v52 = vunpack.c.l.bf16 %v50
    %v53 = vunpack.c.l.bf16 %v51
    %v54 = vadd.f32 %v52, %v46
    %v55 = vadd.f32 %v53, %v47
    %v56 = vpack.c.bf16 %v54, %v54
    %v57 = vpack.c.bf16 %v55, %v55
    %v60 = vunpack.c.l.b16 %v44
    %v61 = vunpack.c.l.b16 %v45
    %v62 = vpack.c.b16 %v61, %v60
    %v66 = vunpack.c.l.b16 %v50
    %v67 = vunpack.c.l.b16 %v51
    %v68 = vpack.c.b16 %v67, %v66
    %v72 = vunpack.c.l.b16 %v56
    %v73 = vunpack.c.l.b16 %v57
    %v74 = vpack.c.b16 %v73, %v72
    %v76 = vld [vmem:[#allocation5] sm:$0xf]
    %v77 = vld [vmem:[#allocation5 + $0x4] sm:$0xf]
    %v78 = vld [vmem:[#allocation5 + $0x8] sm:$0xf]
    %v79 = vld [vmem:[#allocation5 + $0xc] sm:$0xf]
    %v80 = vld [vmem:[#allocation5 + $0x10] sm:$0xf]
    %v81 = vld [vmem:[#allocation5 + $0x14] sm:$0xf]
    %v82 = vld [vmem:[#allocation5 + $0x18] sm:$0xf]
    %v83 = vld [vmem:[#allocation5 + $0x1c] sm:$0xf]
    %v84 = vld [vmem:[#allocation5 + $0x20] sm:$0xf]
    %v85 = vld [vmem:[#allocation5 + $0x24] sm:$0xf]
    %v86 = vld [vmem:[#allocation5 + $0x28] sm:$0xf]
    %v87 = vld [vmem:[#allocation5 + $0x2c] sm:$0xf]
    %v88 = vld [vmem:[#allocation5 + $0x30] sm:$0xf]
    %v89 = vld [vmem:[#allocation5 + $0x34] sm:$0xf]
    %v90 = vld [vmem:[#allocation5 + $0x38] sm:$0xf]
    %v91 = vld [vmem:[#allocation5 + $0x3c] sm:$0xf]
    %v92 = vld [vmem:[#allocation5 + $0x40] sm:$0xf]
    %v93 = vld [vmem:[#allocation5 + $0x44] sm:$0xf]
    %v94 = vld [vmem:[#allocation5 + $0x48] sm:$0xf]
    %v95 = vld [vmem:[#allocation5 + $0x4c] sm:$0xf]
    %v96 = vld [vmem:[#allocation5 + $0x50] sm:$0xf]
    %v97 = vld [vmem:[#allocation5 + $0x54] sm:$0xf]
    %v98 = vld [vmem:[#allocation5 + $0x58] sm:$0xf]
    %v99 = vld [vmem:[#allocation5 + $0x5c] sm:$0xf]
    %v100 = vld [vmem:[#allocation5 + $0x60] sm:$0xf]
    %v101 = vld [vmem:[#allocation5 + $0x64] sm:$0xf]
    %v102 = vld [vmem:[#allocation5 + $0x68] sm:$0xf]
    %v103 = vld [vmem:[#allocation5 + $0x6c] sm:$0xf]
    %v104 = vld [vmem:[#allocation5 + $0x70] sm:$0xf]
    %v105 = vld [vmem:[#allocation5 + $0x74] sm:$0xf]
    %v106 = vld [vmem:[#allocation5 + $0x78] sm:$0xf]
    %v107 = vld [vmem:[#allocation5 + $0x7c] sm:$0xf]
    %v108 = vld [vmem:[#allocation5 + $0x80] sm:$0xf]
    %v109 = vld [vmem:[#allocation5 + $0x84] sm:$0xf]
    %v110 = vld [vmem:[#allocation5 + $0x88] sm:$0xf]
    %v111 = vld [vmem:[#allocation5 + $0x8c] sm:$0xf]
    %v112 = vld [vmem:[#allocation5 + $0x90] sm:$0xf]
    %v113 = vld [vmem:[#allocation5 + $0x94] sm:$0xf]
    %v114 = vld [vmem:[#allocation5 + $0x98] sm:$0xf]
    %v115 = vld [vmem:[#allocation5 + $0x9c] sm:$0xf]
    %v116 = vld [vmem:[#allocation5 + $0xa0] sm:$0xf]
    %v117 = vld [vmem:[#allocation5 + $0xa4] sm:$0xf]
    %v118 = vld [vmem:[#allocation5 + $0xa8] sm:$0xf]
    %v119 = vld [vmem:[#allocation5 + $0xac] sm:$0xf]
    %v120 = vld [vmem:[#allocation5 + $0xb0] sm:$0xf]
    %v121 = vld [vmem:[#allocation5 + $0xb4] sm:$0xf]
    %v122 = vld [vmem:[#allocation5 + $0xb8] sm:$0xf]
    %v123 = vld [vmem:[#allocation5 + $0xbc] sm:$0xf]
    %v172 = vunpack.c.l.b16 %v76
    %v173 = vunpack.c.l.b16 %v77
    %v174 = vunpack.c.l.b16 %v78
    %v175 = vunpack.c.l.b16 %v79
    %v176 = vunpack.c.l.b16 %v80
    %v177 = vunpack.c.l.b16 %v81
    %v178 = vunpack.c.l.b16 %v82
    %v179 = vunpack.c.l.b16 %v83
    %v180 = vunpack.c.l.b16 %v84
    %v181 = vunpack.c.l.b16 %v85
    %v182 = vunpack.c.l.b16 %v86
    %v183 = vunpack.c.l.b16 %v87
    %v184 = vunpack.c.l.b16 %v88
    %v185 = vunpack.c.l.b16 %v89
    %v186 = vunpack.c.l.b16 %v90
    %v187 = vunpack.c.l.b16 %v91
    %v188 = vunpack.c.l.b16 %v92
    %v189 = vunpack.c.l.b16 %v93
    %v190 = vunpack.c.l.b16 %v94
    %v191 = vunpack.c.l.b16 %v95
    %v192 = vunpack.c.l.b16 %v96
    %v193 = vunpack.c.l.b16 %v97
    %v194 = vunpack.c.l.b16 %v98
    %v195 = vunpack.c.l.b16 %v99
    %v196 = vunpack.c.l.b16 %v100
    %v197 = vunpack.c.l.b16 %v101
    %v198 = vunpack.c.l.b16 %v102
    %v199 = vunpack.c.l.b16 %v103
    %v200 = vunpack.c.l.b16 %v104
    %v201 = vunpack.c.l.b16 %v105
    %v202 = vunpack.c.l.b16 %v106
    %v203 = vunpack.c.l.b16 %v107
    %v204 = vunpack.c.l.b16 %v108
    %v205 = vunpack.c.l.b16 %v109
    %v206 = vunpack.c.l.b16 %v110
    %v207 = vunpack.c.l.b16 %v111
    %v208 = vunpack.c.l.b16 %v112
    %v209 = vunpack.c.l.b16 %v113
    %v210 = vunpack.c.l.b16 %v114
    %v211 = vunpack.c.l.b16 %v115
    %v212 = vunpack.c.l.b16 %v116
    %v213 = vunpack.c.l.b16 %v117
    %v214 = vunpack.c.l.b16 %v118
    %v215 = vunpack.c.l.b16 %v119
    %v216 = vunpack.c.l.b16 %v120
    %v217 = vunpack.c.l.b16 %v121
    %v218 = vunpack.c.l.b16 %v122
    %v219 = vunpack.c.l.b16 %v123
    %v220 = vpack.c.b16 %v173, %v172
    %v221 = vpack.c.b16 %v175, %v174
    %v222 = vpack.c.b16 %v177, %v176
    %v223 = vpack.c.b16 %v179, %v178
    %v224 = vpack.c.b16 %v181, %v180
    %v225 = vpack.c.b16 %v183, %v182
    %v226 = vpack.c.b16 %v185, %v184
    %v227 = vpack.c.b16 %v187, %v186
    %v228 = vpack.c.b16 %v189, %v188
    %v229 = vpack.c.b16 %v191, %v190
    %v230 = vpack.c.b16 %v193, %v192
    %v231 = vpack.c.b16 %v195, %v194
    %v232 = vpack.c.b16 %v197, %v196
    %v233 = vpack.c.b16 %v199, %v198
    %v234 = vpack.c.b16 %v201, %v200
    %v235 = vpack.c.b16 %v203, %v202
    %v236 = vpack.c.b16 %v205, %v204
    %v237 = vpack.c.b16 %v207, %v206
    %v238 = vpack.c.b16 %v209, %v208
    %v239 = vpack.c.b16 %v211, %v210
    %v240 = vpack.c.b16 %v213, %v212
    %v241 = vpack.c.b16 %v215, %v214
    %v242 = vpack.c.b16 %v217, %v216
    %v243 = vpack.c.b16 %v219, %v218
    %268 = vmatpush.bf16.msra.mxu0 %v227
    %269 = vmatpush.bf16.msra.mxu0 %v226
    %270 = vmatpush.bf16.msra.mxu0 %v225
    %271 = vmatpush.bf16.msra.mxu0 %v224
    %272 = vmatpush.bf16.msra.mxu0 %v223
    %273 = vmatpush.bf16.msra.mxu0 %v222
    %274 = vmatpush.bf16.msra.mxu0 %v221
    %275 = vmatpush.bf16.msra.mxu0 %v220
    %276 = vmatmul.bf16.gmra.mxu0 %v62
    %v277 = vpop.f32.mrf.mxu0
    %v278 = vadd.f32 0.0, %v277
    %v279 = vpop.f32.mrf.mxu0
    %v280 = vadd.f32 0.0, %v279
    %281 = vdwg.mxu0
    %282 = vmatpush.bf16.msra.mxu0 %v235
    %283 = vmatpush.bf16.msra.mxu0 %v234
    %284 = vmatpush.bf16.msra.mxu0 %v233
    %285 = vmatpush.bf16.msra.mxu0 %v232
    %286 = vmatpush.bf16.msra.mxu0 %v231
    %287 = vmatpush.bf16.msra.mxu0 %v230
    %288 = vmatpush.bf16.msra.mxu0 %v229
    %289 = vmatpush.bf16.msra.mxu0 %v228
    %290 = vmatmul.bf16.gmra.mxu0 %v68
    %v291 = vpop.f32.mrf.mxu0
    %v292 = vadd.f32 %v278, %v291
    %v293 = vpop.f32.mrf.mxu0
    %v294 = vadd.f32 %v280, %v293
    %295 = vdwg.mxu0
    %296 = vmatpush.bf16.msra.mxu0 %v243
    %297 = vmatpush.bf16.msra.mxu0 %v242
    %298 = vmatpush.bf16.msra.mxu0 %v241
    %299 = vmatpush.bf16.msra.mxu0 %v240
    %300 = vmatpush.bf16.msra.mxu0 %v239
    %301 = vmatpush.bf16.msra.mxu0 %v238
    %302 = vmatpush.bf16.msra.mxu0 %v237
    %303 = vmatpush.bf16.msra.mxu0 %v236
    %304 = vmatmul.bf16.gmra.mxu0 %v74
    %v305 = vpop.f32.mrf.mxu0
    %v306 = vadd.f32 %v292, %v305
    %v307 = vpop.f32.mrf.mxu0
    %v308 = vadd.f32 %v294, %v307
    %309 = vdwg.mxu0
    %310 = vst [vmem:[#allocation7] sm:$0xff] %v306
    %311 = vst [vmem:[#allocation7 + $0x8] sm:$0xff] %v308
    // Predicated region
    $region18: #{tpu_custom_call.1} parent=1 // pred_check
      _
    $region19: #{tpu_custom_call.1} parent=1 // pred_check_branch
      %313 = sbr.rel (0) target = $region21
    $region20: #{tpu_custom_call.1} parent=1 // pred_region
      %315 = vsyncadd [#allocation4], 0
      %s316 = sshll.u32 [#allocation7], 4
      %s317 = int_to_ptr.vmem [resolvable:$true] %s316
      %s318 = sshll.u32 %s2, 4
      %s319 = int_to_ptr.hbm [resolvable:$true] %s318
      %324 = dma.vmem_to_hbm [thread:$0]  %s317, 256, %s319, [#allocation4], 128, 128, 8
    $region21: #{tpu_custom_call.1} parent=1 // pred_fallthru
      _
    // Predicated region
    $region22: #{tpu_custom_call.1} parent=1 // pred_check
      _
    $region23: #{tpu_custom_call.1} parent=1 // pred_check_branch
      %326 = sbr.rel (0) target = $region25
    $region24: #{tpu_custom_call.1} parent=1 // pred_region
      %328 = dma.done [#allocation4], 256
    $region25: #{tpu_custom_call.1} parent=1 // pred_fallthru
      _
    %329 = vsyncpa [#allocation3], 1
    %330 = vsyncpa [#allocation6], 1
    %331 = vsyncpa [#allocation4], 1

// kernel: tpu_custom_call.1
$region0: #{tpu_custom_call.1}
  #allocation0 [shape = 'u32[]', space=smem, size = 0x4, offset = 0x4, fixed_abs, tag = 'smem constant byte address 0x4 - core index']
  #allocation1 [shape = 'u32[72,128]{1,0:T(1,128)}', space=vmem, size = 0x9000, scoped, tag = 'internal scratch']
  %s0 = inlined_call_operand.hbm [shape: f32[8,128], index: 0, kind: input, shape index: {}]
  %s1 = inlined_call_operand.hbm [shape: f32[2,8,128], index: 1, kind: output, shape index: {}]
  %s2 = sld [smem:[#allocation0]]
  $region41: #{tpu_custom_call.1} parent=0
    _
  %s4 = ssub.s32 1, %s2
  %s5 = scalar_select 0, %s4, %s2
  $region1: #{tpu_custom_call.1} parent=0
    #allocation2 [shape = 'u8[4096]{0}', space=vmem, size = 0x1000, scoped, tag = 'input window, operand 0, single buffered']
    #allocation3 [shape = 's32[2]{0}', space=sflag, size = 0x8, scoped, tag = 'scoped memory for tpu_custom_call.1']
    #allocation4 [shape = 's32[2]{0}', space=sflag, size = 0x8, scoped, tag = 'scoped memory for tpu_custom_call.1']
    #allocation5 [shape = 'u8[8192]{0}', space=vmem, size = 0x2000, scoped, tag = 'output window, operand 0']
    %6 = vsyncpa [#allocation3], 0
    %7 = vsyncpa [#allocation4], 0
    %s8 = scalar_lea.sflag [#allocation4], 1
    %9 = vsyncpa %s8, 0
    loop: start=0, step=1, limit=4
    $region2: #{tpu_custom_call.1} parent=1 // loop_pre_header
      _
    $region3: #{tpu_custom_call.1} parent=1 // loop_header
      %s11 = sphi 0, %s15
      %p12 = scmp.ge.s32.totalorder %s11, 4
      %s19 = sphi 0, %s19
      %s21 = sphi 0, %s19
      %s22 = sphi 0, %s21
      %s36 = sphi 0, %s22
      %s42 = sphi 0, %s44
      %s45 = sphi 0, %s42
      %s46 = sphi 0, %s45
      %s62 = sphi 0, %s46
    $region4: #{tpu_custom_call.1} parent=1 // loop_header_branch
      %14 = sbr.rel (%p12) target = $region8
    $region5: #{tpu_custom_call.1} parent=1 // loop_body
      %s16 = ssub.s32 %s11, 1
      %s17 = ssub.s32 %s11, 2
      %s18 = sadd.s32 %s11, 1
      %s20 = sadd.s32 %s19, 1
      %p23 = scmp.eq.s32.totalorder %s11, 1
      %p24 = scmp.ne.s32.totalorder %s19, %s21
      %p25 = scmp.eq.s32.totalorder %s11, 0
      %p26 = por %p24, %p25
      %p27 = scmp.ne.s32.totalorder %s19, %s21
      %p28 = scmp.eq.s32.totalorder %s16, 1
      %p29 = por %p27, %p28
      %p30 = scmp.ne.s32.totalorder %s21, %s22
      %p31 = scmp.eq.s32.totalorder %s16, 0
      %p32 = por %p30, %p31
      %p33 = scmp.ne.s32.totalorder %s21, %s22
      %p34 = scmp.eq.s32.totalorder %s17, 1
      %p35 = por %p33, %p34
      %p37 = scmp.ne.s32.totalorder %s22, %s36
      %p38 = scmp.eq.s32.totalorder %s17, 0
      %p39 = por %p37, %p38
      %s40 = ssub.s32 %s11, %s18
      %p41 = scmp.eq.s32.totalorder %s40, 0
      %s43 = sadd.s32 %s42, 1
      %s44 = scalar_select %p41, %s42, %s43
      %p47 = pneg %p41
      %p48 = scmp.eq.s32.totalorder %s11, 1
      %p49 = por %p47, %p48
      %p50 = scmp.ne.s32.totalorder %s42, %s45
      %p51 = scmp.eq.s32.totalorder %s11, 0
      %p52 = por %p50, %p51
      %p53 = scmp.ne.s32.totalorder %s42, %s45
      %p54 = scmp.eq.s32.totalorder %s16, 1
      %p55 = por %p53, %p54
      %p56 = scmp.ne.s32.totalorder %s45, %s46
      %p57 = scmp.eq.s32.totalorder %s16, 0
      %p58 = por %p56, %p57
      %p59 = scmp.ne.s32.totalorder %s45, %s46
      %p60 = scmp.eq.s32.totalorder %s17, 1
      %p61 = por %p59, %p60
      %p63 = scmp.ne.s32.totalorder %s46, %s62
      %p64 = scmp.eq.s32.totalorder %s17, 0
      %p65 = por %p63, %p64
      %p66 = scmp.le.s32.totalorder 1, %s11
      %p67 = scmp.lt.s32.totalorder %s11, 3
      %p68 = pnand %p66, %p67
      %p69 = pneg %p68
      // Predicated region
      $region9: #{tpu_custom_call.1} parent=5 // pred_check
        _
      $region10: #{tpu_custom_call.1} parent=5 // pred_check_branch
        %71 = sbr.rel (%p68) target = $region12
      $region11: #{tpu_custom_call.1} parent=5 // pred_region
        %s72 = ssub.s32 %s11, 1
        // Predicated region
        $region13: #{tpu_custom_call.1} parent=11 // pred_check
          %p73 = pneg %p32
        $region14: #{tpu_custom_call.1} parent=11 // pred_check_branch
          %75 = sbr.rel (%p73) target = $region16
        $region15: #{tpu_custom_call.1} parent=11 // pred_region
          %77 = vsyncadd [#allocation3], 0
          %s79 = sshll.u32 %s0, 4
          %s80 = int_to_ptr.hbm [resolvable:$true] %s79
          %s81 = sshll.u32 [#allocation2], 4
          %s82 = int_to_ptr.vmem [resolvable:$true] %s81
          %84 = dma.hbm_to_vmem [thread:$0]  %s80, 128, %s82, [#allocation3]
        $region16: #{tpu_custom_call.1} parent=11 // pred_fallthru
          _
      $region12: #{tpu_custom_call.1} parent=5 // pred_fallthru
        _
      %p85 = scmp.lt.s32.totalorder %s11, 2
      // Predicated region
      $region17: #{tpu_custom_call.1} parent=5 // pred_check
        %p86 = pneg %p85
      $region18: #{tpu_custom_call.1} parent=5 // pred_check_branch
        %88 = sbr.rel (%p86) target = $region20
      $region19: #{tpu_custom_call.1} parent=5 // pred_region
        _
      $region20: #{tpu_custom_call.1} parent=5 // pred_fallthru
        _
      %p89 = scmp.le.s32.totalorder 1, %s11
      %p90 = scmp.lt.s32.totalorder %s11, 3
      %p91 = pnand %p89, %p90
      %p92 = pneg %p91
      // Predicated region
      $region21: #{tpu_custom_call.1} parent=5 // pred_check
        _
      $region22: #{tpu_custom_call.1} parent=5 // pred_check_branch
        %94 = sbr.rel (%p91) target = $region24
      $region23: #{tpu_custom_call.1} parent=5 // pred_region
        %s95 = ssub.s32 %s11, 1
        // Predicated region
        $region25: #{tpu_custom_call.1} parent=23 // pred_check
          %p96 = pneg %p32
        $region26: #{tpu_custom_call.1} parent=23 // pred_check_branch
          %98 = sbr.rel (%p96) target = $region28
        $region27: #{tpu_custom_call.1} parent=23 // pred_region
          %100 = dma.done [#allocation3], 128
        $region28: #{tpu_custom_call.1} parent=23 // pred_fallthru
          _
        %p101 = pneg %p32
        %p102 = pneg %p29
        %p103 = pneg %p58
        %p104 = pneg %p55
        %s105 = sand.u32 %s45, 1
        %s106 = scalar_lea.sflag [#allocation4], %s105
        %s107 = sand.u32 %s45, 1
        %s108 = smul.addr %s107, 8
        %s109 = scalar_lea.vmem [#allocation5], %s108
        %v110 = vld [vmem:[#allocation2] sm:$0xff]
        %s111 = sadd.s32 %s16, 1
        %s112 = scvt.s32.f32 %s111
        %v113 = vstv %s112
        %v114 = vmul.f32 %v110, %v113
        %115 = vst [vmem:[%s109] sm:$0xff] %v114
        %s116 = sand.u32 %s45, 1
        %s117 = scalar_lea.sflag [#allocation4], %s116
        %s118 = sand.u32 %s45, 1
        %s119 = smul.addr %s118, 8
        %s120 = scalar_lea.vmem [#allocation5], %s119
        // Predicated region
        $region29: #{tpu_custom_call.1} parent=23 // pred_check
          %p121 = pneg %p55
        $region30: #{tpu_custom_call.1} parent=23 // pred_check_branch
          %123 = sbr.rel (%p121) target = $region32
        $region31: #{tpu_custom_call.1} parent=23 // pred_region
          %125 = vsyncadd %s117, 0
          %s126 = smul.addr %s16, 8
          %s127 = scalar_lea.hbm %s1, %s126
          %s129 = sshll.u32 %s120, 4
          %s130 = int_to_ptr.vmem [resolvable:$true] %s129
          %s131 = sshll.u32 %s127, 4
          %s132 = int_to_ptr.hbm [resolvable:$true] %s131
          %134 = dma.vmem_to_hbm [thread:$0]  %s130, 128, %s132, %s117
        $region32: #{tpu_custom_call.1} parent=23 // pred_fallthru
          _
      $region24: #{tpu_custom_call.1} parent=5 // pred_fallthru
        _
      %p135 = scmp.le.s32.totalorder 2, %s11
      // Predicated region
      $region33: #{tpu_custom_call.1} parent=5 // pred_check
        %p136 = pneg %p135
      $region34: #{tpu_custom_call.1} parent=5 // pred_check_branch
        %138 = sbr.rel (%p136) target = $region36
      $region35: #{tpu_custom_call.1} parent=5 // pred_region
        %s139 = ssub.s32 %s11, 2
        // Predicated region
        $region37: #{tpu_custom_call.1} parent=35 // pred_check
          %p140 = pneg %p61
        $region38: #{tpu_custom_call.1} parent=35 // pred_check_branch
          %142 = sbr.rel (%p140) target = $region40
        $region39: #{tpu_custom_call.1} parent=35 // pred_region
          %s143 = sand.u32 %s46, 1
          %s144 = scalar_lea.sflag [#allocation4], %s143
          %s145 = sand.u32 %s46, 1
          %s146 = smul.addr %s145, 8
          %s147 = scalar_lea.vmem [#allocation5], %s146
          %149 = dma.done %s144, 128
        $region40: #{tpu_custom_call.1} parent=35 // pred_fallthru
          _
      $region36: #{tpu_custom_call.1} parent=5 // pred_fallthru
        _
    $region6: #{tpu_custom_call.1} parent=1 // loop_footer
      %s15 = sadd.s32 1, %s11
    $region7: #{tpu_custom_call.1} parent=1 // loop_footer_branch
      %10 = sbr.rel target = $region3
    $region8: #{tpu_custom_call.1} parent=1 // loop_exit
      _
    %150 = vsyncpa [#allocation3], 1
    %s151 = scalar_lea.sflag [#allocation3], 1
    %152 = vsyncpa %s151, 1
    %153 = vsyncpa [#allocation4], 1
    %s154 = scalar_lea.sflag [#allocation4], 1
    %155 = vsyncpa %s154, 1

// kernel: tpu_custom_call.1
$region0: #{tpu_custom_call.1}
  #allocation0 [shape = 'u32[]', space=smem, size = 0x4, offset = 0x4, fixed_abs, tag = 'smem constant byte address 0x4 - core index']
  #allocation1 [shape = 'u32[72,128]{1,0:T(1,128)}', space=vmem, size = 0x9000, scoped, tag = 'internal scratch']
  #allocation2 [shape = 'f32[256,128]{1,0:T(8,128)}', space=vmem, size = 0x20000, scoped, tag = 'scratch operand']
  #allocation3 [shape = 'f32[64,128]{1,0:T(8,128)}', space=vmem, size = 0x8000, scoped, tag = 'scratch operand']
  %s0 = inlined_call_operand.hbm [shape: bf16[2,256,128], index: 0, kind: input, shape index: {}]
  %s1 = inlined_call_operand.hbm [shape: bf16[1152,128], index: 1, kind: input, shape index: {}]
  %s2 = inlined_call_operand.vmem [shape: f32[1,128], index: 2, kind: input, shape index: {}]
  %s3 = inlined_call_operand.hbm [shape: bf16[2,64,128], index: 3, kind: output, shape index: {}]
  %s4 = sld [smem:[#allocation0]]
  $region53: #{tpu_custom_call.1} parent=0
    _
  %s6 = ssub.s32 1, %s4
  %s7 = scalar_select 0, %s6, %s4
  $region1: #{tpu_custom_call.1} parent=0
    #allocation4 [shape = 'u8[131072]{0}', space=vmem, size = 0x20000, scoped, tag = 'input window, operand 0']
    #allocation5 [shape = 's32[2]{0}', space=sflag, size = 0x8, scoped, tag = 'scoped memory for tpu_custom_call.1']
    #allocation6 [shape = 's32[2]{0}', space=sflag, size = 0x8, scoped, tag = 'scoped memory for tpu_custom_call.1']
    #allocation7 [shape = 'u8[294912]{0}', space=vmem, size = 0x48000, scoped, tag = 'input window, operand 1, single buffered']
    #allocation8 [shape = 's32[1]{0}', space=sflag, size = 0x4, scoped, tag = 'scoped memory for tpu_custom_call.1']
    #allocation9 [shape = 'u8[32768]{0}', space=vmem, size = 0x8000, scoped, tag = 'output window, operand 0']
    %8 = vsyncpa [#allocation5], 0
    %s9 = scalar_lea.sflag [#allocation5], 1
    %10 = vsyncpa %s9, 0
    %11 = vsyncpa [#allocation8], 0
    %12 = vsyncpa [#allocation6], 0
    %s13 = scalar_lea.sflag [#allocation6], 1
    %14 = vsyncpa %s13, 0
    loop: start=0, step=1, limit=4
    $region2: #{tpu_custom_call.1} parent=1 // loop_pre_header
      _
    $region3: #{tpu_custom_call.1} parent=1 // loop_header
      %s16 = sphi 0, %s20
      %p17 = scmp.ge.s32.totalorder %s16, 4
      %s26 = sphi 0, %s28
      %s29 = sphi 0, %s26
      %s30 = sphi 0, %s29
      %s46 = sphi 0, %s30
      %s50 = sphi 0, %s50
      %s52 = sphi 0, %s50
      %s53 = sphi 0, %s52
      %s67 = sphi 0, %s53
      %s71 = sphi 0, %s71
      %s73 = sphi 0, %s71
      %s74 = sphi 0, %s73
      %s88 = sphi 0, %s74
      %s94 = sphi 0, %s96
      %s97 = sphi 0, %s94
      %s98 = sphi 0, %s97
      %s114 = sphi 0, %s98
    $region4: #{tpu_custom_call.1} parent=1 // loop_header_branch
      %19 = sbr.rel (%p17) target = $region8
    $region5: #{tpu_custom_call.1} parent=1 // loop_body
      %s21 = ssub.s32 %s16, 1
      %s22 = ssub.s32 %s16, 2
      %s23 = sadd.s32 %s16, 1
      %s24 = ssub.s32 %s16, %s23
      %p25 = scmp.eq.s32.totalorder %s24, 0
      %s27 = sadd.s32 %s26, 1
      %s28 = scalar_select %p25, %s26, %s27
      %p31 = pneg %p25
      %p32 = scmp.eq.s32.totalorder %s16, 1
      %p33 = por %p31, %p32
      %p34 = scmp.ne.s32.totalorder %s26, %s29
      %p35 = scmp.eq.s32.totalorder %s16, 0
      %p36 = por %p34, %p35
      %p37 = scmp.ne.s32.totalorder %s26, %s29
      %p38 = scmp.eq.s32.totalorder %s21, 1
      %p39 = por %p37, %p38
      %p40 = scmp.ne.s32.totalorder %s29, %s30
      %p41 = scmp.eq.s32.totalorder %s21, 0
      %p42 = por %p40, %p41
      %p43 = scmp.ne.s32.totalorder %s29, %s30
      %p44 = scmp.eq.s32.totalorder %s22, 1
      %p45 = por %p43, %p44
      %p47 = scmp.ne.s32.totalorder %s30, %s46
      %p48 = scmp.eq.s32.totalorder %s22, 0
      %p49 = por %p47, %p48
      %s51 = sadd.s32 %s50, 1
      %p54 = scmp.eq.s32.totalorder %s16, 1
      %p55 = scmp.ne.s32.totalorder %s50, %s52
      %p56 = scmp.eq.s32.totalorder %s16, 0
      %p57 = por %p55, %p56
      %p58 = scmp.ne.s32.totalorder %s50, %s52
      %p59 = scmp.eq.s32.totalorder %s21, 1
      %p60 = por %p58, %p59
      %p61 = scmp.ne.s32.totalorder %s52, %s53
      %p62 = scmp.eq.s32.totalorder %s21, 0
      %p63 = por %p61, %p62
      %p64 = scmp.ne.s32.totalorder %s52, %s53
      %p65 = scmp.eq.s32.totalorder %s22, 1
      %p66 = por %p64, %p65
      %p68 = scmp.ne.s32.totalorder %s53, %s67
      %p69 = scmp.eq.s32.totalorder %s22, 0
      %p70 = por %p68, %p69
      %s72 = sadd.s32 %s71, 1
      %p75 = scmp.eq.s32.totalorder %s16, 1
      %p76 = scmp.ne.s32.totalorder %s71, %s73
      %p77 = scmp.eq.s32.totalorder %s16, 0
      %p78 = por %p76, %p77
      %p79 = scmp.ne.s32.totalorder %s71, %s73
      %p80 = scmp.eq.s32.totalorder %s21, 1
      %p81 = por %p79, %p80
      %p82 = scmp.ne.s32.totalorder %s73, %s74
      %p83 = scmp.eq.s32.totalorder %s21, 0
      %p84 = por %p82, %p83
      %p85 = scmp.ne.s32.totalorder %s73, %s74
      %p86 = scmp.eq.s32.totalorder %s22, 1
      %p87 = por %p85, %p86
      %p89 = scmp.ne.s32.totalorder %s74, %s88
      %p90 = scmp.eq.s32.totalorder %s22, 0
      %p91 = por %p89, %p90
      %s92 = ssub.s32 %s16, %s23
      %p93 = scmp.eq.s32.totalorder %s92, 0
      %s95 = sadd.s32 %s94, 1
      %s96 = scalar_select %p93, %s94, %s95
      %p99 = pneg %p93
      %p100 = scmp.eq.s32.totalorder %s16, 1
      %p101 = por %p99, %p100
      %p102 = scmp.ne.s32.totalorder %s94, %s97
      %p103 = scmp.eq.s32.totalorder %s16, 0
      %p104 = por %p102, %p103
      %p105 = scmp.ne.s32.totalorder %s94, %s97
      %p106 = scmp.eq.s32.totalorder %s21, 1
      %p107 = por %p105, %p106
      %p108 = scmp.ne.s32.totalorder %s97, %s98
      %p109 = scmp.eq.s32.totalorder %s21, 0
      %p110 = por %p108, %p109
      %p111 = scmp.ne.s32.totalorder %s97, %s98
      %p112 = scmp.eq.s32.totalorder %s22, 1
      %p113 = por %p111, %p112
      %p115 = scmp.ne.s32.totalorder %s98, %s114
      %p116 = scmp.eq.s32.totalorder %s22, 0
      %p117 = por %p115, %p116
      %p118 = scmp.le.s32.totalorder 1, %s16
      %p119 = scmp.lt.s32.totalorder %s16, 3
      %p120 = pnand %p118, %p119
      %p121 = pneg %p120
      // Predicated region
      $region9: #{tpu_custom_call.1} parent=5 // pred_check
        _
      $region10: #{tpu_custom_call.1} parent=5 // pred_check_branch
        %123 = sbr.rel (%p120) target = $region12
      $region11: #{tpu_custom_call.1} parent=5 // pred_region
        %s124 = ssub.s32 %s16, 1
        // Predicated region
        $region13: #{tpu_custom_call.1} parent=11 // pred_check
          %p125 = pneg %p63
        $region14: #{tpu_custom_call.1} parent=11 // pred_check_branch
          %127 = sbr.rel (%p125) target = $region16
        $region15: #{tpu_custom_call.1} parent=11 // pred_region
          %129 = vsyncadd [#allocation8], 0
          %s130 = sshll.u32 %s1, 4
          %s131 = int_to_ptr.hbm [resolvable:$true] %s130
          %s132 = sshll.u32 [#allocation7], 4
          %s133 = int_to_ptr.vmem [resolvable:$true] %s132
          %138 = dma.hbm_to_vmem [thread:$0]  %s131, 9216, %s133, [#allocation8], 64, 64, 4
        $region16: #{tpu_custom_call.1} parent=11 // pred_fallthru
          _
        // Predicated region
        $region17: #{tpu_custom_call.1} parent=11 // pred_check
          %p139 = pneg %p84
        $region18: #{tpu_custom_call.1} parent=11 // pred_check_branch
          %141 = sbr.rel (%p139) target = $region20
        $region19: #{tpu_custom_call.1} parent=11 // pred_region
          _
        $region20: #{tpu_custom_call.1} parent=11 // pred_fallthru
          _
      $region12: #{tpu_custom_call.1} parent=5 // pred_fallthru
        _
      %p142 = scmp.lt.s32.totalorder %s16, 2
      // Predicated region
      $region21: #{tpu_custom_call.1} parent=5 // pred_check
        %p143 = pneg %p142
      $region22: #{tpu_custom_call.1} parent=5 // pred_check_branch
        %145 = sbr.rel (%p143) target = $region24
      $region23: #{tpu_custom_call.1} parent=5 // pred_region
        // Predicated region
        $region25: #{tpu_custom_call.1} parent=23 // pred_check
          %p146 = pneg %p36
        $region26: #{tpu_custom_call.1} parent=23 // pred_check_branch
          %148 = sbr.rel (%p146) target = $region28
        $region27: #{tpu_custom_call.1} parent=23 // pred_region
          %s149 = sand.u32 %s26, 1
          %s150 = scalar_lea.sflag [#allocation5], %s149
          %s151 = sand.u32 %s26, 1
          %s152 = smul.addr %s151, 128
          %s153 = scalar_lea.vmem [#allocation4], %s152
          %155 = vsyncadd %s150, 0
          %s156 = smul.addr %s16, 32
          %s157 = smul.addr %s156, 4
          %s158 = scalar_lea.hbm %s0, %s157
          %s159 = sshll.u32 %s158, 4
          %s160 = int_to_ptr.hbm [resolvable:$true] %s159
          %s161 = sshll.u32 %s153, 4
          %s162 = int_to_ptr.vmem [resolvable:$true] %s161
          %167 = dma.hbm_to_vmem [thread:$0]  %s160, 2048, %s162, %s150, 64, 64, 4
        $region28: #{tpu_custom_call.1} parent=23 // pred_fallthru
          _
      $region24: #{tpu_custom_call.1} parent=5 // pred_fallthru
        _
      %p168 = scmp.le.s32.totalorder 1, %s16
      %p169 = scmp.lt.s32.totalorder %s16, 3
      %p170 = pnand %p168, %p169
      %p171 = pneg %p170
      // Predicated region
      $region29: #{tpu_custom_call.1} parent=5 // pred_check
        _
      $region30: #{tpu_custom_call.1} parent=5 // pred_check_branch
        %173 = sbr.rel (%p170) target = $region32
      $region31: #{tpu_custom_call.1} parent=5 // pred_region
        %s174 = ssub.s32 %s16, 1
        %s175 = sand.u32 %s29, 1
        %s176 = scalar_lea.sflag [#allocation5], %s175
        %s177 = sand.u32 %s29, 1
        %s178 = smul.addr %s177, 128
        %s179 = scalar_lea.vmem [#allocation4], %s178
        // Predicated region
        $region33: #{tpu_custom_call.1} parent=31 // pred_check
          %p180 = pneg %p42
        $region34: #{tpu_custom_call.1} parent=31 // pred_check_branch
          %182 = sbr.rel (%p180) target = $region36
        $region35: #{tpu_custom_call.1} parent=31 // pred_region
          %184 = dma.done %s176, 2048
        $region36: #{tpu_custom_call.1} parent=31 // pred_fallthru
          _
        // Predicated region
        $region37: #{tpu_custom_call.1} parent=31 // pred_check
          %p185 = pneg %p63
        $region38: #{tpu_custom_call.1} parent=31 // pred_check_branch
          %187 = sbr.rel (%p185) target = $region40
        $region39: #{tpu_custom_call.1} parent=31 // pred_region
          %189 = dma.done [#allocation8], 9216
        $region40: #{tpu_custom_call.1} parent=31 // pred_fallthru
          _
        %s190 = sand.u32 %s29, 1
        %s191 = scalar_lea.sflag [#allocation5], %s190
        %s192 = sand.u32 %s29, 1
        %s193 = smul.addr %s192, 128
        %s194 = scalar_lea.vmem [#allocation4], %s193
        %p195 = pneg %p42
        %p196 = pneg %p39
        %p197 = pneg %p63
        %p198 = pneg %p60
        %p199 = pneg %p84
        %p200 = pneg %p81
        %p201 = pneg %p110
        %p202 = pneg %p107
        %s203 = sand.u32 %s97, 1
        %s204 = scalar_lea.sflag [#allocation6], %s203
        %s205 = sand.u32 %s97, 1
        %s206 = smul.addr %s205, 32
        %s207 = scalar_lea.vmem [#allocation9], %s206
        %v209 = vld [vmem:[%s179] sm:$0xf]
        %v210 = vld [vmem:[%s179 + $0x4] sm:$0xf]
        %v211 = vld [vmem:[%s179 + $0x8] sm:$0xf]
        %v212 = vld [vmem:[%s179 + $0xc] sm:$0xf]
        %v213 = vld [vmem:[%s179 + $0x10] sm:$0xf]
        %v214 = vld [vmem:[%s179 + $0x14] sm:$0xf]
        %v215 = vld [vmem:[%s179 + $0x18] sm:$0xf]
        %v216 = vld [vmem:[%s179 + $0x1c] sm:$0xf]
        %v217 = vld [vmem:[%s179 + $0x20] sm:$0xf]
        %v218 = vld [vmem:[%s179 + $0x24] sm:$0xf]
        %v219 = vld [vmem:[%s179 + $0x28] sm:$0xf]
        %v220 = vld [vmem:[%s179 + $0x2c] sm:$0xf]
        %v221 = vld [vmem:[%s179 + $0x30] sm:$0xf]
        %v222 = vld [vmem:[%s179 + $0x34] sm:$0xf]
        %v223 = vld [vmem:[%s179 + $0x38] sm:$0xf]
        %v224 = vld [vmem:[%s179 + $0x3c] sm:$0xf]
        %v225 = vld [vmem:[%s179 + $0x40] sm:$0xf]
        %v226 = vld [vmem:[%s179 + $0x44] sm:$0xf]
        %v227 = vld [vmem:[%s179 + $0x48] sm:$0xf]
        %v228 = vld [vmem:[%s179 + $0x4c] sm:$0xf]
        %v229 = vld [vmem:[%s179 + $0x50] sm:$0xf]
        %v230 = vld [vmem:[%s179 + $0x54] sm:$0xf]
        %v231 = vld [vmem:[%s179 + $0x58] sm:$0xf]
        %v232 = vld [vmem:[%s179 + $0x5c] sm:$0xf]
        %v233 = vld [vmem:[%s179 + $0x60] sm:$0xf]
        %v234 = vld [vmem:[%s179 + $0x64] sm:$0xf]
        %v235 = vld [vmem:[%s179 + $0x68] sm:$0xf]
        %v236 = vld [vmem:[%s179 + $0x6c] sm:$0xf]
        %v237 = vld [vmem:[%s179 + $0x70] sm:$0xf]
        %v238 = vld [vmem:[%s179 + $0x74] sm:$0xf]
        %v239 = vld [vmem:[%s179 + $0x78] sm:$0xf]
        %v240 = vld [vmem:[%s179 + $0x7c] sm:$0xf]
        %v241 = vunpack.c.l.bf16 %v209
        %v242 = vunpack.c.l.bf16 %v210
        %v243 = vunpack.c.l.bf16 %v211
        %v244 = vunpack.c.l.bf16 %v212
        %v245 = vunpack.c.l.bf16 %v213
        %v246 = vunpack.c.l.bf16 %v214
        %v247 = vunpack.c.l.bf16 %v215
        %v248 = vunpack.c.l.bf16 %v216
        %v249 = vunpack.c.l.bf16 %v217
        %v250 = vunpack.c.l.bf16 %v218
        %v251 = vunpack.c.l.bf16 %v219
        %v252 = vunpack.c.l.bf16 %v220
        %v253 = vunpack.c.l.bf16 %v221
        %v254 = vunpack.c.l.bf16 %v222
        %v255 = vunpack.c.l.bf16 %v223
        %v256 = vunpack.c.l.bf16 %v224
        %v257 = vunpack.c.l.bf16 %v225
        %v258 = vunpack.c.l.bf16 %v226
        %v259 = vunpack.c.l.bf16 %v227
        %v260 = vunpack.c.l.bf16 %v228
        %v261 = vunpack.c.l.bf16 %v229
        %v262 = vunpack.c.l.bf16 %v230
        %v263 = vunpack.c.l.bf16 %v231
        %v264 = vunpack.c.l.bf16 %v232
        %v265 = vunpack.c.l.bf16 %v233
        %v266 = vunpack.c.l.bf16 %v234
        %v267 = vunpack.c.l.bf16 %v235
        %v268 = vunpack.c.l.bf16 %v236
        %v269 = vunpack.c.l.bf16 %v237
        %v270 = vunpack.c.l.bf16 %v238
        %v271 = vunpack.c.l.bf16 %v239
        %v272 = vunpack.c.l.bf16 %v240
        %v273 = vpack.c.bf16 %v243, %v243
        %v274 = vpack.c.bf16 %v244, %v244
        %v275 = vpack.c.bf16 %v245, %v245
        %v276 = vpack.c.bf16 %v246, %v246
        %v277 = vpack.c.bf16 %v247, %v247
        %v278 = vpack.c.bf16 %v248, %v248
        %v279 = vpack.c.bf16 %v249, %v249
        %v280 = vpack.c.bf16 %v250, %v250
        %v281 = vpack.c.bf16 %v251, %v251
        %v282 = vpack.c.bf16 %v252, %v252
        %v283 = vpack.c.bf16 %v253, %v253
        %v284 = vpack.c.bf16 %v254, %v254
        %v285 = vpack.c.bf16 %v255, %v255
        %v286 = vpack.c.bf16 %v256, %v256
        %v287 = vpack.c.bf16 %v257, %v257
        %v288 = vpack.c.bf16 %v258, %v258
        %v289 = vpack.c.bf16 %v259, %v259
        %v290 = vpack.c.bf16 %v260, %v260
        %v291 = vpack.c.bf16 %v261, %v261
        %v292 = vpack.c.bf16 %v262, %v262
        %v293 = vpack.c.bf16 %v263, %v263
        %v294 = vpack.c.bf16 %v264, %v264
        %v295 = vpack.c.bf16 %v265, %v265
        %v296 = vpack.c.bf16 %v266, %v266
        %v297 = vpack.c.bf16 %v267, %v267
        %v298 = vpack.c.bf16 %v268, %v268
        %v299 = vpack.c.bf16 %v269, %v269
        %v300 = vpack.c.bf16 %v270, %v270
        %v301 = vpack.c.bf16 %v271, %v271
        %v302 = vpack.c.bf16 %v272, %v272
        %v303 = vpack.c.bf16 0.0, 0.0
        %v304 = vunpack.c.l.bf16 %v273
        %v305 = vunpack.c.l.bf16 %v274
        %v306 = vunpack.c.l.bf16 %v275
        %v307 = vunpack.c.l.bf16 %v276
        %v308 = vunpack.c.l.bf16 %v277
        %v309 = vunpack.c.l.bf16 %v278
        %v310 = vunpack.c.l.bf16 %v279
        %v311 = vunpack.c.l.bf16 %v280
        %v312 = vunpack.c.l.bf16 %v281
        %v313 = vunpack.c.l.bf16 %v282
        %v314 = vunpack.c.l.bf16 %v283
        %v315 = vunpack.c.l.bf16 %v284
        %v316 = vunpack.c.l.bf16 %v285
        %v317 = vunpack.c.l.bf16 %v286
        %v318 = vunpack.c.l.bf16 %v287
        %v319 = vunpack.c.l.bf16 %v288
        %v320 = vunpack.c.l.bf16 %v289
        %v321 = vunpack.c.l.bf16 %v290
        %v322 = vunpack.c.l.bf16 %v291
        %v323 = vunpack.c.l.bf16 %v292
        %v324 = vunpack.c.l.bf16 %v293
        %v325 = vunpack.c.l.bf16 %v294
        %v326 = vunpack.c.l.bf16 %v295
        %v327 = vunpack.c.l.bf16 %v296
        %v328 = vunpack.c.l.bf16 %v297
        %v329 = vunpack.c.l.bf16 %v298
        %v330 = vunpack.c.l.bf16 %v299
        %v331 = vunpack.c.l.bf16 %v300
        %v332 = vunpack.c.l.bf16 %v301
        %v333 = vunpack.c.l.bf16 %v302
        %v334 = vunpack.c.l.bf16 %v303
        %v335 = vadd.f32 %v241, %v304
        %v336 = vadd.f32 %v242, %v305
        %v337 = vadd.f32 %v243, %v306
        %v338 = vadd.f32 %v244, %v307
        %v339 = vadd.f32 %v245, %v308
        %v340 = vadd.f32 %v246, %v309
        %v341 = vadd.f32 %v247, %v310
        %v342 = vadd.f32 %v248, %v311
        %v343 = vadd.f32 %v249, %v312
        %v344 = vadd.f32 %v250, %v313
        %v345 = vadd.f32 %v251, %v314
        %v346 = vadd.f32 %v252, %v315
        %v347 = vadd.f32 %v253, %v316
        %v348 = vadd.f32 %v254, %v317
        %v349 = vadd.f32 %v255, %v318
        %v350 = vadd.f32 %v256, %v319
        %v351 = vadd.f32 %v257, %v320
        %v352 = vadd.f32 %v258, %v321
        %v353 = vadd.f32 %v259, %v322
        %v354 = vadd.f32 %v260, %v323
        %v355 = vadd.f32 %v261, %v324
        %v356 = vadd.f32 %v262, %v325
        %v357 = vadd.f32 %v263, %v326
        %v358 = vadd.f32 %v264, %v327
        %v359 = vadd.f32 %v265, %v328
        %v360 = vadd.f32 %v266, %v329
        %v361 = vadd.f32 %v267, %v330
        %v362 = vadd.f32 %v268, %v331
        %v363 = vadd.f32 %v269, %v332
        %v364 = vadd.f32 %v270, %v333
        %v365 = vadd.f32 %v271, %v334
        %v366 = vadd.f32 %v272, %v334
        %v367 = vpack.c.bf16 %v335, %v335
        %v368 = vpack.c.bf16 %v336, %v336
        %v369 = vpack.c.bf16 %v337, %v337
        %v370 = vpack.c.bf16 %v338, %v338
        %v371 = vpack.c.bf16 %v339, %v339
        %v372 = vpack.c.bf16 %v340, %v340
        %v373 = vpack.c.bf16 %v341, %v341
        %v374 = vpack.c.bf16 %v342, %v342
        %v375 = vpack.c.bf16 %v343, %v343
        %v376 = vpack.c.bf16 %v344, %v344
        %v377 = vpack.c.bf16 %v345, %v345
        %v378 = vpack.c.bf16 %v346, %v346
        %v379 = vpack.c.bf16 %v347, %v347
        %v380 = vpack.c.bf16 %v348, %v348
        %v381 = vpack.c.bf16 %v349, %v349
        %v382 = vpack.c.bf16 %v350, %v350
        %v383 = vpack.c.bf16 %v351, %v351
        %v384 = vpack.c.bf16 %v352, %v352
        %v385 = vpack.c.bf16 %v353, %v353
        %v386 = vpack.c.bf16 %v354, %v354
        %v387 = vpack.c.bf16 %v355, %v355
        %v388 = vpack.c.bf16 %v356, %v356
        %v389 = vpack.c.bf16 %v357, %v357
        %v390 = vpack.c.bf16 %v358, %v358
        %v391 = vpack.c.bf16 %v359, %v359
        %v392 = vpack.c.bf16 %v360, %v360
        %v393 = vpack.c.bf16 %v361, %v361
        %v394 = vpack.c.bf16 %v362, %v362
        %v395 = vpack.c.bf16 %v363, %v363
        %v396 = vpack.c.bf16 %v364, %v364
        %v397 = vpack.c.bf16 %v365, %v365
        %v398 = vpack.c.bf16 %v366, %v366
        %v399 = vunpack.c.l.bf16 %v367
        %v400 = vunpack.c.l.bf16 %v368
        %v401 = vunpack.c.l.bf16 %v369
        %v402 = vunpack.c.l.bf16 %v370
        %v403 = vunpack.c.l.bf16 %v371
        %v404 = vunpack.c.l.bf16 %v372
        %v405 = vunpack.c.l.bf16 %v373
        %v406 = vunpack.c.l.bf16 %v374
        %v407 = vunpack.c.l.bf16 %v375
        %v408 = vunpack.c.l.bf16 %v376
        %v409 = vunpack.c.l.bf16 %v377
        %v410 = vunpack.c.l.bf16 %v378
        %v411 = vunpack.c.l.bf16 %v379
        %v412 = vunpack.c.l.bf16 %v380
        %v413 = vunpack.c.l.bf16 %v381
        %v414 = vunpack.c.l.bf16 %v382
        %v415 = vunpack.c.l.bf16 %v383
        %v416 = vunpack.c.l.bf16 %v384
        %v417 = vunpack.c.l.bf16 %v385
        %v418 = vunpack.c.l.bf16 %v386
        %v419 = vunpack.c.l.bf16 %v387
        %v420 = vunpack.c.l.bf16 %v388
        %v421 = vunpack.c.l.bf16 %v389
        %v422 = vunpack.c.l.bf16 %v390
        %v423 = vunpack.c.l.bf16 %v391
        %v424 = vunpack.c.l.bf16 %v392
        %v425 = vunpack.c.l.bf16 %v393
        %v426 = vunpack.c.l.bf16 %v394
        %v427 = vunpack.c.l.bf16 %v395
        %v428 = vunpack.c.l.bf16 %v396
        %v429 = vunpack.c.l.bf16 %v397
        %v430 = vunpack.c.l.bf16 %v398
        %vm463 = vcmask 1046528
        %v464 = vrot.slane %v399, 1
        %v465 = vrot.slane %v400, 1
        %v466 = vsel %vm463, %v464, %v465
        %v467 = vrot.slane %v401, 1
        %v468 = vsel %vm463, %v465, %v467
        %v469 = vrot.slane %v402, 1
        %v470 = vsel %vm463, %v467, %v469
        %v471 = vrot.slane %v403, 1
        %v472 = vsel %vm463, %v469, %v471
        %v473 = vrot.slane %v404, 1
        %v474 = vsel %vm463, %v471, %v473
        %v475 = vrot.slane %v405, 1
        %v476 = vsel %vm463, %v473, %v475
        %v477 = vrot.slane %v406, 1
        %v478 = vsel %vm463, %v475, %v477
        %v479 = vrot.slane %v407, 1
        %v480 = vsel %vm463, %v477, %v479
        %v481 = vrot.slane %v408, 1
        %v482 = vsel %vm463, %v479, %v481
        %v483 = vrot.slane %v409, 1
        %v484 = vsel %vm463, %v481, %v483
        %v485 = vrot.slane %v410, 1
        %v486 = vsel %vm463, %v483, %v485
        %v487 = vrot.slane %v411, 1
        %v488 = vsel %vm463, %v485, %v487
        %v489 = vrot.slane %v412, 1
        %v490 = vsel %vm463, %v487, %v489
        %v491 = vrot.slane %v413, 1
        %v492 = vsel %vm463, %v489, %v491
        %v493 = vrot.slane %v414, 1
        %v494 = vsel %vm463, %v491, %v493
        %v495 = vrot.slane %v415, 1
        %v496 = vsel %vm463, %v493, %v495
        %v497 = vrot.slane %v416, 1
        %v498 = vsel %vm463, %v495, %v497
        %v499 = vrot.slane %v417, 1
        %v500 = vsel %vm463, %v497, %v499
        %v501 = vrot.slane %v418, 1
        %v502 = vsel %vm463, %v499, %v501
        %v503 = vrot.slane %v419, 1
        %v504 = vsel %vm463, %v501, %v503
        %v505 = vrot.slane %v420, 1
        %v506 = vsel %vm463, %v503, %v505
        %v507 = vrot.slane %v421, 1
        %v508 = vsel %vm463, %v505, %v507
        %v509 = vrot.slane %v422, 1
        %v510 = vsel %vm463, %v507, %v509
        %v511 = vrot.slane %v423, 1
        %v512 = vsel %vm463, %v509, %v511
        %v513 = vrot.slane %v424, 1
        %v514 = vsel %vm463, %v511, %v513
        %v515 = vrot.slane %v425, 1
        %v516 = vsel %vm463, %v513, %v515
        %v517 = vrot.slane %v426, 1
        %v518 = vsel %vm463, %v515, %v517
        %v519 = vrot.slane %v427, 1
        %v520 = vsel %vm463, %v517, %v519
        %v521 = vrot.slane %v428, 1
        %v522 = vsel %vm463, %v519, %v521
        %v523 = vrot.slane %v429, 1
        %v524 = vsel %vm463, %v521, %v523
        %v525 = vrot.slane %v430, 1
        %v526 = vsel %vm463, %v523, %v525
        %v559 = vsel %vm463, %v525, 0.0
        %v560 = vpack.c.bf16 %v466, %v466
        %v561 = vpack.c.bf16 %v468, %v468
        %v562 = vpack.c.bf16 %v470, %v470
        %v563 = vpack.c.bf16 %v472, %v472
        %v564 = vpack.c.bf16 %v474, %v474
        %v565 = vpack.c.bf16 %v476, %v476
        %v566 = vpack.c.bf16 %v478, %v478
        %v567 = vpack.c.bf16 %v480, %v480
        %v568 = vpack.c.bf16 %v482, %v482
        %v569 = vpack.c.bf16 %v484, %v484
        %v570 = vpack.c.bf16 %v486, %v486
        %v571 = vpack.c.bf16 %v488, %v488
        %v572 = vpack.c.bf16 %v490, %v490
        %v573 = vpack.c.bf16 %v492, %v492
        %v574 = vpack.c.bf16 %v494, %v494
        %v575 = vpack.c.bf16 %v496, %v496
        %v576 = vpack.c.bf16 %v498, %v498
        %v577 = vpack.c.bf16 %v500, %v500
        %v578 = vpack.c.bf16 %v502, %v502
        %v579 = vpack.c.bf16 %v504, %v504
        %v580 = vpack.c.bf16 %v506, %v506
        %v581 = vpack.c.bf16 %v508, %v508
        %v582 = vpack.c.bf16 %v510, %v510
        %v583 = vpack.c.bf16 %v512, %v512
        %v584 = vpack.c.bf16 %v514, %v514
        %v585 = vpack.c.bf16 %v516, %v516
        %v586 = vpack.c.bf16 %v518, %v518
        %v587 = vpack.c.bf16 %v520, %v520
        %v588 = vpack.c.bf16 %v522, %v522
        %v589 = vpack.c.bf16 %v524, %v524
        %v590 = vpack.c.bf16 %v526, %v526
        %v591 = vpack.c.bf16 %v559, %v559
        %v592 = vunpack.c.l.bf16 %v560
        %v593 = vunpack.c.l.bf16 %v561
        %v594 = vunpack.c.l.bf16 %v562
        %v595 = vunpack.c.l.bf16 %v563
        %v596 = vunpack.c.l.bf16 %v564
        %v597 = vunpack.c.l.bf16 %v565
        %v598 = vunpack.c.l.bf16 %v566
        %v599 = vunpack.c.l.bf16 %v567
        %v600 = vunpack.c.l.bf16 %v568
        %v601 = vunpack.c.l.bf16 %v569
        %v602 = vunpack.c.l.bf16 %v570
        %v603 = vunpack.c.l.bf16 %v571
        %v604 = vunpack.c.l.bf16 %v572
        %v605 = vunpack.c.l.bf16 %v573
        %v606 = vunpack.c.l.bf16 %v574
        %v607 = vunpack.c.l.bf16 %v575
        %v608 = vunpack.c.l.bf16 %v576
        %v609 = vunpack.c.l.bf16 %v577
        %v610 = vunpack.c.l.bf16 %v578
        %v611 = vunpack.c.l.bf16 %v579
        %v612 = vunpack.c.l.bf16 %v580
        %v613 = vunpack.c.l.bf16 %v581
        %v614 = vunpack.c.l.bf16 %v582
        %v615 = vunpack.c.l.bf16 %v583
        %v616 = vunpack.c.l.bf16 %v584
        %v617 = vunpack.c.l.bf16 %v585
        %v618 = vunpack.c.l.bf16 %v586
        %v619 = vunpack.c.l.bf16 %v587
        %v620 = vunpack.c.l.bf16 %v588
        %v621 = vunpack.c.l.bf16 %v589
        %v622 = vunpack.c.l.bf16 %v590
        %v623 = vunpack.c.l.bf16 %v591
        %v624 = vadd.f32 %v399, %v592
        %v625 = vadd.f32 %v400, %v593
        %v626 = vadd.f32 %v401, %v594
        %v627 = vadd.f32 %v402, %v595
        %v628 = vadd.f32 %v403, %v596
        %v629 = vadd.f32 %v404, %v597
        %v630 = vadd.f32 %v405, %v598
        %v631 = vadd.f32 %v406, %v599
        %v632 = vadd.f32 %v407, %v600
        %v633 = vadd.f32 %v408, %v601
        %v634 = vadd.f32 %v409, %v602
        %v635 = vadd.f32 %v410, %v603
        %v636 = vadd.f32 %v411, %v604
        %v637 = vadd.f32 %v412, %v605
        %v638 = vadd.f32 %v413, %v606
        %v639 = vadd.f32 %v414, %v607
        %v640 = vadd.f32 %v415, %v608
        %v641 = vadd.f32 %v416, %v609
        %v642 = vadd.f32 %v417, %v610
        %v643 = vadd.f32 %v418, %v611
        %v644 = vadd.f32 %v419, %v612
        %v645 = vadd.f32 %v420, %v613
        %v646 = vadd.f32 %v421, %v614
        %v647 = vadd.f32 %v422, %v615
        %v648 = vadd.f32 %v423, %v616
        %v649 = vadd.f32 %v424, %v617
        %v650 = vadd.f32 %v425, %v618
        %v651 = vadd.f32 %v426, %v619
        %v652 = vadd.f32 %v427, %v620
        %v653 = vadd.f32 %v428, %v621
        %v654 = vadd.f32 %v429, %v622
        %v655 = vadd.f32 %v430, %v623
        %v656 = vpack.c.bf16 %v624, %v624
        %v657 = vpack.c.bf16 %v625, %v625
        %v658 = vpack.c.bf16 %v626, %v626
        %v659 = vpack.c.bf16 %v627, %v627
        %v660 = vpack.c.bf16 %v628, %v628
        %v661 = vpack.c.bf16 %v629, %v629
        %v662 = vpack.c.bf16 %v630, %v630
        %v663 = vpack.c.bf16 %v631, %v631
        %v664 = vpack.c.bf16 %v632, %v632
        %v665 = vpack.c.bf16 %v633, %v633
        %v666 = vpack.c.bf16 %v634, %v634
        %v667 = vpack.c.bf16 %v635, %v635
        %v668 = vpack.c.bf16 %v636, %v636
        %v669 = vpack.c.bf16 %v637, %v637
        %v670 = vpack.c.bf16 %v638, %v638
        %v671 = vpack.c.bf16 %v639, %v639
        %v672 = vpack.c.bf16 %v640, %v640
        %v673 = vpack.c.bf16 %v641, %v641
        %v674 = vpack.c.bf16 %v642, %v642
        %v675 = vpack.c.bf16 %v643, %v643
        %v676 = vpack.c.bf16 %v644, %v644
        %v677 = vpack.c.bf16 %v645, %v645
        %v678 = vpack.c.bf16 %v646, %v646
        %v679 = vpack.c.bf16 %v647, %v647
        %v680 = vpack.c.bf16 %v648, %v648
        %v681 = vpack.c.bf16 %v649, %v649
        %v682 = vpack.c.bf16 %v650, %v650
        %v683 = vpack.c.bf16 %v651, %v651
        %v684 = vpack.c.bf16 %v652, %v652
        %v685 = vpack.c.bf16 %v653, %v653
        %v686 = vpack.c.bf16 %v654, %v654
        %v687 = vpack.c.bf16 %v655, %v655
        %v688 = vunpack.c.l.bf16 %v656
        %v689 = vunpack.c.l.bf16 %v657
        %v690 = vunpack.c.l.bf16 %v658
        %v691 = vunpack.c.l.bf16 %v659
        %v692 = vunpack.c.l.bf16 %v660
        %v693 = vunpack.c.l.bf16 %v661
        %v694 = vunpack.c.l.bf16 %v662
        %v695 = vunpack.c.l.bf16 %v663
        %v696 = vunpack.c.l.bf16 %v664
        %v697 = vunpack.c.l.bf16 %v665
        %v698 = vunpack.c.l.bf16 %v666
        %v699 = vunpack.c.l.bf16 %v667
        %v700 = vunpack.c.l.bf16 %v668
        %v701 = vunpack.c.l.bf16 %v669
        %v702 = vunpack.c.l.bf16 %v670
        %v703 = vunpack.c.l.bf16 %v671
        %v704 = vunpack.c.l.bf16 %v672
        %v705 = vunpack.c.l.bf16 %v673
        %v706 = vunpack.c.l.bf16 %v674
        %v707 = vunpack.c.l.bf16 %v675
        %v708 = vunpack.c.l.bf16 %v676
        %v709 = vunpack.c.l.bf16 %v677
        %v710 = vunpack.c.l.bf16 %v678
        %v711 = vunpack.c.l.bf16 %v679
        %v712 = vunpack.c.l.bf16 %v680
        %v713 = vunpack.c.l.bf16 %v681
        %v714 = vunpack.c.l.bf16 %v682
        %v715 = vunpack.c.l.bf16 %v683
        %v716 = vunpack.c.l.bf16 %v684
        %v717 = vunpack.c.l.bf16 %v685
        %v718 = vunpack.c.l.bf16 %v686
        %v719 = vunpack.c.l.bf16 %v687
        %v720 = vmul.f32 %v688, 0.25
        %v721 = vmul.f32 %v689, 0.25
        %v722 = vmul.f32 %v690, 0.25
        %v723 = vmul.f32 %v691, 0.25
        %v724 = vmul.f32 %v692, 0.25
        %v725 = vmul.f32 %v693, 0.25
        %v726 = vmul.f32 %v694, 0.25
        %v727 = vmul.f32 %v695, 0.25
        %v728 = vmul.f32 %v696, 0.25
        %v729 = vmul.f32 %v697, 0.25
        %v730 = vmul.f32 %v698, 0.25
        %v731 = vmul.f32 %v699, 0.25
        %v732 = vmul.f32 %v700, 0.25
        %v733 = vmul.f32 %v701, 0.25
        %v734 = vmul.f32 %v702, 0.25
        %v735 = vmul.f32 %v703, 0.25
        %v736 = vmul.f32 %v704, 0.25
        %v737 = vmul.f32 %v705, 0.25
        %v738 = vmul.f32 %v706, 0.25
        %v739 = vmul.f32 %v707, 0.25
        %v740 = vmul.f32 %v708, 0.25
        %v741 = vmul.f32 %v709, 0.25
        %v742 = vmul.f32 %v710, 0.25
        %v743 = vmul.f32 %v711, 0.25
        %v744 = vmul.f32 %v712, 0.25
        %v745 = vmul.f32 %v713, 0.25
        %v746 = vmul.f32 %v714, 0.25
        %v747 = vmul.f32 %v715, 0.25
        %v748 = vmul.f32 %v716, 0.25
        %v749 = vmul.f32 %v717, 0.25
        %v750 = vmul.f32 %v718, 0.25
        %v751 = vmul.f32 %v719, 0.25
        %v752 = vpack.c.bf16 %v720, %v720
        %v753 = vpack.c.bf16 %v721, %v721
        %v754 = vpack.c.bf16 %v722, %v722
        %v755 = vpack.c.bf16 %v723, %v723
        %v756 = vpack.c.bf16 %v724, %v724
        %v757 = vpack.c.bf16 %v725, %v725
        %v758 = vpack.c.bf16 %v726, %v726
        %v759 = vpack.c.bf16 %v727, %v727
        %v760 = vpack.c.bf16 %v728, %v728
        %v761 = vpack.c.bf16 %v729, %v729
        %v762 = vpack.c.bf16 %v730, %v730
        %v763 = vpack.c.bf16 %v731, %v731
        %v764 = vpack.c.bf16 %v732, %v732
        %v765 = vpack.c.bf16 %v733, %v733
        %v766 = vpack.c.bf16 %v734, %v734
        %v767 = vpack.c.bf16 %v735, %v735
        %v768 = vpack.c.bf16 %v736, %v736
        %v769 = vpack.c.bf16 %v737, %v737
        %v770 = vpack.c.bf16 %v738, %v738
        %v771 = vpack.c.bf16 %v739, %v739
        %v772 = vpack.c.bf16 %v740, %v740
        %v773 = vpack.c.bf16 %v741, %v741
        %v774 = vpack.c.bf16 %v742, %v742
        %v775 = vpack.c.bf16 %v743, %v743
        %v776 = vpack.c.bf16 %v744, %v744
        %v777 = vpack.c.bf16 %v745, %v745
        %v778 = vpack.c.bf16 %v746, %v746
        %v779 = vpack.c.bf16 %v747, %v747
        %v780 = vpack.c.bf16 %v748, %v748
        %v781 = vpack.c.bf16 %v749, %v749
        %v782 = vpack.c.bf16 %v750, %v750
        %v783 = vpack.c.bf16 %v751, %v751
        %v784 = vunpack.c.l.bf16 %v752
        %v785 = vunpack.c.l.bf16 %v753
        %v786 = vunpack.c.l.bf16 %v754
        %v787 = vunpack.c.l.bf16 %v755
        %v788 = vunpack.c.l.bf16 %v756
        %v789 = vunpack.c.l.bf16 %v757
        %v790 = vunpack.c.l.bf16 %v758
        %v791 = vunpack.c.l.bf16 %v759
        %v792 = vunpack.c.l.bf16 %v760
        %v793 = vunpack.c.l.bf16 %v761
        %v794 = vunpack.c.l.bf16 %v762
        %v795 = vunpack.c.l.bf16 %v763
        %v796 = vunpack.c.l.bf16 %v764
        %v797 = vunpack.c.l.bf16 %v765
        %v798 = vunpack.c.l.bf16 %v766
        %v799 = vunpack.c.l.bf16 %v767
        %v800 = vunpack.c.l.bf16 %v768
        %v801 = vunpack.c.l.bf16 %v769
        %v802 = vunpack.c.l.bf16 %v770
        %v803 = vunpack.c.l.bf16 %v771
        %v804 = vunpack.c.l.bf16 %v772
        %v805 = vunpack.c.l.bf16 %v773
        %v806 = vunpack.c.l.bf16 %v774
        %v807 = vunpack.c.l.bf16 %v775
        %v808 = vunpack.c.l.bf16 %v776
        %v809 = vunpack.c.l.bf16 %v777
        %v810 = vunpack.c.l.bf16 %v778
        %v811 = vunpack.c.l.bf16 %v779
        %v812 = vunpack.c.l.bf16 %v780
        %v813 = vunpack.c.l.bf16 %v781
        %v814 = vunpack.c.l.bf16 %v782
        %v815 = vunpack.c.l.bf16 %v783
        %816 = vst [vmem:[#allocation2] sm:$0xff] %v784
        %817 = vst [vmem:[#allocation2 + $0x8] sm:$0xff] %v785
        %818 = vst [vmem:[#allocation2 + $0x10] sm:$0xff] %v786
        %819 = vst [vmem:[#allocation2 + $0x18] sm:$0xff] %v787
        %820 = vst [vmem:[#allocation2 + $0x20] sm:$0xff] %v788
        %821 = vst [vmem:[#allocation2 + $0x28] sm:$0xff] %v789
        %822 = vst [vmem:[#allocation2 + $0x30] sm:$0xff] %v790
        %823 = vst [vmem:[#allocation2 + $0x38] sm:$0xff] %v791
        %824 = vst [vmem:[#allocation2 + $0x40] sm:$0xff] %v792
        %825 = vst [vmem:[#allocation2 + $0x48] sm:$0xff] %v793
        %826 = vst [vmem:[#allocation2 + $0x50] sm:$0xff] %v794
        %827 = vst [vmem:[#allocation2 + $0x58] sm:$0xff] %v795
        %828 = vst [vmem:[#allocation2 + $0x60] sm:$0xff] %v796
        %829 = vst [vmem:[#allocation2 + $0x68] sm:$0xff] %v797
        %830 = vst [vmem:[#allocation2 + $0x70] sm:$0xff] %v798
        %831 = vst [vmem:[#allocation2 + $0x78] sm:$0xff] %v799
        %832 = vst [vmem:[#allocation2 + $0x80] sm:$0xff] %v800
        %833 = vst [vmem:[#allocation2 + $0x88] sm:$0xff] %v801
        %834 = vst [vmem:[#allocation2 + $0x90] sm:$0xff] %v802
        %835 = vst [vmem:[#allocation2 + $0x98] sm:$0xff] %v803
        %836 = vst [vmem:[#allocation2 + $0xa0] sm:$0xff] %v804
        %837 = vst [vmem:[#allocation2 + $0xa8] sm:$0xff] %v805
        %838 = vst [vmem:[#allocation2 + $0xb0] sm:$0xff] %v806
        %839 = vst [vmem:[#allocation2 + $0xb8] sm:$0xff] %v807
        %840 = vst [vmem:[#allocation2 + $0xc0] sm:$0xff] %v808
        %841 = vst [vmem:[#allocation2 + $0xc8] sm:$0xff] %v809
        %842 = vst [vmem:[#allocation2 + $0xd0] sm:$0xff] %v810
        %843 = vst [vmem:[#allocation2 + $0xd8] sm:$0xff] %v811
        %844 = vst [vmem:[#allocation2 + $0xe0] sm:$0xff] %v812
        %845 = vst [vmem:[#allocation2 + $0xe8] sm:$0xff] %v813
        %846 = vst [vmem:[#allocation2 + $0xf0] sm:$0xff] %v814
        %847 = vst [vmem:[#allocation2 + $0xf8] sm:$0xff] %v815
        %v848 = vld [vmem:[#allocation2] sm:$0x1]
        %849 = vst [vmem:[#allocation3] sm:$0x1] %v848
        %v850 = vld [vmem:[#allocation2 + $0x2] sm:$0x1]
        %851 = vst [vmem:[#allocation3 + $0x1] sm:$0x1] %v850
        %v852 = vld [vmem:[#allocation2 + $0x4] sm:$0x1]
        %853 = vst [vmem:[#allocation3 + $0x2] sm:$0x1] %v852
        %v854 = vld [vmem:[#allocation2 + $0x6] sm:$0x1]
        %855 = vst [vmem:[#allocation3 + $0x3] sm:$0x1] %v854
        %v856 = vld [vmem:[#allocation2 + $0x8] sm:$0x1]
        %857 = vst [vmem:[#allocation3 + $0x4] sm:$0x1] %v856
        %v858 = vld [vmem:[#allocation2 + $0xa] sm:$0x1]
        %859 = vst [vmem:[#allocation3 + $0x5] sm:$0x1] %v858
        %v860 = vld [vmem:[#allocation2 + $0xc] sm:$0x1]
        %861 = vst [vmem:[#allocation3 + $0x6] sm:$0x1] %v860
        %v862 = vld [vmem:[#allocation2 + $0xe] sm:$0x1]
        %863 = vst [vmem:[#allocation3 + $0x7] sm:$0x1] %v862
        %v864 = vld [vmem:[#allocation2 + $0x20] sm:$0x1]
        %865 = vst [vmem:[#allocation3 + $0x8] sm:$0x1] %v864
        %v866 = vld [vmem:[#allocation2 + $0x22] sm:$0x1]
        %867 = vst [vmem:[#allocation3 + $0x9] sm:$0x1] %v866
        %v868 = vld [vmem:[#allocation2 + $0x24] sm:$0x1]
        %869 = vst [vmem:[#allocation3 + $0xa] sm:$0x1] %v868
        %v870 = vld [vmem:[#allocation2 + $0x26] sm:$0x1]
        %871 = vst [vmem:[#allocation3 + $0xb] sm:$0x1] %v870
        %v872 = vld [vmem:[#allocation2 + $0x28] sm:$0x1]
        %873 = vst [vmem:[#allocation3 + $0xc] sm:$0x1] %v872
        %v874 = vld [vmem:[#allocation2 + $0x2a] sm:$0x1]
        %875 = vst [vmem:[#allocation3 + $0xd] sm:$0x1] %v874
        %v876 = vld [vmem:[#allocation2 + $0x2c] sm:$0x1]
        %877 = vst [vmem:[#allocation3 + $0xe] sm:$0x1] %v876
        %v878 = vld [vmem:[#allocation2 + $0x2e] sm:$0x1]
        %879 = vst [vmem:[#allocation3 + $0xf] sm:$0x1] %v878
        %v880 = vld [vmem:[#allocation2 + $0x40] sm:$0x1]
        %881 = vst [vmem:[#allocation3 + $0x10] sm:$0x1] %v880
        %v882 = vld [vmem:[#allocation2 + $0x42] sm:$0x1]
        %883 = vst [vmem:[#allocation3 + $0x11] sm:$0x1] %v882
        %v884 = vld [vmem:[#allocation2 + $0x44] sm:$0x1]
        %885 = vst [vmem:[#allocation3 + $0x12] sm:$0x1] %v884
        %v886 = vld [vmem:[#allocation2 + $0x46] sm:$0x1]
        %887 = vst [vmem:[#allocation3 + $0x13] sm:$0x1] %v886
        %v888 = vld [vmem:[#allocation2 + $0x48] sm:$0x1]
        %889 = vst [vmem:[#allocation3 + $0x14] sm:$0x1] %v888
        %v890 = vld [vmem:[#allocation2 + $0x4a] sm:$0x1]
        %891 = vst [vmem:[#allocation3 + $0x15] sm:$0x1] %v890
        %v892 = vld [vmem:[#allocation2 + $0x4c] sm:$0x1]
        %893 = vst [vmem:[#allocation3 + $0x16] sm:$0x1] %v892
        %v894 = vld [vmem:[#allocation2 + $0x4e] sm:$0x1]
        %895 = vst [vmem:[#allocation3 + $0x17] sm:$0x1] %v894
        %v896 = vld [vmem:[#allocation2 + $0x60] sm:$0x1]
        %897 = vst [vmem:[#allocation3 + $0x18] sm:$0x1] %v896
        %v898 = vld [vmem:[#allocation2 + $0x62] sm:$0x1]
        %899 = vst [vmem:[#allocation3 + $0x19] sm:$0x1] %v898
        %v900 = vld [vmem:[#allocation2 + $0x64] sm:$0x1]
        %901 = vst [vmem:[#allocation3 + $0x1a] sm:$0x1] %v900
        %v902 = vld [vmem:[#allocation2 + $0x66] sm:$0x1]
        %903 = vst [vmem:[#allocation3 + $0x1b] sm:$0x1] %v902
        %v904 = vld [vmem:[#allocation2 + $0x68] sm:$0x1]
        %905 = vst [vmem:[#allocation3 + $0x1c] sm:$0x1] %v904
        %v906 = vld [vmem:[#allocation2 + $0x6a] sm:$0x1]
        %907 = vst [vmem:[#allocation3 + $0x1d] sm:$0x1] %v906
        %v908 = vld [vmem:[#allocation2 + $0x6c] sm:$0x1]
        %909 = vst [vmem:[#allocation3 + $0x1e] sm:$0x1] %v908
        %v910 = vld [vmem:[#allocation2 + $0x6e] sm:$0x1]
        %911 = vst [vmem:[#allocation3 + $0x1f] sm:$0x1] %v910
        %v912 = vld [vmem:[#allocation2 + $0x80] sm:$0x1]
        %913 = vst [vmem:[#allocation3 + $0x20] sm:$0x1] %v912
        %v914 = vld [vmem:[#allocation2 + $0x82] sm:$0x1]
        %915 = vst [vmem:[#allocation3 + $0x21] sm:$0x1] %v914
        %v916 = vld [vmem:[#allocation2 + $0x84] sm:$0x1]
        %917 = vst [vmem:[#allocation3 + $0x22] sm:$0x1] %v916
        %v918 = vld [vmem:[#allocation2 + $0x86] sm:$0x1]
        %919 = vst [vmem:[#allocation3 + $0x23] sm:$0x1] %v918
        %v920 = vld [vmem:[#allocation2 + $0x88] sm:$0x1]
        %921 = vst [vmem:[#allocation3 + $0x24] sm:$0x1] %v920
        %v922 = vld [vmem:[#allocation2 + $0x8a] sm:$0x1]
        %923 = vst [vmem:[#allocation3 + $0x25] sm:$0x1] %v922
        %v924 = vld [vmem:[#allocation2 + $0x8c] sm:$0x1]
        %925 = vst [vmem:[#allocation3 + $0x26] sm:$0x1] %v924
        %v926 = vld [vmem:[#allocation2 + $0x8e] sm:$0x1]
        %927 = vst [vmem:[#allocation3 + $0x27] sm:$0x1] %v926
        %v928 = vld [vmem:[#allocation2 + $0xa0] sm:$0x1]
        %929 = vst [vmem:[#allocation3 + $0x28] sm:$0x1] %v928
        %v930 = vld [vmem:[#allocation2 + $0xa2] sm:$0x1]
        %931 = vst [vmem:[#allocation3 + $0x29] sm:$0x1] %v930
        %v932 = vld [vmem:[#allocation2 + $0xa4] sm:$0x1]
        %933 = vst [vmem:[#allocation3 + $0x2a] sm:$0x1] %v932
        %v934 = vld [vmem:[#allocation2 + $0xa6] sm:$0x1]
        %935 = vst [vmem:[#allocation3 + $0x2b] sm:$0x1] %v934
        %v936 = vld [vmem:[#allocation2 + $0xa8] sm:$0x1]
        %937 = vst [vmem:[#allocation3 + $0x2c] sm:$0x1] %v936
        %v938 = vld [vmem:[#allocation2 + $0xaa] sm:$0x1]
        %939 = vst [vmem:[#allocation3 + $0x2d] sm:$0x1] %v938
        %v940 = vld [vmem:[#allocation2 + $0xac] sm:$0x1]
        %941 = vst [vmem:[#allocation3 + $0x2e] sm:$0x1] %v940
        %v942 = vld [vmem:[#allocation2 + $0xae] sm:$0x1]
        %943 = vst [vmem:[#allocation3 + $0x2f] sm:$0x1] %v942
        %v944 = vld [vmem:[#allocation2 + $0xc0] sm:$0x1]
        %945 = vst [vmem:[#allocation3 + $0x30] sm:$0x1] %v944
        %v946 = vld [vmem:[#allocation2 + $0xc2] sm:$0x1]
        %947 = vst [vmem:[#allocation3 + $0x31] sm:$0x1] %v946
        %v948 = vld [vmem:[#allocation2 + $0xc4] sm:$0x1]
        %949 = vst [vmem:[#allocation3 + $0x32] sm:$0x1] %v948
        %v950 = vld [vmem:[#allocation2 + $0xc6] sm:$0x1]
        %951 = vst [vmem:[#allocation3 + $0x33] sm:$0x1] %v950
        %v952 = vld [vmem:[#allocation2 + $0xc8] sm:$0x1]
        %953 = vst [vmem:[#allocation3 + $0x34] sm:$0x1] %v952
        %v954 = vld [vmem:[#allocation2 + $0xca] sm:$0x1]
        %955 = vst [vmem:[#allocation3 + $0x35] sm:$0x1] %v954
        %v956 = vld [vmem:[#allocation2 + $0xcc] sm:$0x1]
        %957 = vst [vmem:[#allocation3 + $0x36] sm:$0x1] %v956
        %v958 = vld [vmem:[#allocation2 + $0xce] sm:$0x1]
        %959 = vst [vmem:[#allocation3 + $0x37] sm:$0x1] %v958
        %v960 = vld [vmem:[#allocation2 + $0xe0] sm:$0x1]
        %961 = vst [vmem:[#allocation3 + $0x38] sm:$0x1] %v960
        %v962 = vld [vmem:[#allocation2 + $0xe2] sm:$0x1]
        %963 = vst [vmem:[#allocation3 + $0x39] sm:$0x1] %v962
        %v964 = vld [vmem:[#allocation2 + $0xe4] sm:$0x1]
        %965 = vst [vmem:[#allocation3 + $0x3a] sm:$0x1] %v964
        %v966 = vld [vmem:[#allocation2 + $0xe6] sm:$0x1]
        %967 = vst [vmem:[#allocation3 + $0x3b] sm:$0x1] %v966
        %v968 = vld [vmem:[#allocation2 + $0xe8] sm:$0x1]
        %969 = vst [vmem:[#allocation3 + $0x3c] sm:$0x1] %v968
        %v970 = vld [vmem:[#allocation2 + $0xea] sm:$0x1]
        %971 = vst [vmem:[#allocation3 + $0x3d] sm:$0x1] %v970
        %v972 = vld [vmem:[#allocation2 + $0xec] sm:$0x1]
        %973 = vst [vmem:[#allocation3 + $0x3e] sm:$0x1] %v972
        %v974 = vld [vmem:[#allocation2 + $0xee] sm:$0x1]
        %975 = vst [vmem:[#allocation3 + $0x3f] sm:$0x1] %v974
        %v976 = vld [vmem:[#allocation3] sm:$0xff]
        %v977 = vld [vmem:[#allocation3 + $0x8] sm:$0xff]
        %v978 = vld [vmem:[#allocation3 + $0x10] sm:$0xff]
        %v979 = vld [vmem:[#allocation3 + $0x18] sm:$0xff]
        %v980 = vld [vmem:[#allocation3 + $0x20] sm:$0xff]
        %v981 = vld [vmem:[#allocation3 + $0x28] sm:$0xff]
        %v982 = vld [vmem:[#allocation3 + $0x30] sm:$0xff]
        %v983 = vld [vmem:[#allocation3 + $0x38] sm:$0xff]
        %v984 = vpack.c.bf16 %v976, %v976
        %v985 = vpack.c.bf16 %v977, %v977
        %v986 = vpack.c.bf16 %v978, %v978
        %v987 = vpack.c.bf16 %v979, %v979
        %v988 = vpack.c.bf16 %v980, %v980
        %v989 = vpack.c.bf16 %v981, %v981
        %v990 = vpack.c.bf16 %v982, %v982
        %v991 = vpack.c.bf16 %v983, %v983
        %v992 = vlaneseq
        %v993 = vshrl.u32 %v992, 7
        %v994 = vadd.s32 %v993, 8
        %v995 = vadd.s32 %v993, 16
        %v996 = vadd.s32 %v993, 24
        %v997 = vadd.s32 %v993, 32
        %v998 = vadd.s32 %v993, 40
        %v999 = vadd.s32 %v993, 48
        %v1000 = vadd.s32 %v993, 56
        %v1001 = vand.u32 %v993, 7
        %v1002 = vand.u32 %v994, 7
        %v1003 = vand.u32 %v995, 7
        %v1004 = vand.u32 %v996, 7
        %v1005 = vand.u32 %v997, 7
        %v1006 = vand.u32 %v998, 7
        %v1007 = vand.u32 %v999, 7
        %v1008 = vand.u32 %v1000, 7
        %vm1009 = vcmp.gt.s32.totalorder %v1001, 0
        %vm1010 = vcmp.gt.s32.totalorder %v1002, 0
        %vm1011 = vcmp.gt.s32.totalorder %v1003, 0
        %vm1012 = vcmp.gt.s32.totalorder %v1004, 0
        %vm1013 = vcmp.gt.s32.totalorder %v1005, 0
        %vm1014 = vcmp.gt.s32.totalorder %v1006, 0
        %vm1015 = vcmp.gt.s32.totalorder %v1007, 0
        %vm1016 = vcmp.gt.s32.totalorder %v1008, 0
        %vm1017 = vcmp.lt.s32.totalorder %v1001, 7
        %vm1018 = vcmp.lt.s32.totalorder %v1002, 7
        %vm1019 = vcmp.lt.s32.totalorder %v1003, 7
        %vm1020 = vcmp.lt.s32.totalorder %v1004, 7
        %vm1021 = vcmp.lt.s32.totalorder %v1005, 7
        %vm1022 = vcmp.lt.s32.totalorder %v1006, 7
        %vm1023 = vcmp.lt.s32.totalorder %v1007, 7
        %vm1024 = vcmp.lt.s32.totalorder %v1008, 7
        %vm1025 = vcmp.ge.s32.totalorder %v993, 8
        %vm1026 = vcmp.ge.s32.totalorder %v994, 8
        %vm1027 = vcmp.ge.s32.totalorder %v995, 8
        %vm1028 = vcmp.ge.s32.totalorder %v996, 8
        %vm1029 = vcmp.ge.s32.totalorder %v997, 8
        %vm1030 = vcmp.ge.s32.totalorder %v998, 8
        %vm1031 = vcmp.ge.s32.totalorder %v999, 8
        %vm1032 = vcmp.ge.s32.totalorder %v1000, 8
        %vm1033 = vcmp.lt.s32.totalorder %v993, 56
        %vm1034 = vcmp.lt.s32.totalorder %v994, 56
        %vm1035 = vcmp.lt.s32.totalorder %v995, 56
        %vm1036 = vcmp.lt.s32.totalorder %v996, 56
        %vm1037 = vcmp.lt.s32.totalorder %v997, 56
        %vm1038 = vcmp.lt.s32.totalorder %v998, 56
        %vm1039 = vcmp.lt.s32.totalorder %v999, 56
        %vm1040 = vcmp.lt.s32.totalorder %v1000, 56
        %v1041 = vunpack.c.l.bf16 %v984
        %v1042 = vunpack.c.l.bf16 %v985
        %v1043 = vunpack.c.l.bf16 %v986
        %v1044 = vunpack.c.l.bf16 %v987
        %v1045 = vunpack.c.l.bf16 %v988
        %v1046 = vunpack.c.l.bf16 %v989
        %v1047 = vunpack.c.l.bf16 %v990
        %v1048 = vunpack.c.l.bf16 %v991
        %vm1056 = vcmask 1040384
        %v1057 = vrot.slane %v1041, 7
        %v1058 = vrot.slane %v1042, 7
        %v1059 = vsel %vm1056, %v1057, %v1058
        %v1060 = vrot.slane %v1043, 7
        %v1061 = vsel %vm1056, %v1058, %v1060
        %v1062 = vrot.slane %v1044, 7
        %v1063 = vsel %vm1056, %v1060, %v1062
        %v1064 = vrot.slane %v1045, 7
        %v1065 = vsel %vm1056, %v1062, %v1064
        %v1066 = vrot.slane %v1046, 7
        %v1067 = vsel %vm1056, %v1064, %v1066
        %v1068 = vrot.slane %v1047, 7
        %v1069 = vsel %vm1056, %v1066, %v1068
        %v1077 = vsel %vm1056, 0.0, %v1057
        %v1078 = vpack.c.bf16 %v1077, %v1077
        %v1079 = vpack.c.bf16 %v1059, %v1059
        %v1080 = vpack.c.bf16 %v1061, %v1061
        %v1081 = vpack.c.bf16 %v1063, %v1063
        %v1082 = vpack.c.bf16 %v1065, %v1065
        %v1083 = vpack.c.bf16 %v1067, %v1067
        %v1084 = vpack.c.bf16 %v1069, %v1069
        %vm1085 = vmand %vm1025, %vm1009
        %vm1086 = vmand %vm1026, %vm1010
        %vm1087 = vmand %vm1027, %vm1011
        %vm1088 = vmand %vm1028, %vm1012
        %vm1089 = vmand %vm1029, %vm1013
        %vm1090 = vmand %vm1030, %vm1014
        %vm1091 = vmand %vm1031, %vm1015
        %vm1092 = vmand %vm1032, %vm1016
        %vm1093 = vmpackc.low %vm1085, %vm1085
        %vm1094 = vmpackc.low %vm1086, %vm1086
        %vm1095 = vmpackc.low %vm1087, %vm1087
        %vm1096 = vmpackc.low %vm1088, %vm1088
        %vm1097 = vmpackc.low %vm1089, %vm1089
        %vm1098 = vmpackc.low %vm1090, %vm1090
        %vm1099 = vmpackc.low %vm1091, %vm1091
        %vm1100 = vmpackc.low %vm1092, %vm1092
        %v1101 = vsel %vm1093, %v303, 0
        %v1102 = vsel %vm1094, %v1078, 0
        %v1103 = vsel %vm1095, %v1079, 0
        %v1104 = vsel %vm1096, %v1080, 0
        %v1105 = vsel %vm1097, %v1081, 0
        %v1106 = vsel %vm1098, %v1082, 0
        %v1107 = vsel %vm1099, %v1083, 0
        %v1108 = vsel %vm1100, %v1084, 0
        %v1109 = vld [vmem:[#allocation7] sm:$0xf]
        %v1110 = vld [vmem:[#allocation7 + $0x4] sm:$0xf]
        %v1111 = vld [vmem:[#allocation7 + $0x8] sm:$0xf]
        %v1112 = vld [vmem:[#allocation7 + $0xc] sm:$0xf]
        %v1113 = vld [vmem:[#allocation7 + $0x10] sm:$0xf]
        %v1114 = vld [vmem:[#allocation7 + $0x14] sm:$0xf]
        %v1115 = vld [vmem:[#allocation7 + $0x18] sm:$0xf]
        %v1116 = vld [vmem:[#allocation7 + $0x1c] sm:$0xf]
        %v1117 = vld [vmem:[#allocation7 + $0x20] sm:$0xf]
        %v1118 = vld [vmem:[#allocation7 + $0x24] sm:$0xf]
        %v1119 = vld [vmem:[#allocation7 + $0x28] sm:$0xf]
        %v1120 = vld [vmem:[#allocation7 + $0x2c] sm:$0xf]
        %v1121 = vld [vmem:[#allocation7 + $0x30] sm:$0xf]
        %v1122 = vld [vmem:[#allocation7 + $0x34] sm:$0xf]
        %v1123 = vld [vmem:[#allocation7 + $0x38] sm:$0xf]
        %v1124 = vld [vmem:[#allocation7 + $0x3c] sm:$0xf]
        %v1125 = vpack.c.bf16 %v1041, %v1041
        %v1126 = vpack.c.bf16 %v1042, %v1042
        %v1127 = vpack.c.bf16 %v1043, %v1043
        %v1128 = vpack.c.bf16 %v1044, %v1044
        %v1129 = vpack.c.bf16 %v1045, %v1045
        %v1130 = vpack.c.bf16 %v1046, %v1046
        %v1131 = vpack.c.bf16 %v1047, %v1047
        %vm1132 = vmpackc.low %vm1025, %vm1025
        %vm1133 = vmpackc.low %vm1026, %vm1026
        %vm1134 = vmpackc.low %vm1027, %vm1027
        %vm1135 = vmpackc.low %vm1028, %vm1028
        %vm1136 = vmpackc.low %vm1029, %vm1029
        %vm1137 = vmpackc.low %vm1030, %vm1030
        %vm1138 = vmpackc.low %vm1031, %vm1031
        %vm1139 = vmpackc.low %vm1032, %vm1032
        %v1140 = vsel %vm1132, %v303, 0
        %v1141 = vsel %vm1133, %v1125, 0
        %v1142 = vsel %vm1134, %v1126, 0
        %v1143 = vsel %vm1135, %v1127, 0
        %v1144 = vsel %vm1136, %v1128, 0
        %v1145 = vsel %vm1137, %v1129, 0
        %v1146 = vsel %vm1138, %v1130, 0
        %v1147 = vsel %vm1139, %v1131, 0
        %v1148 = vld [vmem:[#allocation7 + $0x40] sm:$0xf]
        %v1149 = vld [vmem:[#allocation7 + $0x44] sm:$0xf]
        %v1150 = vld [vmem:[#allocation7 + $0x48] sm:$0xf]
        %v1151 = vld [vmem:[#allocation7 + $0x4c] sm:$0xf]
        %v1152 = vld [vmem:[#allocation7 + $0x50] sm:$0xf]
        %v1153 = vld [vmem:[#allocation7 + $0x54] sm:$0xf]
        %v1154 = vld [vmem:[#allocation7 + $0x58] sm:$0xf]
        %v1155 = vld [vmem:[#allocation7 + $0x5c] sm:$0xf]
        %v1156 = vld [vmem:[#allocation7 + $0x60] sm:$0xf]
        %v1157 = vld [vmem:[#allocation7 + $0x64] sm:$0xf]
        %v1158 = vld [vmem:[#allocation7 + $0x68] sm:$0xf]
        %v1159 = vld [vmem:[#allocation7 + $0x6c] sm:$0xf]
        %v1160 = vld [vmem:[#allocation7 + $0x70] sm:$0xf]
        %v1161 = vld [vmem:[#allocation7 + $0x74] sm:$0xf]
        %v1162 = vld [vmem:[#allocation7 + $0x78] sm:$0xf]
        %v1163 = vld [vmem:[#allocation7 + $0x7c] sm:$0xf]
        %v1172 = vunpack.c.l.b16 %v1140
        %v1173 = vunpack.c.l.b16 %v1141
        %v1174 = vunpack.c.l.b16 %v1142
        %v1175 = vunpack.c.l.b16 %v1143
        %v1176 = vunpack.c.l.b16 %v1144
        %v1177 = vunpack.c.l.b16 %v1145
        %v1178 = vunpack.c.l.b16 %v1146
        %v1179 = vunpack.c.l.b16 %v1147
        %v1180 = vpack.c.b16 %v1173, %v1172
        %v1181 = vpack.c.b16 %v1175, %v1174
        %v1182 = vpack.c.b16 %v1177, %v1176
        %v1183 = vpack.c.b16 %v1179, %v1178
        %v1204 = vunpack.c.l.b16 %v1148
        %v1205 = vunpack.c.l.b16 %v1149
        %v1206 = vunpack.c.l.b16 %v1150
        %v1207 = vunpack.c.l.b16 %v1151
        %v1208 = vunpack.c.l.b16 %v1152
        %v1209 = vunpack.c.l.b16 %v1153
        %v1210 = vunpack.c.l.b16 %v1154
        %v1211 = vunpack.c.l.b16 %v1155
        %v1212 = vunpack.c.l.b16 %v1156
        %v1213 = vunpack.c.l.b16 %v1157
        %v1214 = vunpack.c.l.b16 %v1158
        %v1215 = vunpack.c.l.b16 %v1159
        %v1216 = vunpack.c.l.b16 %v1160
        %v1217 = vunpack.c.l.b16 %v1161
        %v1218 = vunpack.c.l.b16 %v1162
        %v1219 = vunpack.c.l.b16 %v1163
        %v1220 = vpack.c.b16 %v1205, %v1204
        %v1221 = vpack.c.b16 %v1207, %v1206
        %v1222 = vpack.c.b16 %v1209, %v1208
        %v1223 = vpack.c.b16 %v1211, %v1210
        %v1224 = vpack.c.b16 %v1213, %v1212
        %v1225 = vpack.c.b16 %v1215, %v1214
        %v1226 = vpack.c.b16 %v1217, %v1216
        %v1227 = vpack.c.b16 %v1219, %v1218
        %1236 = vmatpush.bf16.msra.mxu0 %v1227
        %1237 = vmatpush.bf16.msra.mxu0 %v1226
        %1238 = vmatpush.bf16.msra.mxu0 %v1225
        %1239 = vmatpush.bf16.msra.mxu0 %v1224
        %1240 = vmatpush.bf16.msra.mxu0 %v1223
        %1241 = vmatpush.bf16.msra.mxu0 %v1222
        %1242 = vmatpush.bf16.msra.mxu0 %v1221
        %1243 = vmatpush.bf16.msra.mxu0 %v1220
        %1244 = vmatmul.bf16.gmra.mxu0 %v1180
        %v1245 = vpop.f32.mrf.mxu0
        %v1246 = vadd.f32 0.0, %v1245
        %v1247 = vpop.f32.mrf.mxu0
        %v1248 = vadd.f32 0.0, %v1247
        %1249 = vmatmul.bf16.gmra.mxu0 %v1181
        %v1250 = vpop.f32.mrf.mxu0
        %v1251 = vadd.f32 0.0, %v1250
        %v1252 = vpop.f32.mrf.mxu0
        %v1253 = vadd.f32 0.0, %v1252
        %1254 = vmatmul.bf16.gmra.mxu0 %v1182
        %v1255 = vpop.f32.mrf.mxu0
        %v1256 = vadd.f32 0.0, %v1255
        %v1257 = vpop.f32.mrf.mxu0
        %v1258 = vadd.f32 0.0, %v1257
        %1259 = vmatmul.bf16.gmra.mxu0 %v1183
        %v1260 = vpop.f32.mrf.mxu0
        %v1261 = vadd.f32 0.0, %v1260
        %v1262 = vpop.f32.mrf.mxu0
        %v1263 = vadd.f32 0.0, %v1262
        %1264 = vdwg.mxu0
        %v1273 = vunpack.c.l.b16 %v1101
        %v1274 = vunpack.c.l.b16 %v1102
        %v1275 = vunpack.c.l.b16 %v1103
        %v1276 = vunpack.c.l.b16 %v1104
        %v1277 = vunpack.c.l.b16 %v1105
        %v1278 = vunpack.c.l.b16 %v1106
        %v1279 = vunpack.c.l.b16 %v1107
        %v1280 = vunpack.c.l.b16 %v1108
        %v1281 = vpack.c.b16 %v1274, %v1273
        %v1282 = vpack.c.b16 %v1276, %v1275
        %v1283 = vpack.c.b16 %v1278, %v1277
        %v1284 = vpack.c.b16 %v1280, %v1279
        %v1305 = vunpack.c.l.b16 %v1109
        %v1306 = vunpack.c.l.b16 %v1110
        %v1307 = vunpack.c.l.b16 %v1111
        %v1308 = vunpack.c.l.b16 %v1112
        %v1309 = vunpack.c.l.b16 %v1113
        %v1310 = vunpack.c.l.b16 %v1114
        %v1311 = vunpack.c.l.b16 %v1115
        %v1312 = vunpack.c.l.b16 %v1116
        %v1313 = vunpack.c.l.b16 %v1117
        %v1314 = vunpack.c.l.b16 %v1118
        %v1315 = vunpack.c.l.b16 %v1119
        %v1316 = vunpack.c.l.b16 %v1120
        %v1317 = vunpack.c.l.b16 %v1121
        %v1318 = vunpack.c.l.b16 %v1122
        %v1319 = vunpack.c.l.b16 %v1123
        %v1320 = vunpack.c.l.b16 %v1124
        %v1321 = vpack.c.b16 %v1306, %v1305
        %v1322 = vpack.c.b16 %v1308, %v1307
        %v1323 = vpack.c.b16 %v1310, %v1309
        %v1324 = vpack.c.b16 %v1312, %v1311
        %v1325 = vpack.c.b16 %v1314, %v1313
        %v1326 = vpack.c.b16 %v1316, %v1315
        %v1327 = vpack.c.b16 %v1318, %v1317
        %v1328 = vpack.c.b16 %v1320, %v1319
        %1337 = vmatpush.bf16.msra.mxu0 %v1328
        %1338 = vmatpush.bf16.msra.mxu0 %v1327
        %1339 = vmatpush.bf16.msra.mxu0 %v1326
        %1340 = vmatpush.bf16.msra.mxu0 %v1325
        %1341 = vmatpush.bf16.msra.mxu0 %v1324
        %1342 = vmatpush.bf16.msra.mxu0 %v1323
        %1343 = vmatpush.bf16.msra.mxu0 %v1322
        %1344 = vmatpush.bf16.msra.mxu0 %v1321
        %1345 = vmatmul.bf16.gmra.mxu0 %v1281
        %v1346 = vpop.f32.mrf.mxu0
        %v1347 = vadd.f32 %v1246, %v1346
        %v1348 = vpop.f32.mrf.mxu0
        %v1349 = vadd.f32 %v1248, %v1348
        %1350 = vmatmul.bf16.gmra.mxu0 %v1282
        %v1351 = vpop.f32.mrf.mxu0
        %v1352 = vadd.f32 %v1251, %v1351
        %v1353 = vpop.f32.mrf.mxu0
        %v1354 = vadd.f32 %v1253, %v1353
        %1355 = vmatmul.bf16.gmra.mxu0 %v1283
        %v1356 = vpop.f32.mrf.mxu0
        %v1357 = vadd.f32 %v1256, %v1356
        %v1358 = vpop.f32.mrf.mxu0
        %v1359 = vadd.f32 %v1258, %v1358
        %1360 = vmatmul.bf16.gmra.mxu0 %v1284
        %v1361 = vpop.f32.mrf.mxu0
        %v1362 = vadd.f32 %v1261, %v1361
        %v1363 = vpop.f32.mrf.mxu0
        %v1364 = vadd.f32 %v1263, %v1363
        %1365 = vdwg.mxu0
        %v1367 = vrot.slane %v1041, 1
        %v1368 = vrot.slane %v1042, 1
        %v1369 = vsel %vm463, %v1367, %v1368
        %v1370 = vrot.slane %v1043, 1
        %v1371 = vsel %vm463, %v1368, %v1370
        %v1372 = vrot.slane %v1044, 1
        %v1373 = vsel %vm463, %v1370, %v1372
        %v1374 = vrot.slane %v1045, 1
        %v1375 = vsel %vm463, %v1372, %v1374
        %v1376 = vrot.slane %v1046, 1
        %v1377 = vsel %vm463, %v1374, %v1376
        %v1378 = vrot.slane %v1047, 1
        %v1379 = vsel %vm463, %v1376, %v1378
        %v1380 = vrot.slane %v1048, 1
        %v1381 = vsel %vm463, %v1378, %v1380
        %v1390 = vsel %vm463, 0.0, %v1367
        %v1391 = vpack.c.bf16 %v1390, %v1390
        %v1392 = vpack.c.bf16 %v1369, %v1369
        %v1393 = vpack.c.bf16 %v1371, %v1371
        %v1394 = vpack.c.bf16 %v1373, %v1373
        %v1395 = vpack.c.bf16 %v1375, %v1375
        %v1396 = vpack.c.bf16 %v1377, %v1377
        %v1397 = vpack.c.bf16 %v1379, %v1379
        %v1398 = vpack.c.bf16 %v1381, %v1381
        %vm1399 = vmand %vm1025, %vm1017
        %vm1400 = vmand %vm1026, %vm1018
        %vm1401 = vmand %vm1027, %vm1019
        %vm1402 = vmand %vm1028, %vm1020
        %vm1403 = vmand %vm1029, %vm1021
        %vm1404 = vmand %vm1030, %vm1022
        %vm1405 = vmand %vm1031, %vm1023
        %vm1406 = vmand %vm1032, %vm1024
        %vm1407 = vmpackc.low %vm1399, %vm1399
        %vm1408 = vmpackc.low %vm1400, %vm1400
        %vm1409 = vmpackc.low %vm1401, %vm1401
        %vm1410 = vmpackc.low %vm1402, %vm1402
        %vm1411 = vmpackc.low %vm1403, %vm1403
        %vm1412 = vmpackc.low %vm1404, %vm1404
        %vm1413 = vmpackc.low %vm1405, %vm1405
        %vm1414 = vmpackc.low %vm1406, %vm1406
        %v1415 = vsel %vm1407, %v1391, 0
        %v1416 = vsel %vm1408, %v1392, 0
        %v1417 = vsel %vm1409, %v1393, 0
        %v1418 = vsel %vm1410, %v1394, 0
        %v1419 = vsel %vm1411, %v1395, 0
        %v1420 = vsel %vm1412, %v1396, 0
        %v1421 = vsel %vm1413, %v1397, 0
        %v1422 = vsel %vm1414, %v1398, 0
        %v1423 = vld [vmem:[#allocation7 + $0x80] sm:$0xf]
        %v1424 = vld [vmem:[#allocation7 + $0x84] sm:$0xf]
        %v1425 = vld [vmem:[#allocation7 + $0x88] sm:$0xf]
        %v1426 = vld [vmem:[#allocation7 + $0x8c] sm:$0xf]
        %v1427 = vld [vmem:[#allocation7 + $0x90] sm:$0xf]
        %v1428 = vld [vmem:[#allocation7 + $0x94] sm:$0xf]
        %v1429 = vld [vmem:[#allocation7 + $0x98] sm:$0xf]
        %v1430 = vld [vmem:[#allocation7 + $0x9c] sm:$0xf]
        %v1431 = vld [vmem:[#allocation7 + $0xa0] sm:$0xf]
        %v1432 = vld [vmem:[#allocation7 + $0xa4] sm:$0xf]
        %v1433 = vld [vmem:[#allocation7 + $0xa8] sm:$0xf]
        %v1434 = vld [vmem:[#allocation7 + $0xac] sm:$0xf]
        %v1435 = vld [vmem:[#allocation7 + $0xb0] sm:$0xf]
        %v1436 = vld [vmem:[#allocation7 + $0xb4] sm:$0xf]
        %v1437 = vld [vmem:[#allocation7 + $0xb8] sm:$0xf]
        %v1438 = vld [vmem:[#allocation7 + $0xbc] sm:$0xf]
        %v1447 = vunpack.c.l.b16 %v1415
        %v1448 = vunpack.c.l.b16 %v1416
        %v1449 = vunpack.c.l.b16 %v1417
        %v1450 = vunpack.c.l.b16 %v1418
        %v1451 = vunpack.c.l.b16 %v1419
        %v1452 = vunpack.c.l.b16 %v1420
        %v1453 = vunpack.c.l.b16 %v1421
        %v1454 = vunpack.c.l.b16 %v1422
        %v1455 = vpack.c.b16 %v1448, %v1447
        %v1456 = vpack.c.b16 %v1450, %v1449
        %v1457 = vpack.c.b16 %v1452, %v1451
        %v1458 = vpack.c.b16 %v1454, %v1453
        %v1479 = vunpack.c.l.b16 %v1423
        %v1480 = vunpack.c.l.b16 %v1424
        %v1481 = vunpack.c.l.b16 %v1425
        %v1482 = vunpack.c.l.b16 %v1426
        %v1483 = vunpack.c.l.b16 %v1427
        %v1484 = vunpack.c.l.b16 %v1428
        %v1485 = vunpack.c.l.b16 %v1429
        %v1486 = vunpack.c.l.b16 %v1430
        %v1487 = vunpack.c.l.b16 %v1431
        %v1488 = vunpack.c.l.b16 %v1432
        %v1489 = vunpack.c.l.b16 %v1433
        %v1490 = vunpack.c.l.b16 %v1434
        %v1491 = vunpack.c.l.b16 %v1435
        %v1492 = vunpack.c.l.b16 %v1436
        %v1493 = vunpack.c.l.b16 %v1437
        %v1494 = vunpack.c.l.b16 %v1438
        %v1495 = vpack.c.b16 %v1480, %v1479
        %v1496 = vpack.c.b16 %v1482, %v1481
        %v1497 = vpack.c.b16 %v1484, %v1483
        %v1498 = vpack.c.b16 %v1486, %v1485
        %v1499 = vpack.c.b16 %v1488, %v1487
        %v1500 = vpack.c.b16 %v1490, %v1489
        %v1501 = vpack.c.b16 %v1492, %v1491
        %v1502 = vpack.c.b16 %v1494, %v1493
        %1511 = vmatpush.bf16.msra.mxu0 %v1502
        %1512 = vmatpush.bf16.msra.mxu0 %v1501
        %1513 = vmatpush.bf16.msra.mxu0 %v1500
        %1514 = vmatpush.bf16.msra.mxu0 %v1499
        %1515 = vmatpush.bf16.msra.mxu0 %v1498
        %1516 = vmatpush.bf16.msra.mxu0 %v1497
        %1517 = vmatpush.bf16.msra.mxu0 %v1496
        %1518 = vmatpush.bf16.msra.mxu0 %v1495
        %1519 = vmatmul.bf16.gmra.mxu0 %v1455
        %v1520 = vpop.f32.mrf.mxu0
        %v1521 = vadd.f32 0.0, %v1520
        %v1522 = vpop.f32.mrf.mxu0
        %v1523 = vadd.f32 0.0, %v1522
        %1524 = vmatmul.bf16.gmra.mxu0 %v1456
        %v1525 = vpop.f32.mrf.mxu0
        %v1526 = vadd.f32 0.0, %v1525
        %v1527 = vpop.f32.mrf.mxu0
        %v1528 = vadd.f32 0.0, %v1527
        %1529 = vmatmul.bf16.gmra.mxu0 %v1457
        %v1530 = vpop.f32.mrf.mxu0
        %v1531 = vadd.f32 0.0, %v1530
        %v1532 = vpop.f32.mrf.mxu0
        %v1533 = vadd.f32 0.0, %v1532
        %1534 = vmatmul.bf16.gmra.mxu0 %v1458
        %v1535 = vpop.f32.mrf.mxu0
        %v1536 = vadd.f32 0.0, %v1535
        %v1537 = vpop.f32.mrf.mxu0
        %v1538 = vadd.f32 0.0, %v1537
        %1539 = vdwg.mxu0
        %v1540 = vadd.f32 %v1347, %v1521
        %v1541 = vadd.f32 %v1349, %v1523
        %v1542 = vadd.f32 %v1352, %v1526
        %v1543 = vadd.f32 %v1354, %v1528
        %v1544 = vadd.f32 %v1357, %v1531
        %v1545 = vadd.f32 %v1359, %v1533
        %v1546 = vadd.f32 %v1362, %v1536
        %v1547 = vadd.f32 %v1364, %v1538
        %v1548 = vrot.slane %v1048, 7
        %v1549 = vsel %vm1056, %v1068, %v1548
        %v1551 = vpack.c.bf16 %v1549, %v1549
        %vm1552 = vmpackc.low %vm1009, %vm1009
        %vm1553 = vmpackc.low %vm1010, %vm1010
        %vm1554 = vmpackc.low %vm1011, %vm1011
        %vm1555 = vmpackc.low %vm1012, %vm1012
        %vm1556 = vmpackc.low %vm1013, %vm1013
        %vm1557 = vmpackc.low %vm1014, %vm1014
        %vm1558 = vmpackc.low %vm1015, %vm1015
        %vm1559 = vmpackc.low %vm1016, %vm1016
        %v1560 = vsel %vm1552, %v1078, 0
        %v1561 = vsel %vm1553, %v1079, 0
        %v1562 = vsel %vm1554, %v1080, 0
        %v1563 = vsel %vm1555, %v1081, 0
        %v1564 = vsel %vm1556, %v1082, 0
        %v1565 = vsel %vm1557, %v1083, 0
        %v1566 = vsel %vm1558, %v1084, 0
        %v1567 = vsel %vm1559, %v1551, 0
        %v1568 = vld [vmem:[#allocation7 + $0xc0] sm:$0xf]
        %v1569 = vld [vmem:[#allocation7 + $0xc4] sm:$0xf]
        %v1570 = vld [vmem:[#allocation7 + $0xc8] sm:$0xf]
        %v1571 = vld [vmem:[#allocation7 + $0xcc] sm:$0xf]
        %v1572 = vld [vmem:[#allocation7 + $0xd0] sm:$0xf]
        %v1573 = vld [vmem:[#allocation7 + $0xd4] sm:$0xf]
        %v1574 = vld [vmem:[#allocation7 + $0xd8] sm:$0xf]
        %v1575 = vld [vmem:[#allocation7 + $0xdc] sm:$0xf]
        %v1576 = vld [vmem:[#allocation7 + $0xe0] sm:$0xf]
        %v1577 = vld [vmem:[#allocation7 + $0xe4] sm:$0xf]
        %v1578 = vld [vmem:[#allocation7 + $0xe8] sm:$0xf]
        %v1579 = vld [vmem:[#allocation7 + $0xec] sm:$0xf]
        %v1580 = vld [vmem:[#allocation7 + $0xf0] sm:$0xf]
        %v1581 = vld [vmem:[#allocation7 + $0xf4] sm:$0xf]
        %v1582 = vld [vmem:[#allocation7 + $0xf8] sm:$0xf]
        %v1583 = vld [vmem:[#allocation7 + $0xfc] sm:$0xf]
        %v1592 = vunpack.c.l.b16 %v1560
        %v1593 = vunpack.c.l.b16 %v1561
        %v1594 = vunpack.c.l.b16 %v1562
        %v1595 = vunpack.c.l.b16 %v1563
        %v1596 = vunpack.c.l.b16 %v1564
        %v1597 = vunpack.c.l.b16 %v1565
        %v1598 = vunpack.c.l.b16 %v1566
        %v1599 = vunpack.c.l.b16 %v1567
        %v1600 = vpack.c.b16 %v1593, %v1592
        %v1601 = vpack.c.b16 %v1595, %v1594
        %v1602 = vpack.c.b16 %v1597, %v1596
        %v1603 = vpack.c.b16 %v1599, %v1598
        %v1624 = vunpack.c.l.b16 %v1568
        %v1625 = vunpack.c.l.b16 %v1569
        %v1626 = vunpack.c.l.b16 %v1570
        %v1627 = vunpack.c.l.b16 %v1571
        %v1628 = vunpack.c.l.b16 %v1572
        %v1629 = vunpack.c.l.b16 %v1573
        %v1630 = vunpack.c.l.b16 %v1574
        %v1631 = vunpack.c.l.b16 %v1575
        %v1632 = vunpack.c.l.b16 %v1576
        %v1633 = vunpack.c.l.b16 %v1577
        %v1634 = vunpack.c.l.b16 %v1578
        %v1635 = vunpack.c.l.b16 %v1579
        %v1636 = vunpack.c.l.b16 %v1580
        %v1637 = vunpack.c.l.b16 %v1581
        %v1638 = vunpack.c.l.b16 %v1582
        %v1639 = vunpack.c.l.b16 %v1583
        %v1640 = vpack.c.b16 %v1625, %v1624
        %v1641 = vpack.c.b16 %v1627, %v1626
        %v1642 = vpack.c.b16 %v1629, %v1628
        %v1643 = vpack.c.b16 %v1631, %v1630
        %v1644 = vpack.c.b16 %v1633, %v1632
        %v1645 = vpack.c.b16 %v1635, %v1634
        %v1646 = vpack.c.b16 %v1637, %v1636
        %v1647 = vpack.c.b16 %v1639, %v1638
        %1656 = vmatpush.bf16.msra.mxu0 %v1647
        %1657 = vmatpush.bf16.msra.mxu0 %v1646
        %1658 = vmatpush.bf16.msra.mxu0 %v1645
        %1659 = vmatpush.bf16.msra.mxu0 %v1644
        %1660 = vmatpush.bf16.msra.mxu0 %v1643
        %1661 = vmatpush.bf16.msra.mxu0 %v1642
        %1662 = vmatpush.bf16.msra.mxu0 %v1641
        %1663 = vmatpush.bf16.msra.mxu0 %v1640
        %1664 = vmatmul.bf16.gmra.mxu0 %v1600
        %v1665 = vpop.f32.mrf.mxu0
        %v1666 = vadd.f32 0.0, %v1665
        %v1667 = vpop.f32.mrf.mxu0
        %v1668 = vadd.f32 0.0, %v1667
        %1669 = vmatmul.bf16.gmra.mxu0 %v1601
        %v1670 = vpop.f32.mrf.mxu0
        %v1671 = vadd.f32 0.0, %v1670
        %v1672 = vpop.f32.mrf.mxu0
        %v1673 = vadd.f32 0.0, %v1672
        %1674 = vmatmul.bf16.gmra.mxu0 %v1602
        %v1675 = vpop.f32.mrf.mxu0
        %v1676 = vadd.f32 0.0, %v1675
        %v1677 = vpop.f32.mrf.mxu0
        %v1678 = vadd.f32 0.0, %v1677
        %1679 = vmatmul.bf16.gmra.mxu0 %v1603
        %v1680 = vpop.f32.mrf.mxu0
        %v1681 = vadd.f32 0.0, %v1680
        %v1682 = vpop.f32.mrf.mxu0
        %v1683 = vadd.f32 0.0, %v1682
        %1684 = vdwg.mxu0
        %v1685 = vadd.f32 %v1540, %v1666
        %v1686 = vadd.f32 %v1541, %v1668
        %v1687 = vadd.f32 %v1542, %v1671
        %v1688 = vadd.f32 %v1543, %v1673
        %v1689 = vadd.f32 %v1544, %v1676
        %v1690 = vadd.f32 %v1545, %v1678
        %v1691 = vadd.f32 %v1546, %v1681
        %v1692 = vadd.f32 %v1547, %v1683
        %v1693 = vld [vmem:[#allocation7 + $0x100] sm:$0xf]
        %v1694 = vld [vmem:[#allocation7 + $0x104] sm:$0xf]
        %v1695 = vld [vmem:[#allocation7 + $0x108] sm:$0xf]
        %v1696 = vld [vmem:[#allocation7 + $0x10c] sm:$0xf]
        %v1697 = vld [vmem:[#allocation7 + $0x110] sm:$0xf]
        %v1698 = vld [vmem:[#allocation7 + $0x114] sm:$0xf]
        %v1699 = vld [vmem:[#allocation7 + $0x118] sm:$0xf]
        %v1700 = vld [vmem:[#allocation7 + $0x11c] sm:$0xf]
        %v1701 = vld [vmem:[#allocation7 + $0x120] sm:$0xf]
        %v1702 = vld [vmem:[#allocation7 + $0x124] sm:$0xf]
        %v1703 = vld [vmem:[#allocation7 + $0x128] sm:$0xf]
        %v1704 = vld [vmem:[#allocation7 + $0x12c] sm:$0xf]
        %v1705 = vld [vmem:[#allocation7 + $0x130] sm:$0xf]
        %v1706 = vld [vmem:[#allocation7 + $0x134] sm:$0xf]
        %v1707 = vld [vmem:[#allocation7 + $0x138] sm:$0xf]
        %v1708 = vld [vmem:[#allocation7 + $0x13c] sm:$0xf]
        %v1717 = vunpack.c.l.b16 %v984
        %v1718 = vunpack.c.l.b16 %v985
        %v1719 = vunpack.c.l.b16 %v986
        %v1720 = vunpack.c.l.b16 %v987
        %v1721 = vunpack.c.l.b16 %v988
        %v1722 = vunpack.c.l.b16 %v989
        %v1723 = vunpack.c.l.b16 %v990
        %v1724 = vunpack.c.l.b16 %v991
        %v1725 = vpack.c.b16 %v1718, %v1717
        %v1726 = vpack.c.b16 %v1720, %v1719
        %v1727 = vpack.c.b16 %v1722, %v1721
        %v1728 = vpack.c.b16 %v1724, %v1723
        %v1749 = vunpack.c.l.b16 %v1693
        %v1750 = vunpack.c.l.b16 %v1694
        %v1751 = vunpack.c.l.b16 %v1695
        %v1752 = vunpack.c.l.b16 %v1696
        %v1753 = vunpack.c.l.b16 %v1697
        %v1754 = vunpack.c.l.b16 %v1698
        %v1755 = vunpack.c.l.b16 %v1699
        %v1756 = vunpack.c.l.b16 %v1700
        %v1757 = vunpack.c.l.b16 %v1701
        %v1758 = vunpack.c.l.b16 %v1702
        %v1759 = vunpack.c.l.b16 %v1703
        %v1760 = vunpack.c.l.b16 %v1704
        %v1761 = vunpack.c.l.b16 %v1705
        %v1762 = vunpack.c.l.b16 %v1706
        %v1763 = vunpack.c.l.b16 %v1707
        %v1764 = vunpack.c.l.b16 %v1708
        %v1765 = vpack.c.b16 %v1750, %v1749
        %v1766 = vpack.c.b16 %v1752, %v1751
        %v1767 = vpack.c.b16 %v1754, %v1753
        %v1768 = vpack.c.b16 %v1756, %v1755
        %v1769 = vpack.c.b16 %v1758, %v1757
        %v1770 = vpack.c.b16 %v1760, %v1759
        %v1771 = vpack.c.b16 %v1762, %v1761
        %v1772 = vpack.c.b16 %v1764, %v1763
        %1781 = vmatpush.bf16.msra.mxu0 %v1772
        %1782 = vmatpush.bf16.msra.mxu0 %v1771
        %1783 = vmatpush.bf16.msra.mxu0 %v1770
        %1784 = vmatpush.bf16.msra.mxu0 %v1769
        %1785 = vmatpush.bf16.msra.mxu0 %v1768
        %1786 = vmatpush.bf16.msra.mxu0 %v1767
        %1787 = vmatpush.bf16.msra.mxu0 %v1766
        %1788 = vmatpush.bf16.msra.mxu0 %v1765
        %1789 = vmatmul.bf16.gmra.mxu0 %v1725
        %v1790 = vpop.f32.mrf.mxu0
        %v1791 = vadd.f32 0.0, %v1790
        %v1792 = vpop.f32.mrf.mxu0
        %v1793 = vadd.f32 0.0, %v1792
        %1794 = vmatmul.bf16.gmra.mxu0 %v1726
        %v1795 = vpop.f32.mrf.mxu0
        %v1796 = vadd.f32 0.0, %v1795
        %v1797 = vpop.f32.mrf.mxu0
        %v1798 = vadd.f32 0.0, %v1797
        %1799 = vmatmul.bf16.gmra.mxu0 %v1727
        %v1800 = vpop.f32.mrf.mxu0
        %v1801 = vadd.f32 0.0, %v1800
        %v1802 = vpop.f32.mrf.mxu0
        %v1803 = vadd.f32 0.0, %v1802
        %1804 = vmatmul.bf16.gmra.mxu0 %v1728
        %v1805 = vpop.f32.mrf.mxu0
        %v1806 = vadd.f32 0.0, %v1805
        %v1807 = vpop.f32.mrf.mxu0
        %v1808 = vadd.f32 0.0, %v1807
        %1809 = vdwg.mxu0
        %v1810 = vadd.f32 %v1685, %v1791
        %v1811 = vadd.f32 %v1686, %v1793
        %v1812 = vadd.f32 %v1687, %v1796
        %v1813 = vadd.f32 %v1688, %v1798
        %v1814 = vadd.f32 %v1689, %v1801
        %v1815 = vadd.f32 %v1690, %v1803
        %v1816 = vadd.f32 %v1691, %v1806
        %v1817 = vadd.f32 %v1692, %v1808
        %v1819 = vsel %vm463, %v1380, 0.0
        %v1820 = vpack.c.bf16 %v1819, %v1819
        %vm1821 = vmpackc.low %vm1017, %vm1017
        %vm1822 = vmpackc.low %vm1018, %vm1018
        %vm1823 = vmpackc.low %vm1019, %vm1019
        %vm1824 = vmpackc.low %vm1020, %vm1020
        %vm1825 = vmpackc.low %vm1021, %vm1021
        %vm1826 = vmpackc.low %vm1022, %vm1022
        %vm1827 = vmpackc.low %vm1023, %vm1023
        %vm1828 = vmpackc.low %vm1024, %vm1024
        %v1829 = vsel %vm1821, %v1392, 0
        %v1830 = vsel %vm1822, %v1393, 0
        %v1831 = vsel %vm1823, %v1394, 0
        %v1832 = vsel %vm1824, %v1395, 0
        %v1833 = vsel %vm1825, %v1396, 0
        %v1834 = vsel %vm1826, %v1397, 0
        %v1835 = vsel %vm1827, %v1398, 0
        %v1836 = vsel %vm1828, %v1820, 0
        %v1837 = vld [vmem:[#allocation7 + $0x140] sm:$0xf]
        %v1838 = vld [vmem:[#allocation7 + $0x144] sm:$0xf]
        %v1839 = vld [vmem:[#allocation7 + $0x148] sm:$0xf]
        %v1840 = vld [vmem:[#allocation7 + $0x14c] sm:$0xf]
        %v1841 = vld [vmem:[#allocation7 + $0x150] sm:$0xf]
        %v1842 = vld [vmem:[#allocation7 + $0x154] sm:$0xf]
        %v1843 = vld [vmem:[#allocation7 + $0x158] sm:$0xf]
        %v1844 = vld [vmem:[#allocation7 + $0x15c] sm:$0xf]
        %v1845 = vld [vmem:[#allocation7 + $0x160] sm:$0xf]
        %v1846 = vld [vmem:[#allocation7 + $0x164] sm:$0xf]
        %v1847 = vld [vmem:[#allocation7 + $0x168] sm:$0xf]
        %v1848 = vld [vmem:[#allocation7 + $0x16c] sm:$0xf]
        %v1849 = vld [vmem:[#allocation7 + $0x170] sm:$0xf]
        %v1850 = vld [vmem:[#allocation7 + $0x174] sm:$0xf]
        %v1851 = vld [vmem:[#allocation7 + $0x178] sm:$0xf]
        %v1852 = vld [vmem:[#allocation7 + $0x17c] sm:$0xf]
        %v1861 = vunpack.c.l.b16 %v1829
        %v1862 = vunpack.c.l.b16 %v1830
        %v1863 = vunpack.c.l.b16 %v1831
        %v1864 = vunpack.c.l.b16 %v1832
        %v1865 = vunpack.c.l.b16 %v1833
        %v1866 = vunpack.c.l.b16 %v1834
        %v1867 = vunpack.c.l.b16 %v1835
        %v1868 = vunpack.c.l.b16 %v1836
        %v1869 = vpack.c.b16 %v1862, %v1861
        %v1870 = vpack.c.b16 %v1864, %v1863
        %v1871 = vpack.c.b16 %v1866, %v1865
        %v1872 = vpack.c.b16 %v1868, %v1867
        %v1893 = vunpack.c.l.b16 %v1837
        %v1894 = vunpack.c.l.b16 %v1838
        %v1895 = vunpack.c.l.b16 %v1839
        %v1896 = vunpack.c.l.b16 %v1840
        %v1897 = vunpack.c.l.b16 %v1841
        %v1898 = vunpack.c.l.b16 %v1842
        %v1899 = vunpack.c.l.b16 %v1843
        %v1900 = vunpack.c.l.b16 %v1844
        %v1901 = vunpack.c.l.b16 %v1845
        %v1902 = vunpack.c.l.b16 %v1846
        %v1903 = vunpack.c.l.b16 %v1847
        %v1904 = vunpack.c.l.b16 %v1848
        %v1905 = vunpack.c.l.b16 %v1849
        %v1906 = vunpack.c.l.b16 %v1850
        %v1907 = vunpack.c.l.b16 %v1851
        %v1908 = vunpack.c.l.b16 %v1852
        %v1909 = vpack.c.b16 %v1894, %v1893
        %v1910 = vpack.c.b16 %v1896, %v1895
        %v1911 = vpack.c.b16 %v1898, %v1897
        %v1912 = vpack.c.b16 %v1900, %v1899
        %v1913 = vpack.c.b16 %v1902, %v1901
        %v1914 = vpack.c.b16 %v1904, %v1903
        %v1915 = vpack.c.b16 %v1906, %v1905
        %v1916 = vpack.c.b16 %v1908, %v1907
        %1925 = vmatpush.bf16.msra.mxu0 %v1916
        %1926 = vmatpush.bf16.msra.mxu0 %v1915
        %1927 = vmatpush.bf16.msra.mxu0 %v1914
        %1928 = vmatpush.bf16.msra.mxu0 %v1913
        %1929 = vmatpush.bf16.msra.mxu0 %v1912
        %1930 = vmatpush.bf16.msra.mxu0 %v1911
        %1931 = vmatpush.bf16.msra.mxu0 %v1910
        %1932 = vmatpush.bf16.msra.mxu0 %v1909
        %1933 = vmatmul.bf16.gmra.mxu0 %v1869
        %v1934 = vpop.f32.mrf.mxu0
        %v1935 = vadd.f32 0.0, %v1934
        %v1936 = vpop.f32.mrf.mxu0
        %v1937 = vadd.f32 0.0, %v1936
        %1938 = vmatmul.bf16.gmra.mxu0 %v1870
        %v1939 = vpop.f32.mrf.mxu0
        %v1940 = vadd.f32 0.0, %v1939
        %v1941 = vpop.f32.mrf.mxu0
        %v1942 = vadd.f32 0.0, %v1941
        %1943 = vmatmul.bf16.gmra.mxu0 %v1871
        %v1944 = vpop.f32.mrf.mxu0
        %v1945 = vadd.f32 0.0, %v1944
        %v1946 = vpop.f32.mrf.mxu0
        %v1947 = vadd.f32 0.0, %v1946
        %1948 = vmatmul.bf16.gmra.mxu0 %v1872
        %v1949 = vpop.f32.mrf.mxu0
        %v1950 = vadd.f32 0.0, %v1949
        %v1951 = vpop.f32.mrf.mxu0
        %v1952 = vadd.f32 0.0, %v1951
        %1953 = vdwg.mxu0
        %v1954 = vadd.f32 %v1810, %v1935
        %v1955 = vadd.f32 %v1811, %v1937
        %v1956 = vadd.f32 %v1812, %v1940
        %v1957 = vadd.f32 %v1813, %v1942
        %v1958 = vadd.f32 %v1814, %v1945
        %v1959 = vadd.f32 %v1815, %v1947
        %v1960 = vadd.f32 %v1816, %v1950
        %v1961 = vadd.f32 %v1817, %v1952
        %v1963 = vsel %vm1056, %v1548, 0.0
        %v1964 = vpack.c.bf16 %v1963, %v1963
        %vm1965 = vmand %vm1033, %vm1009
        %vm1966 = vmand %vm1034, %vm1010
        %vm1967 = vmand %vm1035, %vm1011
        %vm1968 = vmand %vm1036, %vm1012
        %vm1969 = vmand %vm1037, %vm1013
        %vm1970 = vmand %vm1038, %vm1014
        %vm1971 = vmand %vm1039, %vm1015
        %vm1972 = vmand %vm1040, %vm1016
        %vm1973 = vmpackc.low %vm1965, %vm1965
        %vm1974 = vmpackc.low %vm1966, %vm1966
        %vm1975 = vmpackc.low %vm1967, %vm1967
        %vm1976 = vmpackc.low %vm1968, %vm1968
        %vm1977 = vmpackc.low %vm1969, %vm1969
        %vm1978 = vmpackc.low %vm1970, %vm1970
        %vm1979 = vmpackc.low %vm1971, %vm1971
        %vm1980 = vmpackc.low %vm1972, %vm1972
        %v1981 = vsel %vm1973, %v1079, 0
        %v1982 = vsel %vm1974, %v1080, 0
        %v1983 = vsel %vm1975, %v1081, 0
        %v1984 = vsel %vm1976, %v1082, 0
        %v1985 = vsel %vm1977, %v1083, 0
        %v1986 = vsel %vm1978, %v1084, 0
        %v1987 = vsel %vm1979, %v1551, 0
        %v1988 = vsel %vm1980, %v1964, 0
        %v1989 = vld [vmem:[#allocation7 + $0x180] sm:$0xf]
        %v1990 = vld [vmem:[#allocation7 + $0x184] sm:$0xf]
        %v1991 = vld [vmem:[#allocation7 + $0x188] sm:$0xf]
        %v1992 = vld [vmem:[#allocation7 + $0x18c] sm:$0xf]
        %v1993 = vld [vmem:[#allocation7 + $0x190] sm:$0xf]
        %v1994 = vld [vmem:[#allocation7 + $0x194] sm:$0xf]
        %v1995 = vld [vmem:[#allocation7 + $0x198] sm:$0xf]
        %v1996 = vld [vmem:[#allocation7 + $0x19c] sm:$0xf]
        %v1997 = vld [vmem:[#allocation7 + $0x1a0] sm:$0xf]
        %v1998 = vld [vmem:[#allocation7 + $0x1a4] sm:$0xf]
        %v1999 = vld [vmem:[#allocation7 + $0x1a8] sm:$0xf]
        %v2000 = vld [vmem:[#allocation7 + $0x1ac] sm:$0xf]
        %v2001 = vld [vmem:[#allocation7 + $0x1b0] sm:$0xf]
        %v2002 = vld [vmem:[#allocation7 + $0x1b4] sm:$0xf]
        %v2003 = vld [vmem:[#allocation7 + $0x1b8] sm:$0xf]
        %v2004 = vld [vmem:[#allocation7 + $0x1bc] sm:$0xf]
        %v2013 = vunpack.c.l.b16 %v1981
        %v2014 = vunpack.c.l.b16 %v1982
        %v2015 = vunpack.c.l.b16 %v1983
        %v2016 = vunpack.c.l.b16 %v1984
        %v2017 = vunpack.c.l.b16 %v1985
        %v2018 = vunpack.c.l.b16 %v1986
        %v2019 = vunpack.c.l.b16 %v1987
        %v2020 = vunpack.c.l.b16 %v1988
        %v2021 = vpack.c.b16 %v2014, %v2013
        %v2022 = vpack.c.b16 %v2016, %v2015
        %v2023 = vpack.c.b16 %v2018, %v2017
        %v2024 = vpack.c.b16 %v2020, %v2019
        %v2045 = vunpack.c.l.b16 %v1989
        %v2046 = vunpack.c.l.b16 %v1990
        %v2047 = vunpack.c.l.b16 %v1991
        %v2048 = vunpack.c.l.b16 %v1992
        %v2049 = vunpack.c.l.b16 %v1993
        %v2050 = vunpack.c.l.b16 %v1994
        %v2051 = vunpack.c.l.b16 %v1995
        %v2052 = vunpack.c.l.b16 %v1996
        %v2053 = vunpack.c.l.b16 %v1997
        %v2054 = vunpack.c.l.b16 %v1998
        %v2055 = vunpack.c.l.b16 %v1999
        %v2056 = vunpack.c.l.b16 %v2000
        %v2057 = vunpack.c.l.b16 %v2001
        %v2058 = vunpack.c.l.b16 %v2002
        %v2059 = vunpack.c.l.b16 %v2003
        %v2060 = vunpack.c.l.b16 %v2004
        %v2061 = vpack.c.b16 %v2046, %v2045
        %v2062 = vpack.c.b16 %v2048, %v2047
        %v2063 = vpack.c.b16 %v2050, %v2049
        %v2064 = vpack.c.b16 %v2052, %v2051
        %v2065 = vpack.c.b16 %v2054, %v2053
        %v2066 = vpack.c.b16 %v2056, %v2055
        %v2067 = vpack.c.b16 %v2058, %v2057
        %v2068 = vpack.c.b16 %v2060, %v2059
        %2077 = vmatpush.bf16.msra.mxu0 %v2068
        %2078 = vmatpush.bf16.msra.mxu0 %v2067
        %2079 = vmatpush.bf16.msra.mxu0 %v2066
        %2080 = vmatpush.bf16.msra.mxu0 %v2065
        %2081 = vmatpush.bf16.msra.mxu0 %v2064
        %2082 = vmatpush.bf16.msra.mxu0 %v2063
        %2083 = vmatpush.bf16.msra.mxu0 %v2062
        %2084 = vmatpush.bf16.msra.mxu0 %v2061
        %2085 = vmatmul.bf16.gmra.mxu0 %v2021
        %v2086 = vpop.f32.mrf.mxu0
        %v2087 = vadd.f32 0.0, %v2086
        %v2088 = vpop.f32.mrf.mxu0
        %v2089 = vadd.f32 0.0, %v2088
        %2090 = vmatmul.bf16.gmra.mxu0 %v2022
        %v2091 = vpop.f32.mrf.mxu0
        %v2092 = vadd.f32 0.0, %v2091
        %v2093 = vpop.f32.mrf.mxu0
        %v2094 = vadd.f32 0.0, %v2093
        %2095 = vmatmul.bf16.gmra.mxu0 %v2023
        %v2096 = vpop.f32.mrf.mxu0
        %v2097 = vadd.f32 0.0, %v2096
        %v2098 = vpop.f32.mrf.mxu0
        %v2099 = vadd.f32 0.0, %v2098
        %2100 = vmatmul.bf16.gmra.mxu0 %v2024
        %v2101 = vpop.f32.mrf.mxu0
        %v2102 = vadd.f32 0.0, %v2101
        %v2103 = vpop.f32.mrf.mxu0
        %v2104 = vadd.f32 0.0, %v2103
        %2105 = vdwg.mxu0
        %v2106 = vadd.f32 %v1954, %v2087
        %v2107 = vadd.f32 %v1955, %v2089
        %v2108 = vadd.f32 %v1956, %v2092
        %v2109 = vadd.f32 %v1957, %v2094
        %v2110 = vadd.f32 %v1958, %v2097
        %v2111 = vadd.f32 %v1959, %v2099
        %v2112 = vadd.f32 %v1960, %v2102
        %v2113 = vadd.f32 %v1961, %v2104
        %v2114 = vpack.c.bf16 %v1048, %v1048
        %vm2115 = vmpackc.low %vm1033, %vm1033
        %vm2116 = vmpackc.low %vm1034, %vm1034
        %vm2117 = vmpackc.low %vm1035, %vm1035
        %vm2118 = vmpackc.low %vm1036, %vm1036
        %vm2119 = vmpackc.low %vm1037, %vm1037
        %vm2120 = vmpackc.low %vm1038, %vm1038
        %vm2121 = vmpackc.low %vm1039, %vm1039
        %vm2122 = vmpackc.low %vm1040, %vm1040
        %v2123 = vsel %vm2115, %v1126, 0
        %v2124 = vsel %vm2116, %v1127, 0
        %v2125 = vsel %vm2117, %v1128, 0
        %v2126 = vsel %vm2118, %v1129, 0
        %v2127 = vsel %vm2119, %v1130, 0
        %v2128 = vsel %vm2120, %v1131, 0
        %v2129 = vsel %vm2121, %v2114, 0
        %v2130 = vsel %vm2122, %v303, 0
        %v2131 = vld [vmem:[#allocation7 + $0x1c0] sm:$0xf]
        %v2132 = vld [vmem:[#allocation7 + $0x1c4] sm:$0xf]
        %v2133 = vld [vmem:[#allocation7 + $0x1c8] sm:$0xf]
        %v2134 = vld [vmem:[#allocation7 + $0x1cc] sm:$0xf]
        %v2135 = vld [vmem:[#allocation7 + $0x1d0] sm:$0xf]
        %v2136 = vld [vmem:[#allocation7 + $0x1d4] sm:$0xf]
        %v2137 = vld [vmem:[#allocation7 + $0x1d8] sm:$0xf]
        %v2138 = vld [vmem:[#allocation7 + $0x1dc] sm:$0xf]
        %v2139 = vld [vmem:[#allocation7 + $0x1e0] sm:$0xf]
        %v2140 = vld [vmem:[#allocation7 + $0x1e4] sm:$0xf]
        %v2141 = vld [vmem:[#allocation7 + $0x1e8] sm:$0xf]
        %v2142 = vld [vmem:[#allocation7 + $0x1ec] sm:$0xf]
        %v2143 = vld [vmem:[#allocation7 + $0x1f0] sm:$0xf]
        %v2144 = vld [vmem:[#allocation7 + $0x1f4] sm:$0xf]
        %v2145 = vld [vmem:[#allocation7 + $0x1f8] sm:$0xf]
        %v2146 = vld [vmem:[#allocation7 + $0x1fc] sm:$0xf]
        %v2155 = vunpack.c.l.b16 %v2123
        %v2156 = vunpack.c.l.b16 %v2124
        %v2157 = vunpack.c.l.b16 %v2125
        %v2158 = vunpack.c.l.b16 %v2126
        %v2159 = vunpack.c.l.b16 %v2127
        %v2160 = vunpack.c.l.b16 %v2128
        %v2161 = vunpack.c.l.b16 %v2129
        %v2162 = vunpack.c.l.b16 %v2130
        %v2163 = vpack.c.b16 %v2156, %v2155
        %v2164 = vpack.c.b16 %v2158, %v2157
        %v2165 = vpack.c.b16 %v2160, %v2159
        %v2166 = vpack.c.b16 %v2162, %v2161
        %v2187 = vunpack.c.l.b16 %v2131
        %v2188 = vunpack.c.l.b16 %v2132
        %v2189 = vunpack.c.l.b16 %v2133
        %v2190 = vunpack.c.l.b16 %v2134
        %v2191 = vunpack.c.l.b16 %v2135
        %v2192 = vunpack.c.l.b16 %v2136
        %v2193 = vunpack.c.l.b16 %v2137
        %v2194 = vunpack.c.l.b16 %v2138
        %v2195 = vunpack.c.l.b16 %v2139
        %v2196 = vunpack.c.l.b16 %v2140
        %v2197 = vunpack.c.l.b16 %v2141
        %v2198 = vunpack.c.l.b16 %v2142
        %v2199 = vunpack.c.l.b16 %v2143
        %v2200 = vunpack.c.l.b16 %v2144
        %v2201 = vunpack.c.l.b16 %v2145
        %v2202 = vunpack.c.l.b16 %v2146
        %v2203 = vpack.c.b16 %v2188, %v2187
        %v2204 = vpack.c.b16 %v2190, %v2189
        %v2205 = vpack.c.b16 %v2192, %v2191
        %v2206 = vpack.c.b16 %v2194, %v2193
        %v2207 = vpack.c.b16 %v2196, %v2195
        %v2208 = vpack.c.b16 %v2198, %v2197
        %v2209 = vpack.c.b16 %v2200, %v2199
        %v2210 = vpack.c.b16 %v2202, %v2201
        %2219 = vmatpush.bf16.msra.mxu0 %v2210
        %2220 = vmatpush.bf16.msra.mxu0 %v2209
        %2221 = vmatpush.bf16.msra.mxu0 %v2208
        %2222 = vmatpush.bf16.msra.mxu0 %v2207
        %2223 = vmatpush.bf16.msra.mxu0 %v2206
        %2224 = vmatpush.bf16.msra.mxu0 %v2205
        %2225 = vmatpush.bf16.msra.mxu0 %v2204
        %2226 = vmatpush.bf16.msra.mxu0 %v2203
        %2227 = vmatmul.bf16.gmra.mxu0 %v2163
        %v2228 = vpop.f32.mrf.mxu0
        %v2229 = vadd.f32 0.0, %v2228
        %v2230 = vpop.f32.mrf.mxu0
        %v2231 = vadd.f32 0.0, %v2230
        %2232 = vmatmul.bf16.gmra.mxu0 %v2164
        %v2233 = vpop.f32.mrf.mxu0
        %v2234 = vadd.f32 0.0, %v2233
        %v2235 = vpop.f32.mrf.mxu0
        %v2236 = vadd.f32 0.0, %v2235
        %2237 = vmatmul.bf16.gmra.mxu0 %v2165
        %v2238 = vpop.f32.mrf.mxu0
        %v2239 = vadd.f32 0.0, %v2238
        %v2240 = vpop.f32.mrf.mxu0
        %v2241 = vadd.f32 0.0, %v2240
        %2242 = vmatmul.bf16.gmra.mxu0 %v2166
        %v2243 = vpop.f32.mrf.mxu0
        %v2244 = vadd.f32 0.0, %v2243
        %v2245 = vpop.f32.mrf.mxu0
        %v2246 = vadd.f32 0.0, %v2245
        %2247 = vdwg.mxu0
        %v2248 = vadd.f32 %v2106, %v2229
        %v2249 = vadd.f32 %v2107, %v2231
        %v2250 = vadd.f32 %v2108, %v2234
        %v2251 = vadd.f32 %v2109, %v2236
        %v2252 = vadd.f32 %v2110, %v2239
        %v2253 = vadd.f32 %v2111, %v2241
        %v2254 = vadd.f32 %v2112, %v2244
        %v2255 = vadd.f32 %v2113, %v2246
        %vm2256 = vmand %vm1033, %vm1017
        %vm2257 = vmand %vm1034, %vm1018
        %vm2258 = vmand %vm1035, %vm1019
        %vm2259 = vmand %vm1036, %vm1020
        %vm2260 = vmand %vm1037, %vm1021
        %vm2261 = vmand %vm1038, %vm1022
        %vm2262 = vmand %vm1039, %vm1023
        %vm2263 = vmand %vm1040, %vm1024
        %vm2264 = vmpackc.low %vm2256, %vm2256
        %vm2265 = vmpackc.low %vm2257, %vm2257
        %vm2266 = vmpackc.low %vm2258, %vm2258
        %vm2267 = vmpackc.low %vm2259, %vm2259
        %vm2268 = vmpackc.low %vm2260, %vm2260
        %vm2269 = vmpackc.low %vm2261, %vm2261
        %vm2270 = vmpackc.low %vm2262, %vm2262
        %vm2271 = vmpackc.low %vm2263, %vm2263
        %v2272 = vsel %vm2264, %v1393, 0
        %v2273 = vsel %vm2265, %v1394, 0
        %v2274 = vsel %vm2266, %v1395, 0
        %v2275 = vsel %vm2267, %v1396, 0
        %v2276 = vsel %vm2268, %v1397, 0
        %v2277 = vsel %vm2269, %v1398, 0
        %v2278 = vsel %vm2270, %v1820, 0
        %v2279 = vsel %vm2271, %v303, 0
        %v2280 = vld [vmem:[#allocation7 + $0x200] sm:$0xf]
        %v2281 = vld [vmem:[#allocation7 + $0x204] sm:$0xf]
        %v2282 = vld [vmem:[#allocation7 + $0x208] sm:$0xf]
        %v2283 = vld [vmem:[#allocation7 + $0x20c] sm:$0xf]
        %v2284 = vld [vmem:[#allocation7 + $0x210] sm:$0xf]
        %v2285 = vld [vmem:[#allocation7 + $0x214] sm:$0xf]
        %v2286 = vld [vmem:[#allocation7 + $0x218] sm:$0xf]
        %v2287 = vld [vmem:[#allocation7 + $0x21c] sm:$0xf]
        %v2288 = vld [vmem:[#allocation7 + $0x220] sm:$0xf]
        %v2289 = vld [vmem:[#allocation7 + $0x224] sm:$0xf]
        %v2290 = vld [vmem:[#allocation7 + $0x228] sm:$0xf]
        %v2291 = vld [vmem:[#allocation7 + $0x22c] sm:$0xf]
        %v2292 = vld [vmem:[#allocation7 + $0x230] sm:$0xf]
        %v2293 = vld [vmem:[#allocation7 + $0x234] sm:$0xf]
        %v2294 = vld [vmem:[#allocation7 + $0x238] sm:$0xf]
        %v2295 = vld [vmem:[#allocation7 + $0x23c] sm:$0xf]
        %v2304 = vunpack.c.l.b16 %v2272
        %v2305 = vunpack.c.l.b16 %v2273
        %v2306 = vunpack.c.l.b16 %v2274
        %v2307 = vunpack.c.l.b16 %v2275
        %v2308 = vunpack.c.l.b16 %v2276
        %v2309 = vunpack.c.l.b16 %v2277
        %v2310 = vunpack.c.l.b16 %v2278
        %v2311 = vunpack.c.l.b16 %v2279
        %v2312 = vpack.c.b16 %v2305, %v2304
        %v2313 = vpack.c.b16 %v2307, %v2306
        %v2314 = vpack.c.b16 %v2309, %v2308
        %v2315 = vpack.c.b16 %v2311, %v2310
        %v2336 = vunpack.c.l.b16 %v2280
        %v2337 = vunpack.c.l.b16 %v2281
        %v2338 = vunpack.c.l.b16 %v2282
        %v2339 = vunpack.c.l.b16 %v2283
        %v2340 = vunpack.c.l.b16 %v2284
        %v2341 = vunpack.c.l.b16 %v2285
        %v2342 = vunpack.c.l.b16 %v2286
        %v2343 = vunpack.c.l.b16 %v2287
        %v2344 = vunpack.c.l.b16 %v2288
        %v2345 = vunpack.c.l.b16 %v2289
        %v2346 = vunpack.c.l.b16 %v2290
        %v2347 = vunpack.c.l.b16 %v2291
        %v2348 = vunpack.c.l.b16 %v2292
        %v2349 = vunpack.c.l.b16 %v2293
        %v2350 = vunpack.c.l.b16 %v2294
        %v2351 = vunpack.c.l.b16 %v2295
        %v2352 = vpack.c.b16 %v2337, %v2336
        %v2353 = vpack.c.b16 %v2339, %v2338
        %v2354 = vpack.c.b16 %v2341, %v2340
        %v2355 = vpack.c.b16 %v2343, %v2342
        %v2356 = vpack.c.b16 %v2345, %v2344
        %v2357 = vpack.c.b16 %v2347, %v2346
        %v2358 = vpack.c.b16 %v2349, %v2348
        %v2359 = vpack.c.b16 %v2351, %v2350
        %2368 = vmatpush.bf16.msra.mxu0 %v2359
        %2369 = vmatpush.bf16.msra.mxu0 %v2358
        %2370 = vmatpush.bf16.msra.mxu0 %v2357
        %2371 = vmatpush.bf16.msra.mxu0 %v2356
        %2372 = vmatpush.bf16.msra.mxu0 %v2355
        %2373 = vmatpush.bf16.msra.mxu0 %v2354
        %2374 = vmatpush.bf16.msra.mxu0 %v2353
        %2375 = vmatpush.bf16.msra.mxu0 %v2352
        %2376 = vmatmul.bf16.gmra.mxu0 %v2312
        %v2377 = vpop.f32.mrf.mxu0
        %v2378 = vadd.f32 0.0, %v2377
        %v2379 = vpop.f32.mrf.mxu0
        %v2380 = vadd.f32 0.0, %v2379
        %2381 = vmatmul.bf16.gmra.mxu0 %v2313
        %v2382 = vpop.f32.mrf.mxu0
        %v2383 = vadd.f32 0.0, %v2382
        %v2384 = vpop.f32.mrf.mxu0
        %v2385 = vadd.f32 0.0, %v2384
        %2386 = vmatmul.bf16.gmra.mxu0 %v2314
        %v2387 = vpop.f32.mrf.mxu0
        %v2388 = vadd.f32 0.0, %v2387
        %v2389 = vpop.f32.mrf.mxu0
        %v2390 = vadd.f32 0.0, %v2389
        %2391 = vmatmul.bf16.gmra.mxu0 %v2315
        %v2392 = vpop.f32.mrf.mxu0
        %v2393 = vadd.f32 0.0, %v2392
        %v2394 = vpop.f32.mrf.mxu0
        %v2395 = vadd.f32 0.0, %v2394
        %2396 = vdwg.mxu0
        %v2397 = vadd.f32 %v2248, %v2378
        %v2398 = vadd.f32 %v2249, %v2380
        %v2399 = vadd.f32 %v2250, %v2383
        %v2400 = vadd.f32 %v2251, %v2385
        %v2401 = vadd.f32 %v2252, %v2388
        %v2402 = vadd.f32 %v2253, %v2390
        %v2403 = vadd.f32 %v2254, %v2393
        %v2404 = vadd.f32 %v2255, %v2395
        %v2405 = vld [vmem:[%s2] sm:$0x1]
        %v2407 = vperm.slane %v2405, 0
        %v2409 = vadd.f32 %v2397, %v2407
        %v2410 = vadd.f32 %v2398, %v2407
        %v2411 = vadd.f32 %v2399, %v2407
        %v2412 = vadd.f32 %v2400, %v2407
        %v2413 = vadd.f32 %v2401, %v2407
        %v2414 = vadd.f32 %v2402, %v2407
        %v2415 = vadd.f32 %v2403, %v2407
        %v2416 = vadd.f32 %v2404, %v2407
        %v2417 = vpack.c.bf16 %v2409, %v2409
        %v2418 = vpack.c.bf16 %v2410, %v2410
        %v2419 = vpack.c.bf16 %v2411, %v2411
        %v2420 = vpack.c.bf16 %v2412, %v2412
        %v2421 = vpack.c.bf16 %v2413, %v2413
        %v2422 = vpack.c.bf16 %v2414, %v2414
        %v2423 = vpack.c.bf16 %v2415, %v2415
        %v2424 = vpack.c.bf16 %v2416, %v2416
        %2425 = vst [vmem:[%s207] sm:$0xf] %v2417
        %2426 = vst [vmem:[%s207 + $0x4] sm:$0xf] %v2418
        %2427 = vst [vmem:[%s207 + $0x8] sm:$0xf] %v2419
        %2428 = vst [vmem:[%s207 + $0xc] sm:$0xf] %v2420
        %2429 = vst [vmem:[%s207 + $0x10] sm:$0xf] %v2421
        %2430 = vst [vmem:[%s207 + $0x14] sm:$0xf] %v2422
        %2431 = vst [vmem:[%s207 + $0x18] sm:$0xf] %v2423
        %2432 = vst [vmem:[%s207 + $0x1c] sm:$0xf] %v2424
        %s2433 = sand.u32 %s97, 1
        %s2434 = scalar_lea.sflag [#allocation6], %s2433
        %s2435 = sand.u32 %s97, 1
        %s2436 = smul.addr %s2435, 32
        %s2437 = scalar_lea.vmem [#allocation9], %s2436
        // Predicated region
        $region41: #{tpu_custom_call.1} parent=31 // pred_check
          %p2438 = pneg %p107
        $region42: #{tpu_custom_call.1} parent=31 // pred_check_branch
          %2440 = sbr.rel (%p2438) target = $region44
        $region43: #{tpu_custom_call.1} parent=31 // pred_region
          %2442 = vsyncadd %s2434, 0
          %s2443 = smul.addr %s21, 8
          %s2444 = smul.addr %s2443, 4
          %s2445 = scalar_lea.hbm %s3, %s2444
          %s2446 = sshll.u32 %s2437, 4
          %s2447 = int_to_ptr.vmem [resolvable:$true] %s2446
          %s2448 = sshll.u32 %s2445, 4
          %s2449 = int_to_ptr.hbm [resolvable:$true] %s2448
          %2454 = dma.vmem_to_hbm [thread:$0]  %s2447, 512, %s2449, %s2434, 64, 64, 4
        $region44: #{tpu_custom_call.1} parent=31 // pred_fallthru
          _
      $region32: #{tpu_custom_call.1} parent=5 // pred_fallthru
        _
      %p2455 = scmp.le.s32.totalorder 2, %s16
      // Predicated region
      $region45: #{tpu_custom_call.1} parent=5 // pred_check
        %p2456 = pneg %p2455
      $region46: #{tpu_custom_call.1} parent=5 // pred_check_branch
        %2458 = sbr.rel (%p2456) target = $region48
      $region47: #{tpu_custom_call.1} parent=5 // pred_region
        %s2459 = ssub.s32 %s16, 2
        // Predicated region
        $region49: #{tpu_custom_call.1} parent=47 // pred_check
          %p2460 = pneg %p113
        $region50: #{tpu_custom_call.1} parent=47 // pred_check_branch
          %2462 = sbr.rel (%p2460) target = $region52
        $region51: #{tpu_custom_call.1} parent=47 // pred_region
          %s2463 = sand.u32 %s98, 1
          %s2464 = scalar_lea.sflag [#allocation6], %s2463
          %s2465 = sand.u32 %s98, 1
          %s2466 = smul.addr %s2465, 32
          %s2467 = scalar_lea.vmem [#allocation9], %s2466
          %2469 = dma.done %s2464, 512
        $region52: #{tpu_custom_call.1} parent=47 // pred_fallthru
          _
      $region48: #{tpu_custom_call.1} parent=5 // pred_fallthru
        _
    $region6: #{tpu_custom_call.1} parent=1 // loop_footer
      %s20 = sadd.s32 1, %s16
    $region7: #{tpu_custom_call.1} parent=1 // loop_footer_branch
      %15 = sbr.rel target = $region3
    $region8: #{tpu_custom_call.1} parent=1 // loop_exit
      _
    %2470 = vsyncpa [#allocation5], 1
    %s2471 = scalar_lea.sflag [#allocation5], 1
    %2472 = vsyncpa %s2471, 1
    %2473 = vsyncpa [#allocation8], 1
    %2474 = vsyncpa [#allocation6], 1
    %s2475 = scalar_lea.sflag [#allocation6], 1
    %2476 = vsyncpa %s2475, 1

</llo_original>
